<compile_context>
chip_gen: v7x
topology: tpu7x:2x2x1
jax: 0.10.0
libtpu: 0.0.40
codegen_flags: <defaults>
</compile_context>

<pallas_src>
import math

import jax
import jax.numpy as jnp
from jax import lax
from jax.experimental import pallas as pl
from jax.experimental.pallas import tpu as pltpu

EPS = 1e-5

_WEIGHT_ORDER = ("ln1_g", "ln1_b", "wqkv", "bqkv", "wo", "bo",
                 "ln2_g", "ln2_b", "w1", "b1", "w2", "b2")
_BIG_MATS = ("wqkv", "wo", "w1", "w2")


def _layernorm(x, gamma, beta):
    # x: (M, D) f32, gamma/beta: (1, D) f32 — statistics always in f32.
    mu = jnp.mean(x, axis=-1, keepdims=True)
    xc = x - mu
    var = jnp.mean(xc * xc, axis=-1, keepdims=True)
    return xc * lax.rsqrt(var + EPS) * gamma + beta


def _gelu_exact(x):
    # exact (erf-based) GELU, matching torch.nn.GELU() default
    return 0.5 * x * (1.0 + lax.erf(x * (1.0 / math.sqrt(2.0))))


def make_clip_layer_kernel(num_heads: int, d_model: int, batch_tile: int, seq_len: int,
                           compute_dtype, approx_softmax: bool, approximate_gelu: bool):
    H, D, Bt, S = num_heads, d_model, batch_tile, seq_len
    dh = D // H
    scale = 1.0 / math.sqrt(dh)
    M = Bt * S

    def kernel(x_ref,
               ln1_g_ref, ln1_b_ref,
               wqkv_ref, bqkv_ref,
               wo_ref, bo_ref,
               ln2_g_ref, ln2_b_ref,
               w1_ref, b1_ref,
               w2_ref, b2_ref,
               o_ref):
        # Fold the batch tile into the matmul M dimension: projections / FFN are
        # token-parallel so a (Bt*S, D) operand fills the 128/256-wide MXU.
        x = x_ref[...].astype(jnp.float32).reshape(M, D)

        # ---- LayerNorm 1 (f32 statistics) ----
        h = _layernorm(x, ln1_g_ref[...], ln1_b_ref[...])

        # ---- Fused QKV projection (MXU, f32 accumulation) ----
        qkv = jnp.dot(h.astype(compute_dtype), wqkv_ref[...],
                      preferred_element_type=jnp.float32) + bqkv_ref[...]
        # Attention scale folded into q here (M*D multiplies, not H*S*S on the scores).
        q4 = (qkv[:, 0 * D:1 * D] * scale).reshape(Bt, S, H, dh)
        k4 = qkv[:, 1 * D:2 * D].reshape(Bt, S, H, dh)
        v4 = qkv[:, 2 * D:3 * D].reshape(Bt, S, H, dh)

        # ---- Attention: heads batched in 3-D dot_generals, no q/k/v swapaxes.  The only
        # relayout is the (H,S,dh)->(S,H,dh) merge, expressed via the einsum output spec.
        ctx_rows = []
        for b in range(Bt):                      # Bt is small & static (unrolled)
            qb = q4[b].astype(compute_dtype)     # (S, H, dh)
            kb = k4[b].astype(compute_dtype)
            vb = v4[b].astype(compute_dtype)
            scores = jnp.einsum("qhd,khd->hqk", qb, kb,
                                preferred_element_type=jnp.float32)   # (H, S, S)
            m = jnp.max(scores, axis=-1, keepdims=True)
            e = jnp.exp(scores - m)
            den = jnp.sum(e, axis=-1, keepdims=True)
            if approx_softmax:
                attn = e * pl.reciprocal(den, approx=True)            # EUP slot
            else:
                attn = e / den                                        # exact, for parity
            ctx = jnp.einsum("hqk,khd->qhd", attn.astype(compute_dtype), vb,
                             preferred_element_type=jnp.float32)      # (S, H, dh)
            ctx_rows.append(ctx.reshape(S, D))
        attn_out = ctx_rows[0] if Bt == 1 else jnp.concatenate(ctx_rows, axis=0)  # (M, D)

        attn_out = jnp.dot(attn_out.astype(compute_dtype), wo_ref[...],
                           preferred_element_type=jnp.float32) + bo_ref[...]

        # dropout == identity (eval); residual add
        x1 = attn_out + x

        # ---- LayerNorm 2 + FeedForward ----
        h2 = _layernorm(x1, ln2_g_ref[...], ln2_b_ref[...])
        f = jnp.dot(h2.astype(compute_dtype), w1_ref[...],
                    preferred_element_type=jnp.float32) + b1_ref[...]
        if approximate_gelu:
            f = jax.nn.gelu(f, approximate=True)     # tanh-based, uses the idle EUP slot
        else:
            f = _gelu_exact(f)                       # matches torch.nn.GELU() default
        f = jnp.dot(f.astype(compute_dtype), w2_ref[...],
                    preferred_element_type=jnp.float32) + b2_ref[...]

        o_ref[...] = (f + x1).reshape(Bt, S, D).astype(o_ref.dtype)

    return kernel


def cast_params(params, compute_dtype):
    """One-time cast of the big matmul weights to compute_dtype.  Do this OUTSIDE the hot
    call path so no per-call f32->bf16 HBM re-cast of the weights happens."""
    out = dict(params)
    for name in _BIG_MATS:
        out[name] = params[name].astype(compute_dtype)
    return out


def _choose_batch_tile(B: int, S: int, target_m: int = 128) -> int:
    divisors = [d for d in range(1, B + 1) if B % d == 0]
    # Smallest batch tile whose folded M = Bt*S already fills a 128-wide MXU pass:
    # maximizes grid steps (keeps both v7x TensorCores busy) subject to MXU utilization.
    for d in divisors:
        if d * S >= target_m:
            return d
    # Can't reach 128 anyway: keep >= 2 grid steps when possible for megacore.
    small = [d for d in divisors if B // d >= 2]
    return small[-1] if small else divisors[-1]


def _vmem_cap_bytes() -> int:
    # Generation-aware cap: ~7/8 of physical per-core VMEM (56 MiB on v7x, 112 MiB on
    # v5e/v6e).  Fallback (query unavailable) assumes the smallest generation — this only
    # affects a scheduling hint, never correctness.
    try:
        phys = int(pltpu.get_tpu_info().vmem_capacity_bytes)
    except Exception:
        phys = 64 * 2 ** 20
    return (phys * 7) // 8


def clip_layer(x, params, num_heads: int,
               compute_dtype=jnp.bfloat16,
               single_buffer_weights: bool = True,
               approx_softmax: bool = True,
               approximate_gelu: bool = False,
               batch_tile=None):
    """x: (B, S, D) float32. params: dict of weights (see init_params / cast_params).

    compute_dtype feeds the MXU matmuls only; LayerNorm/softmax/GELU statistics and all
    accumulators stay f32 (important on v5e where the VPU/EUP have no bf16)."""
    B, S, D = x.shape
    assert D % num_heads == 0, "d_model must be divisible by num_heads"
    dh = D // num_heads

    weights = []
    for name in _WEIGHT_ORDER:
        w = params[name]
        if name in _BIG_MATS and w.dtype != compute_dtype:
            # Fallback per-call cast; prefer pre-casting once with cast_params().
            w = w.astype(compute_dtype)
        weights.append(w)

    Bt = batch_tile if batch_tile is not None else _choose_batch_tile(B, S)
    assert B % Bt == 0, "batch_tile must divide batch"

    kernel = make_clip_layer_kernel(num_heads, D, Bt, S, compute_dtype,
                                    approx_softmax, approximate_gelu)

    # Advisory cost estimate so XLA schedules surrounding ops sensibly.
    flops = B * (2 * S * D * (12 * D) + 4 * num_heads * S * S * dh)
    transcendentals = B * (num_heads * S * S + 4 * S * D + num_heads * S + 2 * S)
    bytes_accessed = (2 * int(x.size) * x.dtype.itemsize
                      + sum(int(w.size) * w.dtype.itemsize for w in weights))
    cost = pl.CostEstimate(flops=int(flops), transcendentals=int(transcendentals),
                           bytes_accessed=int(bytes_accessed))

    weight_bytes = sum(int(w.size) * w.dtype.itemsize for w in weights)
    M = Bt * S
    # f32 temporaries: qkv (M,3D), per-b scores (Bt,H,S,S), FFN hidden (M,4D), misc (M,D)s
    act_bytes = 4 * (M * 3 * D + Bt * num_heads * S * S + M * 4 * D + 4 * M * D)
    io_bytes = 2 * 2 * M * D * x.dtype.itemsize        # double-buffered in + out blocks

    def run(buffered_weights: bool):
        weight_specs = []
        for w in weights:
            if buffered_weights:
                # Constant index_map across the grid -> a single resident buffer suffices;
                # avoids Pallas' default double-buffering of never-changing weights.
                spec = pl.BlockSpec(w.shape, lambda b: (0, 0),
                                    pipeline_mode=pl.Buffered(1))
            else:
                spec = pl.BlockSpec(w.shape, lambda b: (0, 0))
            weight_specs.append(spec)

        vmem_est = ((1 if buffered_weights else 2) * weight_bytes
                    + io_bytes + 2 * act_bytes)
        vmem_limit = int(min(_vmem_cap_bytes(),
                             max(32 * 2 ** 20, int(1.5 * vmem_est))))

        return pl.pallas_call(
            kernel,
            out_shape=jax.ShapeDtypeStruct((B, S, D), x.dtype),
            grid_spec=pltpu.PrefetchScalarGridSpec(
                num_scalar_prefetch=0,
                grid=(B // Bt,),
                in_specs=[pl.BlockSpec((Bt, S, D), lambda b: (b, 0, 0))] + weight_specs,
                out_specs=pl.BlockSpec((Bt, S, D), lambda b: (b, 0, 0)),
            ),
            compiler_params=pltpu.CompilerParams(
                dimension_semantics=("parallel",),
                vmem_limit_bytes=vmem_limit,
            ),
            cost_estimate=cost,
        )(x, *weights)

    if single_buffer_weights:
        try:
            return run(True)
        except (TypeError, ValueError, NotImplementedError, pltpu.LoweringException):
            # Narrow fallback: only "this jax doesn't support pipeline_mode=pl.Buffered(1)"
            # style failures fall back to default buffering; genuine compile failures
            # (e.g. v7x VMEM overflow) propagate instead of being silently hidden.
            pass
    return run(False)


def init_params(key, d_model: int):
    ks = jax.random.split(key, 12)
    std = 0.02
    return {
        # LayerNorm 1
        "ln1_g": 1.0 + std * jax.random.normal(ks[0], (1, d_model), jnp.float32),
        "ln1_b": std * jax.random.normal(ks[1], (1, d_model), jnp.float32),
        # Attention: fused in-proj (d -> 3d) and out-proj (d -> d); layout (in, out)
        "wqkv": std * jax.random.normal(ks[2], (d_model, 3 * d_model), jnp.float32),
        "bqkv": std * jax.random.normal(ks[3], (1, 3 * d_model), jnp.float32),
        "wo": std * jax.random.normal(ks[4], (d_model, d_model), jnp.float32),
        "bo": std * jax.random.normal(ks[5], (1, d_model), jnp.float32),
        # LayerNorm 2
        "ln2_g": 1.0 + std * jax.random.normal(ks[6], (1, d_model), jnp.float32),
        "ln2_b": std * jax.random.normal(ks[7], (1, d_model), jnp.float32),
        # FeedForward: d -> 4d -> d
        "w1": std * jax.random.normal(ks[8], (d_model, 4 * d_model), jnp.float32),
        "b1": std * jax.random.normal(ks[9], (1, 4 * d_model), jnp.float32),
        "w2": std * jax.random.normal(ks[10], (4 * d_model, d_model), jnp.float32),
        "b2": std * jax.random.normal(ks[11], (1, d_model), jnp.float32),
    }


def reference_clip_layer(x, p, num_heads: int):
    """Pure-JAX f32 reference mirroring the PyTorch forward (dropout = identity)."""
    B, S, D = x.shape
    dh = D // num_heads

    def ln(v, g, b):
        mu = jnp.mean(v, axis=-1, keepdims=True)
        var = jnp.mean((v - mu) ** 2, axis=-1, keepdims=True)
        return (v - mu) / jnp.sqrt(var + EPS) * g + b

    shortcut = x
    h = ln(x, p["ln1_g"], p["ln1_b"])
    qkv = h @ p["wqkv"] + p["bqkv"]
    q, k, v = jnp.split(qkv, 3, axis=-1)
    q = q.reshape(B, S, num_heads, dh).transpose(0, 2, 1, 3)
    k = k.reshape(B, S, num_heads, dh).transpose(0, 2, 1, 3)
    v = v.reshape(B, S, num_heads, dh).transpose(0, 2, 1, 3)
    scores = jnp.einsum("bhqd,bhkd->bhqk", q, k) / math.sqrt(dh)
    attn = jax.nn.softmax(scores, axis=-1)
    o = jnp.einsum("bhqk,bhkd->bhqd", attn, v).transpose(0, 2, 1, 3).reshape(B, S, D)
    o = o @ p["wo"] + p["bo"]
    x1 = o + shortcut

    shortcut = x1
    h2 = ln(x1, p["ln2_g"], p["ln2_b"])
    f = h2 @ p["w1"] + p["b1"]
    f = 0.5 * f * (1.0 + lax.erf(f / math.sqrt(2.0)))
    f = f @ p["w2"] + p["b2"]
    return f + shortcut


if __name__ == "__main__":
    key = jax.random.PRNGKey(0)
    k1, k2, k3, k4, k5, k6 = jax.random.split(key, 6)

    # --- Config 1: module defaults (num_heads=1), exact f32 MXU path, exact softmax ---
    B, S, D, H = 2, 8, 32, 1
    x = jax.random.normal(k1, (B, S, D), jnp.float32)
    params = init_params(k2, D)
    out = jax.block_until_ready(
        clip_layer(x, params, num_heads=H,
                   compute_dtype=jnp.float32, approx_softmax=False))
    ref = reference_clip_layer(x, params, num_heads=H)
    assert out.shape == (B, S, D)
    err = float(jnp.max(jnp.abs(out - ref)))
    assert err < 1e-3, f"f32 path max abs err {err}"

    # --- Config 2: multi-head, default bf16-on-MXU path (f32 stats/accumulation),
    #     weights pre-cast ONCE outside the call path ---
    B2, S2, D2, H2 = 2, 16, 128, 4
    x2 = jax.random.normal(k3, (B2, S2, D2), jnp.float32)
    params2 = init_params(k4, D2)
    params2_bf16 = cast_params(params2, jnp.bfloat16)
    out2 = jax.block_until_ready(clip_layer(x2, params2_bf16, num_heads=H2))
    ref2 = reference_clip_layer(x2, params2, num_heads=H2)
    assert out2.shape == (B2, S2, D2)
    err2 = float(jnp.max(jnp.abs(out2 - ref2)))
    assert err2 < 5e-2, f"bf16 path max abs err {err2}"

    # --- Config 3: batch-folded grid step (Bt = 2), multi-head, f32 parity check ---
    B3, S3, D3, H3 = 4, 8, 32, 2
    x3 = jax.random.normal(k5, (B3, S3, D3), jnp.float32)
    params3 = init_params(k6, D3)
    out3 = jax.block_until_ready(
        clip_layer(x3, params3, num_heads=H3,
                   compute_dtype=jnp.float32, approx_softmax=False))
    ref3 = reference_clip_layer(x3, params3, num_heads=H3)
    assert out3.shape == (B3, S3, D3)
    err3 = float(jnp.max(jnp.abs(out3 - ref3)))
    assert err3 < 1e-3, f"f32 batch-folded max abs err {err3}"

    print("KERNEL_OK")
</pallas_src>

<mosaic_0001>
module attributes {stable_mosaic.version = 11 : i64} {
  func.func @kernel(%arg0: i32, %arg1: memref<1x8x32xf32, #tpu.memory_space<vmem>>, %arg2: memref<1x32xf32, #tpu.memory_space<vmem>>, %arg3: memref<1x32xf32, #tpu.memory_space<vmem>>, %arg4: memref<32x96xf32, #tpu.memory_space<vmem>>, %arg5: memref<1x96xf32, #tpu.memory_space<vmem>>, %arg6: memref<32x32xf32, #tpu.memory_space<vmem>>, %arg7: memref<1x32xf32, #tpu.memory_space<vmem>>, %arg8: memref<1x32xf32, #tpu.memory_space<vmem>>, %arg9: memref<1x32xf32, #tpu.memory_space<vmem>>, %arg10: memref<32x128xf32, #tpu.memory_space<vmem>>, %arg11: memref<1x128xf32, #tpu.memory_space<vmem>>, %arg12: memref<128x32xf32, #tpu.memory_space<vmem>>, %arg13: memref<1x32xf32, #tpu.memory_space<vmem>>, %arg14: memref<1x8x32xf32, #tpu.memory_space<vmem>>) attributes {dimension_semantics = [#tpu.dimension_semantics<parallel>], iteration_bounds = array<i64: 2>, scalar_prefetch = 0 : i64, scratch_operands = 0 : i64, tpu.core_type = #tpu.core_type<tc>, window_params = [{transform_indices = @transform_0, window_bounds = array<i64: 1, 8, 32>}, {pipeline_mode = #tpu.pipeline_mode<synchronous>, transform_indices = @transform_1, window_bounds = array<i64: 1, 32>}, {pipeline_mode = #tpu.pipeline_mode<synchronous>, transform_indices = @transform_2, window_bounds = array<i64: 1, 32>}, {pipeline_mode = #tpu.pipeline_mode<synchronous>, transform_indices = @transform_3, window_bounds = array<i64: 32, 96>}, {pipeline_mode = #tpu.pipeline_mode<synchronous>, transform_indices = @transform_4, window_bounds = array<i64: 1, 96>}, {pipeline_mode = #tpu.pipeline_mode<synchronous>, transform_indices = @transform_5, window_bounds = array<i64: 32, 32>}, {pipeline_mode = #tpu.pipeline_mode<synchronous>, transform_indices = @transform_6, window_bounds = array<i64: 1, 32>}, {pipeline_mode = #tpu.pipeline_mode<synchronous>, transform_indices = @transform_7, window_bounds = array<i64: 1, 32>}, {pipeline_mode = #tpu.pipeline_mode<synchronous>, transform_indices = @transform_8, window_bounds = array<i64: 1, 32>}, {pipeline_mode = #tpu.pipeline_mode<synchronous>, transform_indices = @transform_9, window_bounds = array<i64: 32, 128>}, {pipeline_mode = #tpu.pipeline_mode<synchronous>, transform_indices = @transform_10, window_bounds = array<i64: 1, 128>}, {pipeline_mode = #tpu.pipeline_mode<synchronous>, transform_indices = @transform_11, window_bounds = array<i64: 128, 32>}, {pipeline_mode = #tpu.pipeline_mode<synchronous>, transform_indices = @transform_12, window_bounds = array<i64: 1, 32>}, {transform_indices = @transform_13, window_bounds = array<i64: 1, 8, 32>}]} {
    %c0 = arith.constant 0 : index
    %c0_0 = arith.constant 0 : index
    %c0_1 = arith.constant 0 : index
    %0 = vector.load %arg1[%c0, %c0_0, %c0_1] : memref<1x8x32xf32, #tpu.memory_space<vmem>>, vector<1x8x32xf32>
    %1 = vector.shape_cast %0 : vector<1x8x32xf32> to vector<8x32xf32>
    %c0_2 = arith.constant 0 : index
    %c0_3 = arith.constant 0 : index
    %2 = vector.load %arg2[%c0_2, %c0_3] : memref<1x32xf32, #tpu.memory_space<vmem>>, vector<1x32xf32>
    %c0_4 = arith.constant 0 : index
    %c0_5 = arith.constant 0 : index
    %3 = vector.load %arg3[%c0_4, %c0_5] : memref<1x32xf32, #tpu.memory_space<vmem>>, vector<1x32xf32>
    %cst = arith.constant dense<0.000000e+00> : vector<8xf32>
    %4 = vector.multi_reduction <add>, %1, %cst [1] : vector<8x32xf32> to vector<8xf32>
    %5 = vector.shape_cast %4 : vector<8xf32> to vector<8x1xf32>
    %cst_6 = arith.constant 3.200000e+01 : f32
    %6 = vector.broadcast %cst_6 : f32 to vector<8x1xf32>
    %7 = arith.divf %5, %6 : vector<8x1xf32>
    %8 = vector.broadcast %7 : vector<8x1xf32> to vector<8x32xf32>
    %9 = arith.subf %1, %8 : vector<8x32xf32>
    %10 = arith.mulf %9, %9 : vector<8x32xf32>
    %cst_7 = arith.constant dense<0.000000e+00> : vector<8xf32>
    %11 = vector.multi_reduction <add>, %10, %cst_7 [1] : vector<8x32xf32> to vector<8xf32>
    %12 = vector.shape_cast %11 : vector<8xf32> to vector<8x1xf32>
    %cst_8 = arith.constant 3.200000e+01 : f32
    %13 = vector.broadcast %cst_8 : f32 to vector<8x1xf32>
    %14 = arith.divf %12, %13 : vector<8x1xf32>
    %cst_9 = arith.constant 9.99999974E-6 : f32
    %15 = vector.broadcast %cst_9 : f32 to vector<8x1xf32>
    %16 = arith.addf %14, %15 : vector<8x1xf32>
    %17 = math.rsqrt %16 : vector<8x1xf32>
    %18 = vector.broadcast %17 : vector<8x1xf32> to vector<8x32xf32>
    %19 = arith.mulf %9, %18 : vector<8x32xf32>
    %20 = vector.broadcast %2 : vector<1x32xf32> to vector<8x32xf32>
    %21 = arith.mulf %19, %20 : vector<8x32xf32>
    %22 = vector.broadcast %3 : vector<1x32xf32> to vector<8x32xf32>
    %23 = arith.addf %21, %22 : vector<8x32xf32>
    %c0_10 = arith.constant 0 : index
    %c0_11 = arith.constant 0 : index
    %24 = vector.load %arg4[%c0_10, %c0_11] : memref<32x96xf32, #tpu.memory_space<vmem>>, vector<32x96xf32>
    %cst_12 = arith.constant dense<0.000000e+00> : vector<8x96xf32>
    %25 = tpu.matmul %23, %24, %cst_12 {dimension_numbers = #tpu.dot_dimension_numbers<[1], [0], [0], [1], [0, 0, 1, 1], [], []>} : vector<8x32xf32>, vector<32x96xf32>, vector<8x96xf32> -> vector<8x96xf32>
    %c0_13 = arith.constant 0 : index
    %c0_14 = arith.constant 0 : index
    %26 = vector.load %arg5[%c0_13, %c0_14] : memref<1x96xf32, #tpu.memory_space<vmem>>, vector<1x96xf32>
    %27 = vector.broadcast %26 : vector<1x96xf32> to vector<8x96xf32>
    %28 = arith.addf %25, %27 : vector<8x96xf32>
    %29 = vector.extract_strided_slice %28 {offsets = [0, 0], sizes = [8, 32], strides = [1, 1]} : vector<8x96xf32> to vector<8x32xf32>
    %cst_15 = arith.constant 0.176776692 : f32
    %30 = vector.broadcast %cst_15 : f32 to vector<8x32xf32>
    %31 = arith.mulf %29, %30 : vector<8x32xf32>
    %32 = vector.shape_cast %31 : vector<8x32xf32> to vector<1x8x1x32xf32>
    %33 = vector.extract_strided_slice %28 {offsets = [0, 32], sizes = [8, 32], strides = [1, 1]} : vector<8x96xf32> to vector<8x32xf32>
    %34 = vector.shape_cast %33 : vector<8x32xf32> to vector<1x8x1x32xf32>
    %35 = vector.extract_strided_slice %28 {offsets = [0, 64], sizes = [8, 32], strides = [1, 1]} : vector<8x96xf32> to vector<8x32xf32>
    %36 = vector.shape_cast %35 : vector<8x32xf32> to vector<1x8x1x32xf32>
    %37 = vector.shape_cast %32 : vector<1x8x1x32xf32> to vector<8x1x32xf32>
    %38 = vector.shape_cast %34 : vector<1x8x1x32xf32> to vector<8x1x32xf32>
    %39 = vector.shape_cast %36 : vector<1x8x1x32xf32> to vector<8x1x32xf32>
    "tpu.trace_start"() <{level = 10 : i32, message = "qhd,khd->hqk"}> : () -> ()
    %cst_16 = arith.constant dense<0.000000e+00> : vector<1x8x8xf32>
    %40 = tpu.matmul %37, %38, %cst_16 {dimension_numbers = #tpu.dot_dimension_numbers<[2], [2], [0], [0], [0, 1, 0, 0, 1, 0], [1], [1]>} : vector<8x1x32xf32>, vector<8x1x32xf32>, vector<1x8x8xf32> -> vector<1x8x8xf32>
    "tpu.trace_stop"() : () -> ()
    %cst_17 = arith.constant dense<0xFF800000> : vector<1x8xf32>
    %41 = vector.multi_reduction <maximumf>, %40, %cst_17 [2] : vector<1x8x8xf32> to vector<1x8xf32>
    %42 = vector.shape_cast %41 : vector<1x8xf32> to vector<1x8x1xf32>
    %43 = vector.broadcast %42 : vector<1x8x1xf32> to vector<1x8x8xf32>
    %44 = arith.subf %40, %43 : vector<1x8x8xf32>
    %45 = math.exp %44 : vector<1x8x8xf32>
    %cst_18 = arith.constant dense<0.000000e+00> : vector<1x8xf32>
    %46 = vector.multi_reduction <add>, %45, %cst_18 [2] : vector<1x8x8xf32> to vector<1x8xf32>
    %47 = vector.shape_cast %46 : vector<1x8xf32> to vector<1x8x1xf32>
    %48 = vector.broadcast %47 : vector<1x8x1xf32> to vector<1x8x8xf32>
    %49 = arith.divf %45, %48 : vector<1x8x8xf32>
    "tpu.trace_start"() <{level = 10 : i32, message = "hqk,khd->qhd"}> : () -> ()
    %cst_19 = arith.constant dense<0.000000e+00> : vector<1x32x8xf32>
    %50 = tpu.matmul %39, %49, %cst_19 {dimension_numbers = #tpu.dot_dimension_numbers<[0], [2], [2], [1], [0, 1, 0, 2, 1, 1], [1], [0]>} : vector<8x1x32xf32>, vector<1x8x8xf32>, vector<1x32x8xf32> -> vector<1x32x8xf32>
    %51 = tpu.transpose %50, [2, 0, 1] : vector<1x32x8xf32> -> vector<8x1x32xf32>
    "tpu.trace_stop"() : () -> ()
    %52 = vector.shape_cast %51 : vector<8x1x32xf32> to vector<8x32xf32>
    %c0_20 = arith.constant 0 : index
    %c0_21 = arith.constant 0 : index
    %53 = vector.load %arg6[%c0_20, %c0_21] : memref<32x32xf32, #tpu.memory_space<vmem>>, vector<32x32xf32>
    %cst_22 = arith.constant dense<0.000000e+00> : vector<8x32xf32>
    %54 = tpu.matmul %52, %53, %cst_22 {dimension_numbers = #tpu.dot_dimension_numbers<[1], [0], [0], [1], [0, 0, 1, 1], [], []>} : vector<8x32xf32>, vector<32x32xf32>, vector<8x32xf32> -> vector<8x32xf32>
    %c0_23 = arith.constant 0 : index
    %c0_24 = arith.constant 0 : index
    %55 = vector.load %arg7[%c0_23, %c0_24] : memref<1x32xf32, #tpu.memory_space<vmem>>, vector<1x32xf32>
    %56 = vector.broadcast %55 : vector<1x32xf32> to vector<8x32xf32>
    %57 = arith.addf %54, %56 : vector<8x32xf32>
    %58 = arith.addf %57, %1 : vector<8x32xf32>
    %c0_25 = arith.constant 0 : index
    %c0_26 = arith.constant 0 : index
    %59 = vector.load %arg8[%c0_25, %c0_26] : memref<1x32xf32, #tpu.memory_space<vmem>>, vector<1x32xf32>
    %c0_27 = arith.constant 0 : index
    %c0_28 = arith.constant 0 : index
    %60 = vector.load %arg9[%c0_27, %c0_28] : memref<1x32xf32, #tpu.memory_space<vmem>>, vector<1x32xf32>
    %cst_29 = arith.constant dense<0.000000e+00> : vector<8xf32>
    %61 = vector.multi_reduction <add>, %58, %cst_29 [1] : vector<8x32xf32> to vector<8xf32>
    %62 = vector.shape_cast %61 : vector<8xf32> to vector<8x1xf32>
    %cst_30 = arith.constant 3.200000e+01 : f32
    %63 = vector.broadcast %cst_30 : f32 to vector<8x1xf32>
    %64 = arith.divf %62, %63 : vector<8x1xf32>
    %65 = vector.broadcast %64 : vector<8x1xf32> to vector<8x32xf32>
    %66 = arith.subf %58, %65 : vector<8x32xf32>
    %67 = arith.mulf %66, %66 : vector<8x32xf32>
    %cst_31 = arith.constant dense<0.000000e+00> : vector<8xf32>
    %68 = vector.multi_reduction <add>, %67, %cst_31 [1] : vector<8x32xf32> to vector<8xf32>
    %69 = vector.shape_cast %68 : vector<8xf32> to vector<8x1xf32>
    %cst_32 = arith.constant 3.200000e+01 : f32
    %70 = vector.broadcast %cst_32 : f32 to vector<8x1xf32>
    %71 = arith.divf %69, %70 : vector<8x1xf32>
    %cst_33 = arith.constant 9.99999974E-6 : f32
    %72 = vector.broadcast %cst_33 : f32 to vector<8x1xf32>
    %73 = arith.addf %71, %72 : vector<8x1xf32>
    %74 = math.rsqrt %73 : vector<8x1xf32>
    %75 = vector.broadcast %74 : vector<8x1xf32> to vector<8x32xf32>
    %76 = arith.mulf %66, %75 : vector<8x32xf32>
    %77 = vector.broadcast %59 : vector<1x32xf32> to vector<8x32xf32>
    %78 = arith.mulf %76, %77 : vector<8x32xf32>
    %79 = vector.broadcast %60 : vector<1x32xf32> to vector<8x32xf32>
    %80 = arith.addf %78, %79 : vector<8x32xf32>
    %c0_34 = arith.constant 0 : index
    %c0_35 = arith.constant 0 : index
    %81 = vector.load %arg10[%c0_34, %c0_35] : memref<32x128xf32, #tpu.memory_space<vmem>>, vector<32x128xf32>
    %cst_36 = arith.constant dense<0.000000e+00> : vector<8x128xf32>
    %82 = tpu.matmul %80, %81, %cst_36 {dimension_numbers = #tpu.dot_dimension_numbers<[1], [0], [0], [1], [0, 0, 1, 1], [], []>} : vector<8x32xf32>, vector<32x128xf32>, vector<8x128xf32> -> vector<8x128xf32>
    %c0_37 = arith.constant 0 : index
    %c0_38 = arith.constant 0 : index
    %83 = vector.load %arg11[%c0_37, %c0_38] : memref<1x128xf32, #tpu.memory_space<vmem>>, vector<1x128xf32>
    %84 = vector.broadcast %83 : vector<1x128xf32> to vector<8x128xf32>
    %85 = arith.addf %82, %84 : vector<8x128xf32>
    %cst_39 = arith.constant 5.000000e-01 : f32
    %86 = vector.broadcast %cst_39 : f32 to vector<8x128xf32>
    %87 = arith.mulf %86, %85 : vector<8x128xf32>
    %cst_40 = arith.constant 0.707106769 : f32
    %88 = vector.broadcast %cst_40 : f32 to vector<8x128xf32>
    %89 = arith.mulf %85, %88 : vector<8x128xf32>
    %90 = math.erf %89 : vector<8x128xf32>
    %cst_41 = arith.constant 1.000000e+00 : f32
    %91 = vector.broadcast %cst_41 : f32 to vector<8x128xf32>
    %92 = arith.addf %91, %90 : vector<8x128xf32>
    %93 = arith.mulf %87, %92 : vector<8x128xf32>
    %c0_42 = arith.constant 0 : index
    %c0_43 = arith.constant 0 : index
    %94 = vector.load %arg12[%c0_42, %c0_43] : memref<128x32xf32, #tpu.memory_space<vmem>>, vector<128x32xf32>
    %cst_44 = arith.constant dense<0.000000e+00> : vector<8x32xf32>
    %95 = tpu.matmul %93, %94, %cst_44 {dimension_numbers = #tpu.dot_dimension_numbers<[1], [0], [0], [1], [0, 0, 1, 1], [], []>} : vector<8x128xf32>, vector<128x32xf32>, vector<8x32xf32> -> vector<8x32xf32>
    %c0_45 = arith.constant 0 : index
    %c0_46 = arith.constant 0 : index
    %96 = vector.load %arg13[%c0_45, %c0_46] : memref<1x32xf32, #tpu.memory_space<vmem>>, vector<1x32xf32>
    %97 = vector.broadcast %96 : vector<1x32xf32> to vector<8x32xf32>
    %98 = arith.addf %95, %97 : vector<8x32xf32>
    %99 = arith.addf %98, %58 : vector<8x32xf32>
    %100 = vector.shape_cast %99 : vector<8x32xf32> to vector<1x8x32xf32>
    %c0_47 = arith.constant 0 : index
    %c0_48 = arith.constant 0 : index
    %c0_49 = arith.constant 0 : index
    %101 = vector.load %arg14[%c0_47, %c0_48, %c0_49] : memref<1x8x32xf32, #tpu.memory_space<vmem>>, vector<1x8x32xf32>
    tpu.vector_store %arg14[%c0_47, %c0_48, %c0_49], %100 {strides = array<i32>} : memref<1x8x32xf32, #tpu.memory_space<vmem>>, vector<1x8x32xf32>,
    return
  }
  func.func @transform_0(%arg0: i32) -> (i32, i32, i32) {
    %c0_i32 = arith.constant 0 : i32
    %c0_i32_0 = arith.constant 0 : i32
    %c0_i32_1 = arith.constant 0 : i32
    return %arg0, %c0_i32, %c0_i32_0 : i32, i32, i32
  }
  func.func @transform_1(%arg0: i32) -> (i32, i32) {
    %c0_i32 = arith.constant 0 : i32
    %c0_i32_0 = arith.constant 0 : i32
    %c0_i32_1 = arith.constant 0 : i32
    return %c0_i32, %c0_i32_0 : i32, i32
  }
  func.func @transform_2(%arg0: i32) -> (i32, i32) {
    %c0_i32 = arith.constant 0 : i32
    %c0_i32_0 = arith.constant 0 : i32
    %c0_i32_1 = arith.constant 0 : i32
    return %c0_i32, %c0_i32_0 : i32, i32
  }
  func.func @transform_3(%arg0: i32) -> (i32, i32) {
    %c0_i32 = arith.constant 0 : i32
    %c0_i32_0 = arith.constant 0 : i32
    %c0_i32_1 = arith.constant 0 : i32
    return %c0_i32, %c0_i32_0 : i32, i32
  }
  func.func @transform_4(%arg0: i32) -> (i32, i32) {
    %c0_i32 = arith.constant 0 : i32
    %c0_i32_0 = arith.constant 0 : i32
    %c0_i32_1 = arith.constant 0 : i32
    return %c0_i32, %c0_i32_0 : i32, i32
  }
  func.func @transform_5(%arg0: i32) -> (i32, i32) {
    %c0_i32 = arith.constant 0 : i32
    %c0_i32_0 = arith.constant 0 : i32
    %c0_i32_1 = arith.constant 0 : i32
    return %c0_i32, %c0_i32_0 : i32, i32
  }
  func.func @transform_6(%arg0: i32) -> (i32, i32) {
    %c0_i32 = arith.constant 0 : i32
    %c0_i32_0 = arith.constant 0 : i32
    %c0_i32_1 = arith.constant 0 : i32
    return %c0_i32, %c0_i32_0 : i32, i32
  }
  func.func @transform_7(%arg0: i32) -> (i32, i32) {
    %c0_i32 = arith.constant 0 : i32
    %c0_i32_0 = arith.constant 0 : i32
    %c0_i32_1 = arith.constant 0 : i32
    return %c0_i32, %c0_i32_0 : i32, i32
  }
  func.func @transform_8(%arg0: i32) -> (i32, i32) {
    %c0_i32 = arith.constant 0 : i32
    %c0_i32_0 = arith.constant 0 : i32
    %c0_i32_1 = arith.constant 0 : i32
    return %c0_i32, %c0_i32_0 : i32, i32
  }
  func.func @transform_9(%arg0: i32) -> (i32, i32) {
    %c0_i32 = arith.constant 0 : i32
    %c0_i32_0 = arith.constant 0 : i32
    %c0_i32_1 = arith.constant 0 : i32
    return %c0_i32, %c0_i32_0 : i32, i32
  }
  func.func @transform_10(%arg0: i32) -> (i32, i32) {
    %c0_i32 = arith.constant 0 : i32
    %c0_i32_0 = arith.constant 0 : i32
    %c0_i32_1 = arith.constant 0 : i32
    return %c0_i32, %c0_i32_0 : i32, i32
  }
  func.func @transform_11(%arg0: i32) -> (i32, i32) {
    %c0_i32 = arith.constant 0 : i32
    %c0_i32_0 = arith.constant 0 : i32
    %c0_i32_1 = arith.constant 0 : i32
    return %c0_i32, %c0_i32_0 : i32, i32
  }
  func.func @transform_12(%arg0: i32) -> (i32, i32) {
    %c0_i32 = arith.constant 0 : i32
    %c0_i32_0 = arith.constant 0 : i32
    %c0_i32_1 = arith.constant 0 : i32
    return %c0_i32, %c0_i32_0 : i32, i32
  }
  func.func @transform_13(%arg0: i32) -> (i32, i32, i32) {
    %c0_i32 = arith.constant 0 : i32
    %c0_i32_0 = arith.constant 0 : i32
    %c0_i32_1 = arith.constant 0 : i32
    return %arg0, %c0_i32, %c0_i32_0 : i32, i32, i32
  }
}

</mosaic_0001>

<llo_original>
// kernel: tpu_custom_call.1
$region0: #{tpu_custom_call.1}
  #allocation0 [shape = 'u32[]', space=smem, size = 0x4, offset = 0x4, fixed_abs, tag = 'smem constant byte address 0x4 - core index']
  #allocation1 [shape = 'u32[144,128]{1,0:T(1,128)}', space=vmem, size = 0x12000, scoped, tag = 'internal scratch']
  %s0 = inlined_call_operand.vmem [shape: f32[2,8,32], index: 0, kind: input, shape index: {}]
  %s1 = inlined_call_operand.vmem [shape: f32[1,32], index: 1, kind: input, shape index: {}]
  %s2 = inlined_call_operand.vmem [shape: f32[1,32], index: 2, kind: input, shape index: {}]
  %s3 = inlined_call_operand.vmem [shape: f32[32,96], index: 3, kind: input, shape index: {}]
  %s4 = inlined_call_operand.vmem [shape: f32[1,96], index: 4, kind: input, shape index: {}]
  %s5 = inlined_call_operand.vmem [shape: f32[32,32], index: 5, kind: input, shape index: {}]
  %s6 = inlined_call_operand.vmem [shape: f32[1,32], index: 6, kind: input, shape index: {}]
  %s7 = inlined_call_operand.vmem [shape: f32[1,32], index: 7, kind: input, shape index: {}]
  %s8 = inlined_call_operand.vmem [shape: f32[1,32], index: 8, kind: input, shape index: {}]
  %s9 = inlined_call_operand.vmem [shape: f32[32,128], index: 9, kind: input, shape index: {}]
  %s10 = inlined_call_operand.vmem [shape: f32[1,128], index: 10, kind: input, shape index: {}]
  %s11 = inlined_call_operand.vmem [shape: f32[128,32], index: 11, kind: input, shape index: {}]
  %s12 = inlined_call_operand.vmem [shape: f32[1,32], index: 12, kind: input, shape index: {}]
  %s13 = inlined_call_operand.hbm [shape: f32[2,8,32], index: 13, kind: output, shape index: {}]
  %s14 = sld [smem:[#allocation0]]
  $region85: #{tpu_custom_call.1} parent=0
    _
  %s16 = ssub.s32 1, %s14
  %s17 = scalar_select 0, %s16, %s14
  $region1: #{tpu_custom_call.1} parent=0
    #allocation2 [shape = 'u8[8192]{0}', space=vmem, size = 0x2000, scoped, tag = 'output window, operand 0']
    #allocation3 [shape = 's32[2]{0}', space=sflag, size = 0x8, scoped, tag = 'scoped memory for tpu_custom_call.1']
    %18 = vsyncpa [#allocation3], 0
    %s19 = scalar_lea.sflag [#allocation3], 1
    %20 = vsyncpa %s19, 0
    loop: start=0, step=1, limit=4
    $region2: #{tpu_custom_call.1} parent=1 // loop_pre_header
      _
    $region3: #{tpu_custom_call.1} parent=1 // loop_header
      %s22 = sphi 0, %s26
      %p23 = scmp.ge.s32.totalorder %s22, 4
      %s32 = sphi 0, %s34
      %s35 = sphi 0, %s32
      %s36 = sphi 0, %s35
      %s52 = sphi 0, %s36
      %s56 = sphi 0, %s56
      %s58 = sphi 0, %s56
      %s59 = sphi 0, %s58
      %s73 = sphi 0, %s59
      %s77 = sphi 0, %s77
      %s79 = sphi 0, %s77
      %s80 = sphi 0, %s79
      %s94 = sphi 0, %s80
      %s98 = sphi 0, %s98
      %s100 = sphi 0, %s98
      %s101 = sphi 0, %s100
      %s115 = sphi 0, %s101
      %s119 = sphi 0, %s119
      %s121 = sphi 0, %s119
      %s122 = sphi 0, %s121
      %s136 = sphi 0, %s122
      %s140 = sphi 0, %s140
      %s142 = sphi 0, %s140
      %s143 = sphi 0, %s142
      %s157 = sphi 0, %s143
      %s161 = sphi 0, %s161
      %s163 = sphi 0, %s161
      %s164 = sphi 0, %s163
      %s178 = sphi 0, %s164
      %s182 = sphi 0, %s182
      %s184 = sphi 0, %s182
      %s185 = sphi 0, %s184
      %s199 = sphi 0, %s185
      %s203 = sphi 0, %s203
      %s205 = sphi 0, %s203
      %s206 = sphi 0, %s205
      %s220 = sphi 0, %s206
      %s224 = sphi 0, %s224
      %s226 = sphi 0, %s224
      %s227 = sphi 0, %s226
      %s241 = sphi 0, %s227
      %s245 = sphi 0, %s245
      %s247 = sphi 0, %s245
      %s248 = sphi 0, %s247
      %s262 = sphi 0, %s248
      %s266 = sphi 0, %s266
      %s268 = sphi 0, %s266
      %s269 = sphi 0, %s268
      %s283 = sphi 0, %s269
      %s287 = sphi 0, %s287
      %s289 = sphi 0, %s287
      %s290 = sphi 0, %s289
      %s304 = sphi 0, %s290
      %s310 = sphi 0, %s312
      %s313 = sphi 0, %s310
      %s314 = sphi 0, %s313
      %s330 = sphi 0, %s314
    $region4: #{tpu_custom_call.1} parent=1 // loop_header_branch
      %25 = sbr.rel (%p23) target = $region8
    $region5: #{tpu_custom_call.1} parent=1 // loop_body
      %s27 = ssub.s32 %s22, 1
      %s28 = ssub.s32 %s22, 2
      %s29 = sadd.s32 %s22, 1
      %s30 = ssub.s32 %s22, %s29
      %p31 = scmp.eq.s32.totalorder %s30, 0
      %s33 = sadd.s32 %s32, 1
      %s34 = scalar_select %p31, %s32, %s33
      %p37 = pneg %p31
      %p38 = scmp.eq.s32.totalorder %s22, 1
      %p39 = por %p37, %p38
      %p40 = scmp.ne.s32.totalorder %s32, %s35
      %p41 = scmp.eq.s32.totalorder %s22, 0
      %p42 = por %p40, %p41
      %p43 = scmp.ne.s32.totalorder %s32, %s35
      %p44 = scmp.eq.s32.totalorder %s27, 1
      %p45 = por %p43, %p44
      %p46 = scmp.ne.s32.totalorder %s35, %s36
      %p47 = scmp.eq.s32.totalorder %s27, 0
      %p48 = por %p46, %p47
      %p49 = scmp.ne.s32.totalorder %s35, %s36
      %p50 = scmp.eq.s32.totalorder %s28, 1
      %p51 = por %p49, %p50
      %p53 = scmp.ne.s32.totalorder %s36, %s52
      %p54 = scmp.eq.s32.totalorder %s28, 0
      %p55 = por %p53, %p54
      %s57 = sadd.s32 %s56, 1
      %p60 = scmp.eq.s32.totalorder %s22, 1
      %p61 = scmp.ne.s32.totalorder %s56, %s58
      %p62 = scmp.eq.s32.totalorder %s22, 0
      %p63 = por %p61, %p62
      %p64 = scmp.ne.s32.totalorder %s56, %s58
      %p65 = scmp.eq.s32.totalorder %s27, 1
      %p66 = por %p64, %p65
      %p67 = scmp.ne.s32.totalorder %s58, %s59
      %p68 = scmp.eq.s32.totalorder %s27, 0
      %p69 = por %p67, %p68
      %p70 = scmp.ne.s32.totalorder %s58, %s59
      %p71 = scmp.eq.s32.totalorder %s28, 1
      %p72 = por %p70, %p71
      %p74 = scmp.ne.s32.totalorder %s59, %s73
      %p75 = scmp.eq.s32.totalorder %s28, 0
      %p76 = por %p74, %p75
      %s78 = sadd.s32 %s77, 1
      %p81 = scmp.eq.s32.totalorder %s22, 1
      %p82 = scmp.ne.s32.totalorder %s77, %s79
      %p83 = scmp.eq.s32.totalorder %s22, 0
      %p84 = por %p82, %p83
      %p85 = scmp.ne.s32.totalorder %s77, %s79
      %p86 = scmp.eq.s32.totalorder %s27, 1
      %p87 = por %p85, %p86
      %p88 = scmp.ne.s32.totalorder %s79, %s80
      %p89 = scmp.eq.s32.totalorder %s27, 0
      %p90 = por %p88, %p89
      %p91 = scmp.ne.s32.totalorder %s79, %s80
      %p92 = scmp.eq.s32.totalorder %s28, 1
      %p93 = por %p91, %p92
      %p95 = scmp.ne.s32.totalorder %s80, %s94
      %p96 = scmp.eq.s32.totalorder %s28, 0
      %p97 = por %p95, %p96
      %s99 = sadd.s32 %s98, 1
      %p102 = scmp.eq.s32.totalorder %s22, 1
      %p103 = scmp.ne.s32.totalorder %s98, %s100
      %p104 = scmp.eq.s32.totalorder %s22, 0
      %p105 = por %p103, %p104
      %p106 = scmp.ne.s32.totalorder %s98, %s100
      %p107 = scmp.eq.s32.totalorder %s27, 1
      %p108 = por %p106, %p107
      %p109 = scmp.ne.s32.totalorder %s100, %s101
      %p110 = scmp.eq.s32.totalorder %s27, 0
      %p111 = por %p109, %p110
      %p112 = scmp.ne.s32.totalorder %s100, %s101
      %p113 = scmp.eq.s32.totalorder %s28, 1
      %p114 = por %p112, %p113
      %p116 = scmp.ne.s32.totalorder %s101, %s115
      %p117 = scmp.eq.s32.totalorder %s28, 0
      %p118 = por %p116, %p117
      %s120 = sadd.s32 %s119, 1
      %p123 = scmp.eq.s32.totalorder %s22, 1
      %p124 = scmp.ne.s32.totalorder %s119, %s121
      %p125 = scmp.eq.s32.totalorder %s22, 0
      %p126 = por %p124, %p125
      %p127 = scmp.ne.s32.totalorder %s119, %s121
      %p128 = scmp.eq.s32.totalorder %s27, 1
      %p129 = por %p127, %p128
      %p130 = scmp.ne.s32.totalorder %s121, %s122
      %p131 = scmp.eq.s32.totalorder %s27, 0
      %p132 = por %p130, %p131
      %p133 = scmp.ne.s32.totalorder %s121, %s122
      %p134 = scmp.eq.s32.totalorder %s28, 1
      %p135 = por %p133, %p134
      %p137 = scmp.ne.s32.totalorder %s122, %s136
      %p138 = scmp.eq.s32.totalorder %s28, 0
      %p139 = por %p137, %p138
      %s141 = sadd.s32 %s140, 1
      %p144 = scmp.eq.s32.totalorder %s22, 1
      %p145 = scmp.ne.s32.totalorder %s140, %s142
      %p146 = scmp.eq.s32.totalorder %s22, 0
      %p147 = por %p145, %p146
      %p148 = scmp.ne.s32.totalorder %s140, %s142
      %p149 = scmp.eq.s32.totalorder %s27, 1
      %p150 = por %p148, %p149
      %p151 = scmp.ne.s32.totalorder %s142, %s143
      %p152 = scmp.eq.s32.totalorder %s27, 0
      %p153 = por %p151, %p152
      %p154 = scmp.ne.s32.totalorder %s142, %s143
      %p155 = scmp.eq.s32.totalorder %s28, 1
      %p156 = por %p154, %p155
      %p158 = scmp.ne.s32.totalorder %s143, %s157
      %p159 = scmp.eq.s32.totalorder %s28, 0
      %p160 = por %p158, %p159
      %s162 = sadd.s32 %s161, 1
      %p165 = scmp.eq.s32.totalorder %s22, 1
      %p166 = scmp.ne.s32.totalorder %s161, %s163
      %p167 = scmp.eq.s32.totalorder %s22, 0
      %p168 = por %p166, %p167
      %p169 = scmp.ne.s32.totalorder %s161, %s163
      %p170 = scmp.eq.s32.totalorder %s27, 1
      %p171 = por %p169, %p170
      %p172 = scmp.ne.s32.totalorder %s163, %s164
      %p173 = scmp.eq.s32.totalorder %s27, 0
      %p174 = por %p172, %p173
      %p175 = scmp.ne.s32.totalorder %s163, %s164
      %p176 = scmp.eq.s32.totalorder %s28, 1
      %p177 = por %p175, %p176
      %p179 = scmp.ne.s32.totalorder %s164, %s178
      %p180 = scmp.eq.s32.totalorder %s28, 0
      %p181 = por %p179, %p180
      %s183 = sadd.s32 %s182, 1
      %p186 = scmp.eq.s32.totalorder %s22, 1
      %p187 = scmp.ne.s32.totalorder %s182, %s184
      %p188 = scmp.eq.s32.totalorder %s22, 0
      %p189 = por %p187, %p188
      %p190 = scmp.ne.s32.totalorder %s182, %s184
      %p191 = scmp.eq.s32.totalorder %s27, 1
      %p192 = por %p190, %p191
      %p193 = scmp.ne.s32.totalorder %s184, %s185
      %p194 = scmp.eq.s32.totalorder %s27, 0
      %p195 = por %p193, %p194
      %p196 = scmp.ne.s32.totalorder %s184, %s185
      %p197 = scmp.eq.s32.totalorder %s28, 1
      %p198 = por %p196, %p197
      %p200 = scmp.ne.s32.totalorder %s185, %s199
      %p201 = scmp.eq.s32.totalorder %s28, 0
      %p202 = por %p200, %p201
      %s204 = sadd.s32 %s203, 1
      %p207 = scmp.eq.s32.totalorder %s22, 1
      %p208 = scmp.ne.s32.totalorder %s203, %s205
      %p209 = scmp.eq.s32.totalorder %s22, 0
      %p210 = por %p208, %p209
      %p211 = scmp.ne.s32.totalorder %s203, %s205
      %p212 = scmp.eq.s32.totalorder %s27, 1
      %p213 = por %p211, %p212
      %p214 = scmp.ne.s32.totalorder %s205, %s206
      %p215 = scmp.eq.s32.totalorder %s27, 0
      %p216 = por %p214, %p215
      %p217 = scmp.ne.s32.totalorder %s205, %s206
      %p218 = scmp.eq.s32.totalorder %s28, 1
      %p219 = por %p217, %p218
      %p221 = scmp.ne.s32.totalorder %s206, %s220
      %p222 = scmp.eq.s32.totalorder %s28, 0
      %p223 = por %p221, %p222
      %s225 = sadd.s32 %s224, 1
      %p228 = scmp.eq.s32.totalorder %s22, 1
      %p229 = scmp.ne.s32.totalorder %s224, %s226
      %p230 = scmp.eq.s32.totalorder %s22, 0
      %p231 = por %p229, %p230
      %p232 = scmp.ne.s32.totalorder %s224, %s226
      %p233 = scmp.eq.s32.totalorder %s27, 1
      %p234 = por %p232, %p233
      %p235 = scmp.ne.s32.totalorder %s226, %s227
      %p236 = scmp.eq.s32.totalorder %s27, 0
      %p237 = por %p235, %p236
      %p238 = scmp.ne.s32.totalorder %s226, %s227
      %p239 = scmp.eq.s32.totalorder %s28, 1
      %p240 = por %p238, %p239
      %p242 = scmp.ne.s32.totalorder %s227, %s241
      %p243 = scmp.eq.s32.totalorder %s28, 0
      %p244 = por %p242, %p243
      %s246 = sadd.s32 %s245, 1
      %p249 = scmp.eq.s32.totalorder %s22, 1
      %p250 = scmp.ne.s32.totalorder %s245, %s247
      %p251 = scmp.eq.s32.totalorder %s22, 0
      %p252 = por %p250, %p251
      %p253 = scmp.ne.s32.totalorder %s245, %s247
      %p254 = scmp.eq.s32.totalorder %s27, 1
      %p255 = por %p253, %p254
      %p256 = scmp.ne.s32.totalorder %s247, %s248
      %p257 = scmp.eq.s32.totalorder %s27, 0
      %p258 = por %p256, %p257
      %p259 = scmp.ne.s32.totalorder %s247, %s248
      %p260 = scmp.eq.s32.totalorder %s28, 1
      %p261 = por %p259, %p260
      %p263 = scmp.ne.s32.totalorder %s248, %s262
      %p264 = scmp.eq.s32.totalorder %s28, 0
      %p265 = por %p263, %p264
      %s267 = sadd.s32 %s266, 1
      %p270 = scmp.eq.s32.totalorder %s22, 1
      %p271 = scmp.ne.s32.totalorder %s266, %s268
      %p272 = scmp.eq.s32.totalorder %s22, 0
      %p273 = por %p271, %p272
      %p274 = scmp.ne.s32.totalorder %s266, %s268
      %p275 = scmp.eq.s32.totalorder %s27, 1
      %p276 = por %p274, %p275
      %p277 = scmp.ne.s32.totalorder %s268, %s269
      %p278 = scmp.eq.s32.totalorder %s27, 0
      %p279 = por %p277, %p278
      %p280 = scmp.ne.s32.totalorder %s268, %s269
      %p281 = scmp.eq.s32.totalorder %s28, 1
      %p282 = por %p280, %p281
      %p284 = scmp.ne.s32.totalorder %s269, %s283
      %p285 = scmp.eq.s32.totalorder %s28, 0
      %p286 = por %p284, %p285
      %s288 = sadd.s32 %s287, 1
      %p291 = scmp.eq.s32.totalorder %s22, 1
      %p292 = scmp.ne.s32.totalorder %s287, %s289
      %p293 = scmp.eq.s32.totalorder %s22, 0
      %p294 = por %p292, %p293
      %p295 = scmp.ne.s32.totalorder %s287, %s289
      %p296 = scmp.eq.s32.totalorder %s27, 1
      %p297 = por %p295, %p296
      %p298 = scmp.ne.s32.totalorder %s289, %s290
      %p299 = scmp.eq.s32.totalorder %s27, 0
      %p300 = por %p298, %p299
      %p301 = scmp.ne.s32.totalorder %s289, %s290
      %p302 = scmp.eq.s32.totalorder %s28, 1
      %p303 = por %p301, %p302
      %p305 = scmp.ne.s32.totalorder %s290, %s304
      %p306 = scmp.eq.s32.totalorder %s28, 0
      %p307 = por %p305, %p306
      %s308 = ssub.s32 %s22, %s29
      %p309 = scmp.eq.s32.totalorder %s308, 0
      %s311 = sadd.s32 %s310, 1
      %s312 = scalar_select %p309, %s310, %s311
      %p315 = pneg %p309
      %p316 = scmp.eq.s32.totalorder %s22, 1
      %p317 = por %p315, %p316
      %p318 = scmp.ne.s32.totalorder %s310, %s313
      %p319 = scmp.eq.s32.totalorder %s22, 0
      %p320 = por %p318, %p319
      %p321 = scmp.ne.s32.totalorder %s310, %s313
      %p322 = scmp.eq.s32.totalorder %s27, 1
      %p323 = por %p321, %p322
      %p324 = scmp.ne.s32.totalorder %s313, %s314
      %p325 = scmp.eq.s32.totalorder %s27, 0
      %p326 = por %p324, %p325
      %p327 = scmp.ne.s32.totalorder %s313, %s314
      %p328 = scmp.eq.s32.totalorder %s28, 1
      %p329 = por %p327, %p328
      %p331 = scmp.ne.s32.totalorder %s314, %s330
      %p332 = scmp.eq.s32.totalorder %s28, 0
      %p333 = por %p331, %p332
      %p334 = scmp.le.s32.totalorder 1, %s22
      %p335 = scmp.lt.s32.totalorder %s22, 3
      %p336 = pnand %p334, %p335
      %p337 = pneg %p336
      // Predicated region
      $region9: #{tpu_custom_call.1} parent=5 // pred_check
        _
      $region10: #{tpu_custom_call.1} parent=5 // pred_check_branch
        %339 = sbr.rel (%p336) target = $region12
      $region11: #{tpu_custom_call.1} parent=5 // pred_region
        %s340 = ssub.s32 %s22, 1
        // Predicated region
        $region13: #{tpu_custom_call.1} parent=11 // pred_check
          %p341 = pneg %p69
        $region14: #{tpu_custom_call.1} parent=11 // pred_check_branch
          %343 = sbr.rel (%p341) target = $region16
        $region15: #{tpu_custom_call.1} parent=11 // pred_region
          _
        $region16: #{tpu_custom_call.1} parent=11 // pred_fallthru
          _
        // Predicated region
        $region17: #{tpu_custom_call.1} parent=11 // pred_check
          %p344 = pneg %p90
        $region18: #{tpu_custom_call.1} parent=11 // pred_check_branch
          %346 = sbr.rel (%p344) target = $region20
        $region19: #{tpu_custom_call.1} parent=11 // pred_region
          _
        $region20: #{tpu_custom_call.1} parent=11 // pred_fallthru
          _
        // Predicated region
        $region21: #{tpu_custom_call.1} parent=11 // pred_check
          %p347 = pneg %p111
        $region22: #{tpu_custom_call.1} parent=11 // pred_check_branch
          %349 = sbr.rel (%p347) target = $region24
        $region23: #{tpu_custom_call.1} parent=11 // pred_region
          _
        $region24: #{tpu_custom_call.1} parent=11 // pred_fallthru
          _
        // Predicated region
        $region25: #{tpu_custom_call.1} parent=11 // pred_check
          %p350 = pneg %p132
        $region26: #{tpu_custom_call.1} parent=11 // pred_check_branch
          %352 = sbr.rel (%p350) target = $region28
        $region27: #{tpu_custom_call.1} parent=11 // pred_region
          _
        $region28: #{tpu_custom_call.1} parent=11 // pred_fallthru
          _
        // Predicated region
        $region29: #{tpu_custom_call.1} parent=11 // pred_check
          %p353 = pneg %p153
        $region30: #{tpu_custom_call.1} parent=11 // pred_check_branch
          %355 = sbr.rel (%p353) target = $region32
        $region31: #{tpu_custom_call.1} parent=11 // pred_region
          _
        $region32: #{tpu_custom_call.1} parent=11 // pred_fallthru
          _
        // Predicated region
        $region33: #{tpu_custom_call.1} parent=11 // pred_check
          %p356 = pneg %p174
        $region34: #{tpu_custom_call.1} parent=11 // pred_check_branch
          %358 = sbr.rel (%p356) target = $region36
        $region35: #{tpu_custom_call.1} parent=11 // pred_region
          _
        $region36: #{tpu_custom_call.1} parent=11 // pred_fallthru
          _
        // Predicated region
        $region37: #{tpu_custom_call.1} parent=11 // pred_check
          %p359 = pneg %p195
        $region38: #{tpu_custom_call.1} parent=11 // pred_check_branch
          %361 = sbr.rel (%p359) target = $region40
        $region39: #{tpu_custom_call.1} parent=11 // pred_region
          _
        $region40: #{tpu_custom_call.1} parent=11 // pred_fallthru
          _
        // Predicated region
        $region41: #{tpu_custom_call.1} parent=11 // pred_check
          %p362 = pneg %p216
        $region42: #{tpu_custom_call.1} parent=11 // pred_check_branch
          %364 = sbr.rel (%p362) target = $region44
        $region43: #{tpu_custom_call.1} parent=11 // pred_region
          _
        $region44: #{tpu_custom_call.1} parent=11 // pred_fallthru
          _
        // Predicated region
        $region45: #{tpu_custom_call.1} parent=11 // pred_check
          %p365 = pneg %p237
        $region46: #{tpu_custom_call.1} parent=11 // pred_check_branch
          %367 = sbr.rel (%p365) target = $region48
        $region47: #{tpu_custom_call.1} parent=11 // pred_region
          _
        $region48: #{tpu_custom_call.1} parent=11 // pred_fallthru
          _
        // Predicated region
        $region49: #{tpu_custom_call.1} parent=11 // pred_check
          %p368 = pneg %p258
        $region50: #{tpu_custom_call.1} parent=11 // pred_check_branch
          %370 = sbr.rel (%p368) target = $region52
        $region51: #{tpu_custom_call.1} parent=11 // pred_region
          _
        $region52: #{tpu_custom_call.1} parent=11 // pred_fallthru
          _
        // Predicated region
        $region53: #{tpu_custom_call.1} parent=11 // pred_check
          %p371 = pneg %p279
        $region54: #{tpu_custom_call.1} parent=11 // pred_check_branch
          %373 = sbr.rel (%p371) target = $region56
        $region55: #{tpu_custom_call.1} parent=11 // pred_region
          _
        $region56: #{tpu_custom_call.1} parent=11 // pred_fallthru
          _
        // Predicated region
        $region57: #{tpu_custom_call.1} parent=11 // pred_check
          %p374 = pneg %p300
        $region58: #{tpu_custom_call.1} parent=11 // pred_check_branch
          %376 = sbr.rel (%p374) target = $region60
        $region59: #{tpu_custom_call.1} parent=11 // pred_region
          _
        $region60: #{tpu_custom_call.1} parent=11 // pred_fallthru
          _
      $region12: #{tpu_custom_call.1} parent=5 // pred_fallthru
        _
      %p377 = scmp.lt.s32.totalorder %s22, 2
      // Predicated region
      $region61: #{tpu_custom_call.1} parent=5 // pred_check
        %p378 = pneg %p377
      $region62: #{tpu_custom_call.1} parent=5 // pred_check_branch
        %380 = sbr.rel (%p378) target = $region64
      $region63: #{tpu_custom_call.1} parent=5 // pred_region
        // Predicated region
        $region65: #{tpu_custom_call.1} parent=63 // pred_check
          %p381 = pneg %p42
        $region66: #{tpu_custom_call.1} parent=63 // pred_check_branch
          %383 = sbr.rel (%p381) target = $region68
        $region67: #{tpu_custom_call.1} parent=63 // pred_region
          %p384 = scmp.lt.s32.totalorder %s22, 1
          %s385 = scalar_select %p384, %s22, 1
          %s386 = smul.addr %s385, 8
          %s387 = scalar_lea.vmem %s0, %s386
        $region68: #{tpu_custom_call.1} parent=63 // pred_fallthru
          _
      $region64: #{tpu_custom_call.1} parent=5 // pred_fallthru
        _
      %p388 = scmp.le.s32.totalorder 1, %s22
      %p389 = scmp.lt.s32.totalorder %s22, 3
      %p390 = pnand %p388, %p389
      %p391 = pneg %p390
      // Predicated region
      $region69: #{tpu_custom_call.1} parent=5 // pred_check
        _
      $region70: #{tpu_custom_call.1} parent=5 // pred_check_branch
        %393 = sbr.rel (%p390) target = $region72
      $region71: #{tpu_custom_call.1} parent=5 // pred_region
        %s394 = ssub.s32 %s22, 1
        %p395 = scmp.lt.s32.totalorder %s27, 1
        %s396 = scalar_select %p395, %s27, 1
        %s397 = smul.addr %s396, 8
        %s398 = scalar_lea.vmem %s0, %s397
        %p399 = pneg %p48
        %p400 = pneg %p45
        %p401 = pneg %p69
        %p402 = pneg %p66
        %p403 = pneg %p90
        %p404 = pneg %p87
        %p405 = pneg %p111
        %p406 = pneg %p108
        %p407 = pneg %p132
        %p408 = pneg %p129
        %p409 = pneg %p153
        %p410 = pneg %p150
        %p411 = pneg %p174
        %p412 = pneg %p171
        %p413 = pneg %p195
        %p414 = pneg %p192
        %p415 = pneg %p216
        %p416 = pneg %p213
        %p417 = pneg %p237
        %p418 = pneg %p234
        %p419 = pneg %p258
        %p420 = pneg %p255
        %p421 = pneg %p279
        %p422 = pneg %p276
        %p423 = pneg %p300
        %p424 = pneg %p297
        %p425 = pneg %p326
        %p426 = pneg %p323
        %s427 = sand.u32 %s313, 1
        %s428 = scalar_lea.sflag [#allocation3], %s427
        %s429 = sand.u32 %s313, 1
        %s430 = smul.addr %s429, 8
        %s431 = scalar_lea.vmem [#allocation2], %s430
        %p432 = scmp.lt.s32.totalorder %s27, 1
        %s433 = scalar_select %p432, %s27, 1
        %s434 = smul.addr %s433, 8
        %s435 = scalar_lea.vmem %s0, %s434
        %v436 = vld [vmem:[%s435] sm:$0xff]
        %v437 = vld [vmem:[%s1] sm:$0x1]
        %v438 = vld [vmem:[%s2] sm:$0x1]
        %vm439 = vcmask 261120
        %v440 = vsel %vm439, %v436, 0.0
        %441 = vadd.xlane.f32.xlu0 %v440
        %v442 = vpop.xlane.xlu0 %441
        %v443 = vrcp.pop 32.0
        %v444 = vmul.f32 %v442, %v443
        %v445 = vsub.f32 %v436, %v444
        %v446 = vmul.f32 %v445, %v445
        %v447 = vsel %vm439, %v446, 0.0
        %448 = vadd.xlane.f32.xlu0 %v447
        %v449 = vpop.xlane.xlu0 %448
        %v450 = vmul.f32 %v449, %v443
        %v451 = vadd.f32 %v450, 1e-05
        %v452 = vrsqrt.pop %v451
        %v453 = vmul.f32 %v445, %v452
        %v455 = vlaneseq
        %v456 = vshrl.u32 %v455, 7
        %v457 = vsub.s32 0, %v456
        %v458 = vrot.slane %v437, %v457
        %v460 = vmul.f32 %v453, %v458
        %v462 = vlaneseq
        %v463 = vshrl.u32 %v462, 7
        %v464 = vsub.s32 0, %v463
        %v465 = vrot.slane %v438, %v464
        %v467 = vadd.f32 %v460, %v465
        %v468 = vld [vmem:[%s3] sm:$0xff]
        %v469 = vld [vmem:[%s3 + $0x8] sm:$0xff]
        %v470 = vld [vmem:[%s3 + $0x10] sm:$0xff]
        %v471 = vld [vmem:[%s3 + $0x18] sm:$0xff]
        %v472 = vld [vmem:[%s4] sm:$0x1]
        %v474 = vlaneseq
        %v475 = vshrl.u32 %v474, 7
        %v476 = vsub.s32 0, %v475
        %v477 = vrot.slane %v472, %v476
        %v480 = vsel %vm439, %v467, 0
        %482 = vmatprep.subr.mxu0 0.0
        %483 = vmatpush1.msra.mxu0 %v468
        %484 = vmatprep.subr.mxu0 0.0
        %485 = vmatpush1.msra.mxu0 %v469
        %486 = vmatprep.subr.mxu0 0.0
        %487 = vmatpush1.msra.mxu0 %v470
        %488 = vmatprep.subr.mxu0 0.0
        %489 = vmatpush1.msra.mxu0 %v471
        %490 = vmatprep.subr.mxu0 0.0
        %491 = vmatpush1.msra.mxu0 0.0
        %492 = vmatprep.subr.mxu0 0.0
        %493 = vmatpush1.msra.mxu0 0.0
        %494 = vmatprep.subr.mxu0 0.0
        %495 = vmatpush1.msra.mxu0 0.0
        %496 = vmatprep.subr.mxu0 0.0
        %497 = vmatpush1.msra.mxu0 0.0
        %498 = vmatprep.subr.mxu0 0.0
        %499 = vmatpush1.msra.mxu0 0.0
        %500 = vmatprep.subr.mxu0 0.0
        %501 = vmatpush1.msra.mxu0 0.0
        %502 = vmatprep.subr.mxu0 0.0
        %503 = vmatpush1.msra.mxu0 0.0
        %504 = vmatprep.subr.mxu0 0.0
        %505 = vmatpush1.msra.mxu0 0.0
        %506 = vmatprep.subr.mxu0 0.0
        %507 = vmatpush1.msra.mxu0 0.0
        %508 = vmatprep.subr.mxu0 0.0
        %509 = vmatpush1.msra.mxu0 0.0
        %510 = vmatprep.subr.mxu0 0.0
        %511 = vmatpush1.msra.mxu0 0.0
        %512 = vmatprep.subr.mxu0 0.0
        %513 = vmatpush1.msra.mxu0 0.0
        %514 = vmatprep.subr.mxu0 0.0
        %515 = vmatpush1.msra.mxu0 0.0
        %516 = vmatprep.subr.mxu0 0.0
        %517 = vmatpush1.msra.mxu0 0.0
        %518 = vmatprep.subr.mxu0 0.0
        %519 = vmatpush1.msra.mxu0 0.0
        %520 = vmatprep.subr.mxu0 0.0
        %521 = vmatpush1.msra.mxu0 0.0
        %522 = vmatprep.subr.mxu0 0.0
        %523 = vmatpush1.msra.mxu0 0.0
        %524 = vmatprep.subr.mxu0 0.0
        %525 = vmatpush1.msra.mxu0 0.0
        %526 = vmatprep.subr.mxu0 0.0
        %527 = vmatpush1.msra.mxu0 0.0
        %528 = vmatprep.subr.mxu0 0.0
        %529 = vmatpush1.msra.mxu0 0.0
        %530 = vmatprep.subr.mxu0 0.0
        %531 = vmatpush1.msra.mxu0 0.0
        %532 = vmatprep.subr.mxu0 0.0
        %533 = vmatpush1.msra.mxu0 0.0
        %534 = vmatprep.subr.mxu0 0.0
        %535 = vmatpush1.msra.mxu0 0.0
        %536 = vmatprep.subr.mxu0 0.0
        %537 = vmatpush1.msra.mxu0 0.0
        %538 = vmatprep.subr.mxu0 0.0
        %539 = vmatpush1.msra.mxu0 0.0
        %540 = vmatprep.subr.mxu0 0.0
        %541 = vmatpush1.msra.mxu0 0.0
        %542 = vmatprep.subr.mxu0 0.0
        %543 = vmatpush1.msra.mxu0 0.0
        %544 = vmatprep.subr.mxu0 0.0
        %545 = vmatpush1.msra.mxu0 0.0
        %546 = vmatprep.mubr.f32.mxu0 0.0
        %547 = vmatmul.mubr.f32.gmra.mrb[0].mxu0 %v480
        %v548 = vpop.f32.mrb[0].mxu0
        %v549 = vadd.f32 %v477, %v548
        %v550 = vpop.f32.mrb[0].mxu0
        %551 = vdwg.mxu0
        %v552 = vmul.f32 %v549, 0.17677669
        %v554 = vcombine.high %v552, %v552
        %v556 = vunpack.c.l.s4 1966171168
        %v557 = vunpack.c.0.s8 %v556
        %v558 = vlaneseq
        %v559 = vshrl.u32 %v558, 7
        %v560 = vsub.s32 %v557, %v559
        %v561 = vrot.slane %v552, %v560
        %v563 = vunpack.c.l.s4 1966171168
        %v564 = vunpack.c.0.s8 %v563
        %v565 = vlaneseq
        %v566 = vshrl.u32 %v565, 7
        %v567 = vsub.s32 %v564, %v566
        %v568 = vrot.slane %v554, %v567
        %v569 = vcombine.high %v561, %v561
        %v570 = vcombine.high %v568, %v568
        %v572 = vunpack.c.l.s4 1966171168
        %v573 = vunpack.c.0.s8 %v572
        %v574 = vlaneseq
        %v575 = vshrl.u32 %v574, 7
        %v576 = vsub.s32 %v573, %v575
        %v577 = vrot.slane %v561, %v576
        %v579 = vunpack.c.l.s4 1966171168
        %v580 = vunpack.c.0.s8 %v579
        %v581 = vlaneseq
        %v582 = vshrl.u32 %v581, 7
        %v583 = vsub.s32 %v580, %v582
        %v584 = vrot.slane %v568, %v583
        %v586 = vunpack.c.l.s4 1966171168
        %v587 = vunpack.c.0.s8 %v586
        %v588 = vlaneseq
        %v589 = vshrl.u32 %v588, 7
        %v590 = vsub.s32 %v587, %v589
        %v591 = vrot.slane %v569, %v590
        %v593 = vunpack.c.l.s4 1966171168
        %v594 = vunpack.c.0.s8 %v593
        %v595 = vlaneseq
        %v596 = vshrl.u32 %v595, 7
        %v597 = vsub.s32 %v594, %v596
        %v598 = vrot.slane %v570, %v597
        %v599 = vcombine.high %v577, %v577
        %v600 = vcombine.high %v584, %v584
        %v601 = vcombine.high %v591, %v591
        %v602 = vcombine.high %v598, %v598
        %v604 = vcombine.high %v549, %v549
        %v606 = vunpack.c.l.s4 1966171168
        %v607 = vunpack.c.0.s8 %v606
        %v608 = vlaneseq
        %v609 = vshrl.u32 %v608, 7
        %v610 = vsub.s32 %v607, %v609
        %v611 = vrot.slane %v549, %v610
        %v613 = vunpack.c.l.s4 1966171168
        %v614 = vunpack.c.0.s8 %v613
        %v615 = vlaneseq
        %v616 = vshrl.u32 %v615, 7
        %v617 = vsub.s32 %v614, %v616
        %v618 = vrot.slane %v604, %v617
        %v619 = vcombine.high %v611, %v611
        %v620 = vcombine.high %v618, %v618
        %v622 = vunpack.c.l.s4 1966171168
        %v623 = vunpack.c.0.s8 %v622
        %v624 = vlaneseq
        %v625 = vshrl.u32 %v624, 7
        %v626 = vsub.s32 %v623, %v625
        %v627 = vrot.slane %v611, %v626
        %v629 = vunpack.c.l.s4 1966171168
        %v630 = vunpack.c.0.s8 %v629
        %v631 = vlaneseq
        %v632 = vshrl.u32 %v631, 7
        %v633 = vsub.s32 %v630, %v632
        %v634 = vrot.slane %v618, %v633
        %v636 = vunpack.c.l.s4 1966171168
        %v637 = vunpack.c.0.s8 %v636
        %v638 = vlaneseq
        %v639 = vshrl.u32 %v638, 7
        %v640 = vsub.s32 %v637, %v639
        %v641 = vrot.slane %v619, %v640
        %v643 = vunpack.c.l.s4 1966171168
        %v644 = vunpack.c.0.s8 %v643
        %v645 = vlaneseq
        %v646 = vshrl.u32 %v645, 7
        %v647 = vsub.s32 %v644, %v646
        %v648 = vrot.slane %v620, %v647
        %v649 = vcombine.high %v627, %v627
        %v650 = vcombine.high %v634, %v634
        %v651 = vcombine.high %v641, %v641
        %v652 = vcombine.high %v648, %v648
        %v653 = vlaneseq
        %v654 = vshrl.u32 %v653, 7
        %v655 = vsub.s32 0, %v654
        %v656 = vrot.slane %v627, %v655
        %v657 = vlaneseq
        %v658 = vshrl.u32 %v657, 7
        %v659 = vsub.s32 0, %v658
        %v660 = vrot.slane %v641, %v659
        %v661 = vlaneseq
        %v662 = vshrl.u32 %v661, 7
        %v663 = vsub.s32 0, %v662
        %v664 = vrot.slane %v649, %v663
        %v665 = vlaneseq
        %v666 = vshrl.u32 %v665, 7
        %v667 = vsub.s32 0, %v666
        %v668 = vrot.slane %v651, %v667
        %v669 = vlaneseq
        %v670 = vshrl.u32 %v669, 7
        %v671 = vsub.s32 0, %v670
        %v672 = vrot.slane %v634, %v671
        %v673 = vlaneseq
        %v674 = vshrl.u32 %v673, 7
        %v675 = vsub.s32 0, %v674
        %v676 = vrot.slane %v648, %v675
        %v677 = vlaneseq
        %v678 = vshrl.u32 %v677, 7
        %v679 = vsub.s32 0, %v678
        %v680 = vrot.slane %v650, %v679
        %v681 = vlaneseq
        %v682 = vshrl.u32 %v681, 7
        %v683 = vsub.s32 0, %v682
        %v684 = vrot.slane %v652, %v683
        %685 = vrot.lane.b32.xlu0 %v656, 96
        %v686 = vpop.permute.xlu0 %685
        %687 = vrot.lane.b32.xlu0 %v660, 96
        %v688 = vpop.permute.xlu0 %687
        %689 = vrot.lane.b32.xlu0 %v664, 96
        %v690 = vpop.permute.xlu0 %689
        %691 = vrot.lane.b32.xlu0 %v668, 96
        %v692 = vpop.permute.xlu0 %691
        %693 = vrot.lane.b32.xlu0 %v672, 96
        %v694 = vpop.permute.xlu0 %693
        %695 = vrot.lane.b32.xlu0 %v676, 96
        %v696 = vpop.permute.xlu0 %695
        %697 = vrot.lane.b32.xlu0 %v680, 96
        %v698 = vpop.permute.xlu0 %697
        %699 = vrot.lane.b32.xlu0 %v684, 96
        %v700 = vpop.permute.xlu0 %699
        %709 = vxpose.xlu0.b32.start [1/16] %v686, 128
        %710 = vxpose.xlu0.b32.cont [2/16] 0.0, 128
        %711 = vxpose.xlu0.b32.cont [3/16] 0.0, 128
        %712 = vxpose.xlu0.b32.cont [4/16] 0.0, 128
        %713 = vxpose.xlu0.b32.cont [5/16] 0.0, 128
        %714 = vxpose.xlu0.b32.cont [6/16] 0.0, 128
        %715 = vxpose.xlu0.b32.cont [7/16] 0.0, 128
        %716 = vxpose.xlu0.b32.cont [8/16] 0.0, 128
        %717 = vxpose.xlu0.b32.cont [9/16] 0.0, 128
        %718 = vxpose.xlu0.b32.cont [10/16] 0.0, 128
        %719 = vxpose.xlu0.b32.cont [11/16] 0.0, 128
        %720 = vxpose.xlu0.b32.cont [12/16] 0.0, 128
        %721 = vxpose.xlu0.b32.cont [13/16] 0.0, 128
        %722 = vxpose.xlu0.b32.cont [14/16] 0.0, 128
        %723 = vxpose.xlu0.b32.cont [15/16] 0.0, 128
        %724 = vxpose.xlu0.b32.end [16/16] 0.0, 128
        %v725 = vpop.trf.xlu0
        %v726 = vpop.trf.xlu0
        %v727 = vpop.trf.xlu0
        %v728 = vpop.trf.xlu0
        %v729 = vpop.trf.xlu0
        %v730 = vpop.trf.xlu0
        %v731 = vpop.trf.xlu0
        %v732 = vpop.trf.xlu0
        %v733 = vpop.trf.xlu0
        %v734 = vpop.trf.xlu0
        %v735 = vpop.trf.xlu0
        %v736 = vpop.trf.xlu0
        %v737 = vpop.trf.xlu0
        %v738 = vpop.trf.xlu0
        %v739 = vpop.trf.xlu0
        %v740 = vpop.trf.xlu0
        %741 = vxpose.xlu0.b32.start [1/16] %v688, 128
        %742 = vxpose.xlu0.b32.cont [2/16] 0.0, 128
        %743 = vxpose.xlu0.b32.cont [3/16] 0.0, 128
        %744 = vxpose.xlu0.b32.cont [4/16] 0.0, 128
        %745 = vxpose.xlu0.b32.cont [5/16] 0.0, 128
        %746 = vxpose.xlu0.b32.cont [6/16] 0.0, 128
        %747 = vxpose.xlu0.b32.cont [7/16] 0.0, 128
        %748 = vxpose.xlu0.b32.cont [8/16] 0.0, 128
        %749 = vxpose.xlu0.b32.cont [9/16] 0.0, 128
        %750 = vxpose.xlu0.b32.cont [10/16] 0.0, 128
        %751 = vxpose.xlu0.b32.cont [11/16] 0.0, 128
        %752 = vxpose.xlu0.b32.cont [12/16] 0.0, 128
        %753 = vxpose.xlu0.b32.cont [13/16] 0.0, 128
        %754 = vxpose.xlu0.b32.cont [14/16] 0.0, 128
        %755 = vxpose.xlu0.b32.cont [15/16] 0.0, 128
        %756 = vxpose.xlu0.b32.end [16/16] 0.0, 128
        %v757 = vpop.trf.xlu0
        %v758 = vpop.trf.xlu0
        %v759 = vpop.trf.xlu0
        %v760 = vpop.trf.xlu0
        %v761 = vpop.trf.xlu0
        %v762 = vpop.trf.xlu0
        %v763 = vpop.trf.xlu0
        %v764 = vpop.trf.xlu0
        %v765 = vpop.trf.xlu0
        %v766 = vpop.trf.xlu0
        %v767 = vpop.trf.xlu0
        %v768 = vpop.trf.xlu0
        %v769 = vpop.trf.xlu0
        %v770 = vpop.trf.xlu0
        %v771 = vpop.trf.xlu0
        %v772 = vpop.trf.xlu0
        %773 = vxpose.xlu0.b32.start [1/16] %v690, 128
        %774 = vxpose.xlu0.b32.cont [2/16] 0.0, 128
        %775 = vxpose.xlu0.b32.cont [3/16] 0.0, 128
        %776 = vxpose.xlu0.b32.cont [4/16] 0.0, 128
        %777 = vxpose.xlu0.b32.cont [5/16] 0.0, 128
        %778 = vxpose.xlu0.b32.cont [6/16] 0.0, 128
        %779 = vxpose.xlu0.b32.cont [7/16] 0.0, 128
        %780 = vxpose.xlu0.b32.cont [8/16] 0.0, 128
        %781 = vxpose.xlu0.b32.cont [9/16] 0.0, 128
        %782 = vxpose.xlu0.b32.cont [10/16] 0.0, 128
        %783 = vxpose.xlu0.b32.cont [11/16] 0.0, 128
        %784 = vxpose.xlu0.b32.cont [12/16] 0.0, 128
        %785 = vxpose.xlu0.b32.cont [13/16] 0.0, 128
        %786 = vxpose.xlu0.b32.cont [14/16] 0.0, 128
        %787 = vxpose.xlu0.b32.cont [15/16] 0.0, 128
        %788 = vxpose.xlu0.b32.end [16/16] 0.0, 128
        %v789 = vpop.trf.xlu0
        %v790 = vpop.trf.xlu0
        %v791 = vpop.trf.xlu0
        %v792 = vpop.trf.xlu0
        %v793 = vpop.trf.xlu0
        %v794 = vpop.trf.xlu0
        %v795 = vpop.trf.xlu0
        %v796 = vpop.trf.xlu0
        %v797 = vpop.trf.xlu0
        %v798 = vpop.trf.xlu0
        %v799 = vpop.trf.xlu0
        %v800 = vpop.trf.xlu0
        %v801 = vpop.trf.xlu0
        %v802 = vpop.trf.xlu0
        %v803 = vpop.trf.xlu0
        %v804 = vpop.trf.xlu0
        %805 = vxpose.xlu0.b32.start [1/16] %v692, 128
        %806 = vxpose.xlu0.b32.cont [2/16] 0.0, 128
        %807 = vxpose.xlu0.b32.cont [3/16] 0.0, 128
        %808 = vxpose.xlu0.b32.cont [4/16] 0.0, 128
        %809 = vxpose.xlu0.b32.cont [5/16] 0.0, 128
        %810 = vxpose.xlu0.b32.cont [6/16] 0.0, 128
        %811 = vxpose.xlu0.b32.cont [7/16] 0.0, 128
        %812 = vxpose.xlu0.b32.cont [8/16] 0.0, 128
        %813 = vxpose.xlu0.b32.cont [9/16] 0.0, 128
        %814 = vxpose.xlu0.b32.cont [10/16] 0.0, 128
        %815 = vxpose.xlu0.b32.cont [11/16] 0.0, 128
        %816 = vxpose.xlu0.b32.cont [12/16] 0.0, 128
        %817 = vxpose.xlu0.b32.cont [13/16] 0.0, 128
        %818 = vxpose.xlu0.b32.cont [14/16] 0.0, 128
        %819 = vxpose.xlu0.b32.cont [15/16] 0.0, 128
        %820 = vxpose.xlu0.b32.end [16/16] 0.0, 128
        %v821 = vpop.trf.xlu0
        %v822 = vpop.trf.xlu0
        %v823 = vpop.trf.xlu0
        %v824 = vpop.trf.xlu0
        %v825 = vpop.trf.xlu0
        %v826 = vpop.trf.xlu0
        %v827 = vpop.trf.xlu0
        %v828 = vpop.trf.xlu0
        %v829 = vpop.trf.xlu0
        %v830 = vpop.trf.xlu0
        %v831 = vpop.trf.xlu0
        %v832 = vpop.trf.xlu0
        %v833 = vpop.trf.xlu0
        %v834 = vpop.trf.xlu0
        %v835 = vpop.trf.xlu0
        %v836 = vpop.trf.xlu0
        %837 = vxpose.xlu0.b32.start [1/16] %v694, 128
        %838 = vxpose.xlu0.b32.cont [2/16] 0.0, 128
        %839 = vxpose.xlu0.b32.cont [3/16] 0.0, 128
        %840 = vxpose.xlu0.b32.cont [4/16] 0.0, 128
        %841 = vxpose.xlu0.b32.cont [5/16] 0.0, 128
        %842 = vxpose.xlu0.b32.cont [6/16] 0.0, 128
        %843 = vxpose.xlu0.b32.cont [7/16] 0.0, 128
        %844 = vxpose.xlu0.b32.cont [8/16] 0.0, 128
        %845 = vxpose.xlu0.b32.cont [9/16] 0.0, 128
        %846 = vxpose.xlu0.b32.cont [10/16] 0.0, 128
        %847 = vxpose.xlu0.b32.cont [11/16] 0.0, 128
        %848 = vxpose.xlu0.b32.cont [12/16] 0.0, 128
        %849 = vxpose.xlu0.b32.cont [13/16] 0.0, 128
        %850 = vxpose.xlu0.b32.cont [14/16] 0.0, 128
        %851 = vxpose.xlu0.b32.cont [15/16] 0.0, 128
        %852 = vxpose.xlu0.b32.end [16/16] 0.0, 128
        %v853 = vpop.trf.xlu0
        %v854 = vpop.trf.xlu0
        %v855 = vpop.trf.xlu0
        %v856 = vpop.trf.xlu0
        %v857 = vpop.trf.xlu0
        %v858 = vpop.trf.xlu0
        %v859 = vpop.trf.xlu0
        %v860 = vpop.trf.xlu0
        %v861 = vpop.trf.xlu0
        %v862 = vpop.trf.xlu0
        %v863 = vpop.trf.xlu0
        %v864 = vpop.trf.xlu0
        %v865 = vpop.trf.xlu0
        %v866 = vpop.trf.xlu0
        %v867 = vpop.trf.xlu0
        %v868 = vpop.trf.xlu0
        %869 = vxpose.xlu0.b32.start [1/16] %v696, 128
        %870 = vxpose.xlu0.b32.cont [2/16] 0.0, 128
        %871 = vxpose.xlu0.b32.cont [3/16] 0.0, 128
        %872 = vxpose.xlu0.b32.cont [4/16] 0.0, 128
        %873 = vxpose.xlu0.b32.cont [5/16] 0.0, 128
        %874 = vxpose.xlu0.b32.cont [6/16] 0.0, 128
        %875 = vxpose.xlu0.b32.cont [7/16] 0.0, 128
        %876 = vxpose.xlu0.b32.cont [8/16] 0.0, 128
        %877 = vxpose.xlu0.b32.cont [9/16] 0.0, 128
        %878 = vxpose.xlu0.b32.cont [10/16] 0.0, 128
        %879 = vxpose.xlu0.b32.cont [11/16] 0.0, 128
        %880 = vxpose.xlu0.b32.cont [12/16] 0.0, 128
        %881 = vxpose.xlu0.b32.cont [13/16] 0.0, 128
        %882 = vxpose.xlu0.b32.cont [14/16] 0.0, 128
        %883 = vxpose.xlu0.b32.cont [15/16] 0.0, 128
        %884 = vxpose.xlu0.b32.end [16/16] 0.0, 128
        %v885 = vpop.trf.xlu0
        %v886 = vpop.trf.xlu0
        %v887 = vpop.trf.xlu0
        %v888 = vpop.trf.xlu0
        %v889 = vpop.trf.xlu0
        %v890 = vpop.trf.xlu0
        %v891 = vpop.trf.xlu0
        %v892 = vpop.trf.xlu0
        %v893 = vpop.trf.xlu0
        %v894 = vpop.trf.xlu0
        %v895 = vpop.trf.xlu0
        %v896 = vpop.trf.xlu0
        %v897 = vpop.trf.xlu0
        %v898 = vpop.trf.xlu0
        %v899 = vpop.trf.xlu0
        %v900 = vpop.trf.xlu0
        %901 = vxpose.xlu0.b32.start [1/16] %v698, 128
        %902 = vxpose.xlu0.b32.cont [2/16] 0.0, 128
        %903 = vxpose.xlu0.b32.cont [3/16] 0.0, 128
        %904 = vxpose.xlu0.b32.cont [4/16] 0.0, 128
        %905 = vxpose.xlu0.b32.cont [5/16] 0.0, 128
        %906 = vxpose.xlu0.b32.cont [6/16] 0.0, 128
        %907 = vxpose.xlu0.b32.cont [7/16] 0.0, 128
        %908 = vxpose.xlu0.b32.cont [8/16] 0.0, 128
        %909 = vxpose.xlu0.b32.cont [9/16] 0.0, 128
        %910 = vxpose.xlu0.b32.cont [10/16] 0.0, 128
        %911 = vxpose.xlu0.b32.cont [11/16] 0.0, 128
        %912 = vxpose.xlu0.b32.cont [12/16] 0.0, 128
        %913 = vxpose.xlu0.b32.cont [13/16] 0.0, 128
        %914 = vxpose.xlu0.b32.cont [14/16] 0.0, 128
        %915 = vxpose.xlu0.b32.cont [15/16] 0.0, 128
        %916 = vxpose.xlu0.b32.end [16/16] 0.0, 128
        %v917 = vpop.trf.xlu0
        %v918 = vpop.trf.xlu0
        %v919 = vpop.trf.xlu0
        %v920 = vpop.trf.xlu0
        %v921 = vpop.trf.xlu0
        %v922 = vpop.trf.xlu0
        %v923 = vpop.trf.xlu0
        %v924 = vpop.trf.xlu0
        %v925 = vpop.trf.xlu0
        %v926 = vpop.trf.xlu0
        %v927 = vpop.trf.xlu0
        %v928 = vpop.trf.xlu0
        %v929 = vpop.trf.xlu0
        %v930 = vpop.trf.xlu0
        %v931 = vpop.trf.xlu0
        %v932 = vpop.trf.xlu0
        %933 = vxpose.xlu0.b32.start [1/16] %v700, 128
        %934 = vxpose.xlu0.b32.cont [2/16] 0.0, 128
        %935 = vxpose.xlu0.b32.cont [3/16] 0.0, 128
        %936 = vxpose.xlu0.b32.cont [4/16] 0.0, 128
        %937 = vxpose.xlu0.b32.cont [5/16] 0.0, 128
        %938 = vxpose.xlu0.b32.cont [6/16] 0.0, 128
        %939 = vxpose.xlu0.b32.cont [7/16] 0.0, 128
        %940 = vxpose.xlu0.b32.cont [8/16] 0.0, 128
        %941 = vxpose.xlu0.b32.cont [9/16] 0.0, 128
        %942 = vxpose.xlu0.b32.cont [10/16] 0.0, 128
        %943 = vxpose.xlu0.b32.cont [11/16] 0.0, 128
        %944 = vxpose.xlu0.b32.cont [12/16] 0.0, 128
        %945 = vxpose.xlu0.b32.cont [13/16] 0.0, 128
        %946 = vxpose.xlu0.b32.cont [14/16] 0.0, 128
        %947 = vxpose.xlu0.b32.cont [15/16] 0.0, 128
        %948 = vxpose.xlu0.b32.end [16/16] 0.0, 128
        %v949 = vpop.trf.xlu0
        %v950 = vpop.trf.xlu0
        %v951 = vpop.trf.xlu0
        %v952 = vpop.trf.xlu0
        %v953 = vpop.trf.xlu0
        %v954 = vpop.trf.xlu0
        %v955 = vpop.trf.xlu0
        %v956 = vpop.trf.xlu0
        %v957 = vpop.trf.xlu0
        %v958 = vpop.trf.xlu0
        %v959 = vpop.trf.xlu0
        %v960 = vpop.trf.xlu0
        %v961 = vpop.trf.xlu0
        %v962 = vpop.trf.xlu0
        %v963 = vpop.trf.xlu0
        %v964 = vpop.trf.xlu0
        %v965 = vcombine.low %v725, %v789
        %v966 = vcombine.high %v725, %v789
        %v968 = vunpack.c.l.s4 1983009808
        %v969 = vunpack.c.0.s8 %v968
        %v970 = vlaneseq
        %v971 = vshrl.u32 %v970, 7
        %v972 = vsub.s32 %v969, %v971
        %v973 = vrot.slane %v965, %v972
        %v975 = vunpack.c.l.s4 1983009808
        %v976 = vunpack.c.0.s8 %v975
        %v977 = vlaneseq
        %v978 = vshrl.u32 %v977, 7
        %v979 = vsub.s32 %v976, %v978
        %v980 = vrot.slane %v966, %v979
        %v981 = vcombine.low %v757, %v821
        %v982 = vcombine.high %v757, %v821
        %v984 = vunpack.c.l.s4 1983009808
        %v985 = vunpack.c.0.s8 %v984
        %v986 = vlaneseq
        %v987 = vshrl.u32 %v986, 7
        %v988 = vsub.s32 %v985, %v987
        %v989 = vrot.slane %v981, %v988
        %v991 = vunpack.c.l.s4 1983009808
        %v992 = vunpack.c.0.s8 %v991
        %v993 = vlaneseq
        %v994 = vshrl.u32 %v993, 7
        %v995 = vsub.s32 %v992, %v994
        %v996 = vrot.slane %v982, %v995
        %v997 = vcombine.low %v853, %v917
        %v998 = vcombine.high %v853, %v917
        %v1000 = vunpack.c.l.s4 1983009808
        %v1001 = vunpack.c.0.s8 %v1000
        %v1002 = vlaneseq
        %v1003 = vshrl.u32 %v1002, 7
        %v1004 = vsub.s32 %v1001, %v1003
        %v1005 = vrot.slane %v997, %v1004
        %v1007 = vunpack.c.l.s4 1983009808
        %v1008 = vunpack.c.0.s8 %v1007
        %v1009 = vlaneseq
        %v1010 = vshrl.u32 %v1009, 7
        %v1011 = vsub.s32 %v1008, %v1010
        %v1012 = vrot.slane %v998, %v1011
        %v1013 = vcombine.low %v885, %v949
        %v1014 = vcombine.high %v885, %v949
        %v1016 = vunpack.c.l.s4 1983009808
        %v1017 = vunpack.c.0.s8 %v1016
        %v1018 = vlaneseq
        %v1019 = vshrl.u32 %v1018, 7
        %v1020 = vsub.s32 %v1017, %v1019
        %v1021 = vrot.slane %v1013, %v1020
        %v1023 = vunpack.c.l.s4 1983009808
        %v1024 = vunpack.c.0.s8 %v1023
        %v1025 = vlaneseq
        %v1026 = vshrl.u32 %v1025, 7
        %v1027 = vsub.s32 %v1024, %v1026
        %v1028 = vrot.slane %v1014, %v1027
        %v1029 = vcombine.low %v973, %v989
        %v1030 = vcombine.high %v973, %v989
        %v1032 = vunpack.c.l.s4 1934713408
        %v1033 = vunpack.c.0.s8 %v1032
        %v1034 = vlaneseq
        %v1035 = vshrl.u32 %v1034, 7
        %v1036 = vsub.s32 %v1033, %v1035
        %v1037 = vrot.slane %v1029, %v1036
        %v1039 = vunpack.c.l.s4 1934713408
        %v1040 = vunpack.c.0.s8 %v1039
        %v1041 = vlaneseq
        %v1042 = vshrl.u32 %v1041, 7
        %v1043 = vsub.s32 %v1040, %v1042
        %v1044 = vrot.slane %v1030, %v1043
        %v1045 = vcombine.low %v980, %v996
        %v1046 = vcombine.high %v980, %v996
        %v1048 = vunpack.c.l.s4 1934713408
        %v1049 = vunpack.c.0.s8 %v1048
        %v1050 = vlaneseq
        %v1051 = vshrl.u32 %v1050, 7
        %v1052 = vsub.s32 %v1049, %v1051
        %v1053 = vrot.slane %v1045, %v1052
        %v1055 = vunpack.c.l.s4 1934713408
        %v1056 = vunpack.c.0.s8 %v1055
        %v1057 = vlaneseq
        %v1058 = vshrl.u32 %v1057, 7
        %v1059 = vsub.s32 %v1056, %v1058
        %v1060 = vrot.slane %v1046, %v1059
        %v1061 = vcombine.low %v1005, %v1021
        %v1062 = vcombine.high %v1005, %v1021
        %v1064 = vunpack.c.l.s4 1934713408
        %v1065 = vunpack.c.0.s8 %v1064
        %v1066 = vlaneseq
        %v1067 = vshrl.u32 %v1066, 7
        %v1068 = vsub.s32 %v1065, %v1067
        %v1069 = vrot.slane %v1061, %v1068
        %v1071 = vunpack.c.l.s4 1934713408
        %v1072 = vunpack.c.0.s8 %v1071
        %v1073 = vlaneseq
        %v1074 = vshrl.u32 %v1073, 7
        %v1075 = vsub.s32 %v1072, %v1074
        %v1076 = vrot.slane %v1062, %v1075
        %v1077 = vcombine.low %v1012, %v1028
        %v1078 = vcombine.high %v1012, %v1028
        %v1080 = vunpack.c.l.s4 1934713408
        %v1081 = vunpack.c.0.s8 %v1080
        %v1082 = vlaneseq
        %v1083 = vshrl.u32 %v1082, 7
        %v1084 = vsub.s32 %v1081, %v1083
        %v1085 = vrot.slane %v1077, %v1084
        %v1087 = vunpack.c.l.s4 1934713408
        %v1088 = vunpack.c.0.s8 %v1087
        %v1089 = vlaneseq
        %v1090 = vshrl.u32 %v1089, 7
        %v1091 = vsub.s32 %v1088, %v1090
        %v1092 = vrot.slane %v1078, %v1091
        %v1093 = vcombine.low %v1037, %v1069
        %v1094 = vcombine.high %v1037, %v1069
        %v1095 = vcombine.low %v1044, %v1076
        %v1096 = vcombine.high %v1044, %v1076
        %v1097 = vcombine.low %v1053, %v1085
        %v1098 = vcombine.high %v1053, %v1085
        %v1099 = vcombine.low %v1060, %v1092
        %v1100 = vcombine.high %v1060, %v1092
        %v1101 = vcombine.low %v726, %v790
        %v1102 = vcombine.high %v726, %v790
        %v1104 = vunpack.c.l.s4 1983009808
        %v1105 = vunpack.c.0.s8 %v1104
        %v1106 = vlaneseq
        %v1107 = vshrl.u32 %v1106, 7
        %v1108 = vsub.s32 %v1105, %v1107
        %v1109 = vrot.slane %v1101, %v1108
        %v1111 = vunpack.c.l.s4 1983009808
        %v1112 = vunpack.c.0.s8 %v1111
        %v1113 = vlaneseq
        %v1114 = vshrl.u32 %v1113, 7
        %v1115 = vsub.s32 %v1112, %v1114
        %v1116 = vrot.slane %v1102, %v1115
        %v1117 = vcombine.low %v758, %v822
        %v1118 = vcombine.high %v758, %v822
        %v1120 = vunpack.c.l.s4 1983009808
        %v1121 = vunpack.c.0.s8 %v1120
        %v1122 = vlaneseq
        %v1123 = vshrl.u32 %v1122, 7
        %v1124 = vsub.s32 %v1121, %v1123
        %v1125 = vrot.slane %v1117, %v1124
        %v1127 = vunpack.c.l.s4 1983009808
        %v1128 = vunpack.c.0.s8 %v1127
        %v1129 = vlaneseq
        %v1130 = vshrl.u32 %v1129, 7
        %v1131 = vsub.s32 %v1128, %v1130
        %v1132 = vrot.slane %v1118, %v1131
        %v1133 = vcombine.low %v854, %v918
        %v1134 = vcombine.high %v854, %v918
        %v1136 = vunpack.c.l.s4 1983009808
        %v1137 = vunpack.c.0.s8 %v1136
        %v1138 = vlaneseq
        %v1139 = vshrl.u32 %v1138, 7
        %v1140 = vsub.s32 %v1137, %v1139
        %v1141 = vrot.slane %v1133, %v1140
        %v1143 = vunpack.c.l.s4 1983009808
        %v1144 = vunpack.c.0.s8 %v1143
        %v1145 = vlaneseq
        %v1146 = vshrl.u32 %v1145, 7
        %v1147 = vsub.s32 %v1144, %v1146
        %v1148 = vrot.slane %v1134, %v1147
        %v1149 = vcombine.low %v886, %v950
        %v1150 = vcombine.high %v886, %v950
        %v1152 = vunpack.c.l.s4 1983009808
        %v1153 = vunpack.c.0.s8 %v1152
        %v1154 = vlaneseq
        %v1155 = vshrl.u32 %v1154, 7
        %v1156 = vsub.s32 %v1153, %v1155
        %v1157 = vrot.slane %v1149, %v1156
        %v1159 = vunpack.c.l.s4 1983009808
        %v1160 = vunpack.c.0.s8 %v1159
        %v1161 = vlaneseq
        %v1162 = vshrl.u32 %v1161, 7
        %v1163 = vsub.s32 %v1160, %v1162
        %v1164 = vrot.slane %v1150, %v1163
        %v1165 = vcombine.low %v1109, %v1125
        %v1166 = vcombine.high %v1109, %v1125
        %v1168 = vunpack.c.l.s4 1934713408
        %v1169 = vunpack.c.0.s8 %v1168
        %v1170 = vlaneseq
        %v1171 = vshrl.u32 %v1170, 7
        %v1172 = vsub.s32 %v1169, %v1171
        %v1173 = vrot.slane %v1165, %v1172
        %v1175 = vunpack.c.l.s4 1934713408
        %v1176 = vunpack.c.0.s8 %v1175
        %v1177 = vlaneseq
        %v1178 = vshrl.u32 %v1177, 7
        %v1179 = vsub.s32 %v1176, %v1178
        %v1180 = vrot.slane %v1166, %v1179
        %v1181 = vcombine.low %v1116, %v1132
        %v1182 = vcombine.high %v1116, %v1132
        %v1184 = vunpack.c.l.s4 1934713408
        %v1185 = vunpack.c.0.s8 %v1184
        %v1186 = vlaneseq
        %v1187 = vshrl.u32 %v1186, 7
        %v1188 = vsub.s32 %v1185, %v1187
        %v1189 = vrot.slane %v1181, %v1188
        %v1191 = vunpack.c.l.s4 1934713408
        %v1192 = vunpack.c.0.s8 %v1191
        %v1193 = vlaneseq
        %v1194 = vshrl.u32 %v1193, 7
        %v1195 = vsub.s32 %v1192, %v1194
        %v1196 = vrot.slane %v1182, %v1195
        %v1197 = vcombine.low %v1141, %v1157
        %v1198 = vcombine.high %v1141, %v1157
        %v1200 = vunpack.c.l.s4 1934713408
        %v1201 = vunpack.c.0.s8 %v1200
        %v1202 = vlaneseq
        %v1203 = vshrl.u32 %v1202, 7
        %v1204 = vsub.s32 %v1201, %v1203
        %v1205 = vrot.slane %v1197, %v1204
        %v1207 = vunpack.c.l.s4 1934713408
        %v1208 = vunpack.c.0.s8 %v1207
        %v1209 = vlaneseq
        %v1210 = vshrl.u32 %v1209, 7
        %v1211 = vsub.s32 %v1208, %v1210
        %v1212 = vrot.slane %v1198, %v1211
        %v1213 = vcombine.low %v1148, %v1164
        %v1214 = vcombine.high %v1148, %v1164
        %v1216 = vunpack.c.l.s4 1934713408
        %v1217 = vunpack.c.0.s8 %v1216
        %v1218 = vlaneseq
        %v1219 = vshrl.u32 %v1218, 7
        %v1220 = vsub.s32 %v1217, %v1219
        %v1221 = vrot.slane %v1213, %v1220
        %v1223 = vunpack.c.l.s4 1934713408
        %v1224 = vunpack.c.0.s8 %v1223
        %v1225 = vlaneseq
        %v1226 = vshrl.u32 %v1225, 7
        %v1227 = vsub.s32 %v1224, %v1226
        %v1228 = vrot.slane %v1214, %v1227
        %v1229 = vcombine.low %v1173, %v1205
        %v1230 = vcombine.high %v1173, %v1205
        %v1231 = vcombine.low %v1180, %v1212
        %v1232 = vcombine.high %v1180, %v1212
        %v1233 = vcombine.low %v1189, %v1221
        %v1234 = vcombine.high %v1189, %v1221
        %v1235 = vcombine.low %v1196, %v1228
        %v1236 = vcombine.high %v1196, %v1228
        %v1237 = vcombine.low %v727, %v791
        %v1238 = vcombine.high %v727, %v791
        %v1240 = vunpack.c.l.s4 1983009808
        %v1241 = vunpack.c.0.s8 %v1240
        %v1242 = vlaneseq
        %v1243 = vshrl.u32 %v1242, 7
        %v1244 = vsub.s32 %v1241, %v1243
        %v1245 = vrot.slane %v1237, %v1244
        %v1247 = vunpack.c.l.s4 1983009808
        %v1248 = vunpack.c.0.s8 %v1247
        %v1249 = vlaneseq
        %v1250 = vshrl.u32 %v1249, 7
        %v1251 = vsub.s32 %v1248, %v1250
        %v1252 = vrot.slane %v1238, %v1251
        %v1253 = vcombine.low %v759, %v823
        %v1254 = vcombine.high %v759, %v823
        %v1256 = vunpack.c.l.s4 1983009808
        %v1257 = vunpack.c.0.s8 %v1256
        %v1258 = vlaneseq
        %v1259 = vshrl.u32 %v1258, 7
        %v1260 = vsub.s32 %v1257, %v1259
        %v1261 = vrot.slane %v1253, %v1260
        %v1263 = vunpack.c.l.s4 1983009808
        %v1264 = vunpack.c.0.s8 %v1263
        %v1265 = vlaneseq
        %v1266 = vshrl.u32 %v1265, 7
        %v1267 = vsub.s32 %v1264, %v1266
        %v1268 = vrot.slane %v1254, %v1267
        %v1269 = vcombine.low %v855, %v919
        %v1270 = vcombine.high %v855, %v919
        %v1272 = vunpack.c.l.s4 1983009808
        %v1273 = vunpack.c.0.s8 %v1272
        %v1274 = vlaneseq
        %v1275 = vshrl.u32 %v1274, 7
        %v1276 = vsub.s32 %v1273, %v1275
        %v1277 = vrot.slane %v1269, %v1276
        %v1279 = vunpack.c.l.s4 1983009808
        %v1280 = vunpack.c.0.s8 %v1279
        %v1281 = vlaneseq
        %v1282 = vshrl.u32 %v1281, 7
        %v1283 = vsub.s32 %v1280, %v1282
        %v1284 = vrot.slane %v1270, %v1283
        %v1285 = vcombine.low %v887, %v951
        %v1286 = vcombine.high %v887, %v951
        %v1288 = vunpack.c.l.s4 1983009808
        %v1289 = vunpack.c.0.s8 %v1288
        %v1290 = vlaneseq
        %v1291 = vshrl.u32 %v1290, 7
        %v1292 = vsub.s32 %v1289, %v1291
        %v1293 = vrot.slane %v1285, %v1292
        %v1295 = vunpack.c.l.s4 1983009808
        %v1296 = vunpack.c.0.s8 %v1295
        %v1297 = vlaneseq
        %v1298 = vshrl.u32 %v1297, 7
        %v1299 = vsub.s32 %v1296, %v1298
        %v1300 = vrot.slane %v1286, %v1299
        %v1301 = vcombine.low %v1245, %v1261
        %v1302 = vcombine.high %v1245, %v1261
        %v1304 = vunpack.c.l.s4 1934713408
        %v1305 = vunpack.c.0.s8 %v1304
        %v1306 = vlaneseq
        %v1307 = vshrl.u32 %v1306, 7
        %v1308 = vsub.s32 %v1305, %v1307
        %v1309 = vrot.slane %v1301, %v1308
        %v1311 = vunpack.c.l.s4 1934713408
        %v1312 = vunpack.c.0.s8 %v1311
        %v1313 = vlaneseq
        %v1314 = vshrl.u32 %v1313, 7
        %v1315 = vsub.s32 %v1312, %v1314
        %v1316 = vrot.slane %v1302, %v1315
        %v1317 = vcombine.low %v1252, %v1268
        %v1318 = vcombine.high %v1252, %v1268
        %v1320 = vunpack.c.l.s4 1934713408
        %v1321 = vunpack.c.0.s8 %v1320
        %v1322 = vlaneseq
        %v1323 = vshrl.u32 %v1322, 7
        %v1324 = vsub.s32 %v1321, %v1323
        %v1325 = vrot.slane %v1317, %v1324
        %v1327 = vunpack.c.l.s4 1934713408
        %v1328 = vunpack.c.0.s8 %v1327
        %v1329 = vlaneseq
        %v1330 = vshrl.u32 %v1329, 7
        %v1331 = vsub.s32 %v1328, %v1330
        %v1332 = vrot.slane %v1318, %v1331
        %v1333 = vcombine.low %v1277, %v1293
        %v1334 = vcombine.high %v1277, %v1293
        %v1336 = vunpack.c.l.s4 1934713408
        %v1337 = vunpack.c.0.s8 %v1336
        %v1338 = vlaneseq
        %v1339 = vshrl.u32 %v1338, 7
        %v1340 = vsub.s32 %v1337, %v1339
        %v1341 = vrot.slane %v1333, %v1340
        %v1343 = vunpack.c.l.s4 1934713408
        %v1344 = vunpack.c.0.s8 %v1343
        %v1345 = vlaneseq
        %v1346 = vshrl.u32 %v1345, 7
        %v1347 = vsub.s32 %v1344, %v1346
        %v1348 = vrot.slane %v1334, %v1347
        %v1349 = vcombine.low %v1284, %v1300
        %v1350 = vcombine.high %v1284, %v1300
        %v1352 = vunpack.c.l.s4 1934713408
        %v1353 = vunpack.c.0.s8 %v1352
        %v1354 = vlaneseq
        %v1355 = vshrl.u32 %v1354, 7
        %v1356 = vsub.s32 %v1353, %v1355
        %v1357 = vrot.slane %v1349, %v1356
        %v1359 = vunpack.c.l.s4 1934713408
        %v1360 = vunpack.c.0.s8 %v1359
        %v1361 = vlaneseq
        %v1362 = vshrl.u32 %v1361, 7
        %v1363 = vsub.s32 %v1360, %v1362
        %v1364 = vrot.slane %v1350, %v1363
        %v1365 = vcombine.low %v1309, %v1341
        %v1366 = vcombine.high %v1309, %v1341
        %v1367 = vcombine.low %v1316, %v1348
        %v1368 = vcombine.high %v1316, %v1348
        %v1369 = vcombine.low %v1325, %v1357
        %v1370 = vcombine.high %v1325, %v1357
        %v1371 = vcombine.low %v1332, %v1364
        %v1372 = vcombine.high %v1332, %v1364
        %v1373 = vcombine.low %v728, %v792
        %v1374 = vcombine.high %v728, %v792
        %v1376 = vunpack.c.l.s4 1983009808
        %v1377 = vunpack.c.0.s8 %v1376
        %v1378 = vlaneseq
        %v1379 = vshrl.u32 %v1378, 7
        %v1380 = vsub.s32 %v1377, %v1379
        %v1381 = vrot.slane %v1373, %v1380
        %v1383 = vunpack.c.l.s4 1983009808
        %v1384 = vunpack.c.0.s8 %v1383
        %v1385 = vlaneseq
        %v1386 = vshrl.u32 %v1385, 7
        %v1387 = vsub.s32 %v1384, %v1386
        %v1388 = vrot.slane %v1374, %v1387
        %v1389 = vcombine.low %v760, %v824
        %v1390 = vcombine.high %v760, %v824
        %v1392 = vunpack.c.l.s4 1983009808
        %v1393 = vunpack.c.0.s8 %v1392
        %v1394 = vlaneseq
        %v1395 = vshrl.u32 %v1394, 7
        %v1396 = vsub.s32 %v1393, %v1395
        %v1397 = vrot.slane %v1389, %v1396
        %v1399 = vunpack.c.l.s4 1983009808
        %v1400 = vunpack.c.0.s8 %v1399
        %v1401 = vlaneseq
        %v1402 = vshrl.u32 %v1401, 7
        %v1403 = vsub.s32 %v1400, %v1402
        %v1404 = vrot.slane %v1390, %v1403
        %v1405 = vcombine.low %v856, %v920
        %v1406 = vcombine.high %v856, %v920
        %v1408 = vunpack.c.l.s4 1983009808
        %v1409 = vunpack.c.0.s8 %v1408
        %v1410 = vlaneseq
        %v1411 = vshrl.u32 %v1410, 7
        %v1412 = vsub.s32 %v1409, %v1411
        %v1413 = vrot.slane %v1405, %v1412
        %v1415 = vunpack.c.l.s4 1983009808
        %v1416 = vunpack.c.0.s8 %v1415
        %v1417 = vlaneseq
        %v1418 = vshrl.u32 %v1417, 7
        %v1419 = vsub.s32 %v1416, %v1418
        %v1420 = vrot.slane %v1406, %v1419
        %v1421 = vcombine.low %v888, %v952
        %v1422 = vcombine.high %v888, %v952
        %v1424 = vunpack.c.l.s4 1983009808
        %v1425 = vunpack.c.0.s8 %v1424
        %v1426 = vlaneseq
        %v1427 = vshrl.u32 %v1426, 7
        %v1428 = vsub.s32 %v1425, %v1427
        %v1429 = vrot.slane %v1421, %v1428
        %v1431 = vunpack.c.l.s4 1983009808
        %v1432 = vunpack.c.0.s8 %v1431
        %v1433 = vlaneseq
        %v1434 = vshrl.u32 %v1433, 7
        %v1435 = vsub.s32 %v1432, %v1434
        %v1436 = vrot.slane %v1422, %v1435
        %v1437 = vcombine.low %v1381, %v1397
        %v1438 = vcombine.high %v1381, %v1397
        %v1440 = vunpack.c.l.s4 1934713408
        %v1441 = vunpack.c.0.s8 %v1440
        %v1442 = vlaneseq
        %v1443 = vshrl.u32 %v1442, 7
        %v1444 = vsub.s32 %v1441, %v1443
        %v1445 = vrot.slane %v1437, %v1444
        %v1447 = vunpack.c.l.s4 1934713408
        %v1448 = vunpack.c.0.s8 %v1447
        %v1449 = vlaneseq
        %v1450 = vshrl.u32 %v1449, 7
        %v1451 = vsub.s32 %v1448, %v1450
        %v1452 = vrot.slane %v1438, %v1451
        %v1453 = vcombine.low %v1388, %v1404
        %v1454 = vcombine.high %v1388, %v1404
        %v1456 = vunpack.c.l.s4 1934713408
        %v1457 = vunpack.c.0.s8 %v1456
        %v1458 = vlaneseq
        %v1459 = vshrl.u32 %v1458, 7
        %v1460 = vsub.s32 %v1457, %v1459
        %v1461 = vrot.slane %v1453, %v1460
        %v1463 = vunpack.c.l.s4 1934713408
        %v1464 = vunpack.c.0.s8 %v1463
        %v1465 = vlaneseq
        %v1466 = vshrl.u32 %v1465, 7
        %v1467 = vsub.s32 %v1464, %v1466
        %v1468 = vrot.slane %v1454, %v1467
        %v1469 = vcombine.low %v1413, %v1429
        %v1470 = vcombine.high %v1413, %v1429
        %v1472 = vunpack.c.l.s4 1934713408
        %v1473 = vunpack.c.0.s8 %v1472
        %v1474 = vlaneseq
        %v1475 = vshrl.u32 %v1474, 7
        %v1476 = vsub.s32 %v1473, %v1475
        %v1477 = vrot.slane %v1469, %v1476
        %v1479 = vunpack.c.l.s4 1934713408
        %v1480 = vunpack.c.0.s8 %v1479
        %v1481 = vlaneseq
        %v1482 = vshrl.u32 %v1481, 7
        %v1483 = vsub.s32 %v1480, %v1482
        %v1484 = vrot.slane %v1470, %v1483
        %v1485 = vcombine.low %v1420, %v1436
        %v1486 = vcombine.high %v1420, %v1436
        %v1488 = vunpack.c.l.s4 1934713408
        %v1489 = vunpack.c.0.s8 %v1488
        %v1490 = vlaneseq
        %v1491 = vshrl.u32 %v1490, 7
        %v1492 = vsub.s32 %v1489, %v1491
        %v1493 = vrot.slane %v1485, %v1492
        %v1495 = vunpack.c.l.s4 1934713408
        %v1496 = vunpack.c.0.s8 %v1495
        %v1497 = vlaneseq
        %v1498 = vshrl.u32 %v1497, 7
        %v1499 = vsub.s32 %v1496, %v1498
        %v1500 = vrot.slane %v1486, %v1499
        %v1501 = vcombine.low %v1445, %v1477
        %v1502 = vcombine.high %v1445, %v1477
        %v1503 = vcombine.low %v1452, %v1484
        %v1504 = vcombine.high %v1452, %v1484
        %v1505 = vcombine.low %v1461, %v1493
        %v1506 = vcombine.high %v1461, %v1493
        %v1507 = vcombine.low %v1468, %v1500
        %v1508 = vcombine.high %v1468, %v1500
        %1509 = vxpose.xlu0.b32.start [1/16] %v1093, 128
        %1510 = vxpose.xlu0.b32.cont [2/16] 0.0, 128
        %1511 = vxpose.xlu0.b32.cont [3/16] 0.0, 128
        %1512 = vxpose.xlu0.b32.cont [4/16] 0.0, 128
        %1513 = vxpose.xlu0.b32.cont [5/16] 0.0, 128
        %1514 = vxpose.xlu0.b32.cont [6/16] 0.0, 128
        %1515 = vxpose.xlu0.b32.cont [7/16] 0.0, 128
        %1516 = vxpose.xlu0.b32.cont [8/16] 0.0, 128
        %1517 = vxpose.xlu0.b32.cont [9/16] 0.0, 128
        %1518 = vxpose.xlu0.b32.cont [10/16] 0.0, 128
        %1519 = vxpose.xlu0.b32.cont [11/16] 0.0, 128
        %1520 = vxpose.xlu0.b32.cont [12/16] 0.0, 128
        %1521 = vxpose.xlu0.b32.cont [13/16] 0.0, 128
        %1522 = vxpose.xlu0.b32.cont [14/16] 0.0, 128
        %1523 = vxpose.xlu0.b32.cont [15/16] 0.0, 128
        %1524 = vxpose.xlu0.b32.end [16/16] 0.0, 128
        %v1525 = vpop.trf.xlu0
        %v1526 = vpop.trf.xlu0
        %v1527 = vpop.trf.xlu0
        %v1528 = vpop.trf.xlu0
        %v1529 = vpop.trf.xlu0
        %v1530 = vpop.trf.xlu0
        %v1531 = vpop.trf.xlu0
        %v1532 = vpop.trf.xlu0
        %v1533 = vpop.trf.xlu0
        %v1534 = vpop.trf.xlu0
        %v1535 = vpop.trf.xlu0
        %v1536 = vpop.trf.xlu0
        %v1537 = vpop.trf.xlu0
        %v1538 = vpop.trf.xlu0
        %v1539 = vpop.trf.xlu0
        %v1540 = vpop.trf.xlu0
        %1541 = vxpose.xlu0.b32.start [1/16] %v1094, 128
        %1542 = vxpose.xlu0.b32.cont [2/16] 0.0, 128
        %1543 = vxpose.xlu0.b32.cont [3/16] 0.0, 128
        %1544 = vxpose.xlu0.b32.cont [4/16] 0.0, 128
        %1545 = vxpose.xlu0.b32.cont [5/16] 0.0, 128
        %1546 = vxpose.xlu0.b32.cont [6/16] 0.0, 128
        %1547 = vxpose.xlu0.b32.cont [7/16] 0.0, 128
        %1548 = vxpose.xlu0.b32.cont [8/16] 0.0, 128
        %1549 = vxpose.xlu0.b32.cont [9/16] 0.0, 128
        %1550 = vxpose.xlu0.b32.cont [10/16] 0.0, 128
        %1551 = vxpose.xlu0.b32.cont [11/16] 0.0, 128
        %1552 = vxpose.xlu0.b32.cont [12/16] 0.0, 128
        %1553 = vxpose.xlu0.b32.cont [13/16] 0.0, 128
        %1554 = vxpose.xlu0.b32.cont [14/16] 0.0, 128
        %1555 = vxpose.xlu0.b32.cont [15/16] 0.0, 128
        %1556 = vxpose.xlu0.b32.end [16/16] 0.0, 128
        %v1557 = vpop.trf.xlu0
        %v1558 = vpop.trf.xlu0
        %v1559 = vpop.trf.xlu0
        %v1560 = vpop.trf.xlu0
        %v1561 = vpop.trf.xlu0
        %v1562 = vpop.trf.xlu0
        %v1563 = vpop.trf.xlu0
        %v1564 = vpop.trf.xlu0
        %v1565 = vpop.trf.xlu0
        %v1566 = vpop.trf.xlu0
        %v1567 = vpop.trf.xlu0
        %v1568 = vpop.trf.xlu0
        %v1569 = vpop.trf.xlu0
        %v1570 = vpop.trf.xlu0
        %v1571 = vpop.trf.xlu0
        %v1572 = vpop.trf.xlu0
        %1573 = vxpose.xlu0.b32.start [1/16] %v1095, 128
        %1574 = vxpose.xlu0.b32.cont [2/16] 0.0, 128
        %1575 = vxpose.xlu0.b32.cont [3/16] 0.0, 128
        %1576 = vxpose.xlu0.b32.cont [4/16] 0.0, 128
        %1577 = vxpose.xlu0.b32.cont [5/16] 0.0, 128
        %1578 = vxpose.xlu0.b32.cont [6/16] 0.0, 128
        %1579 = vxpose.xlu0.b32.cont [7/16] 0.0, 128
        %1580 = vxpose.xlu0.b32.cont [8/16] 0.0, 128
        %1581 = vxpose.xlu0.b32.cont [9/16] 0.0, 128
        %1582 = vxpose.xlu0.b32.cont [10/16] 0.0, 128
        %1583 = vxpose.xlu0.b32.cont [11/16] 0.0, 128
        %1584 = vxpose.xlu0.b32.cont [12/16] 0.0, 128
        %1585 = vxpose.xlu0.b32.cont [13/16] 0.0, 128
        %1586 = vxpose.xlu0.b32.cont [14/16] 0.0, 128
        %1587 = vxpose.xlu0.b32.cont [15/16] 0.0, 128
        %1588 = vxpose.xlu0.b32.end [16/16] 0.0, 128
        %v1589 = vpop.trf.xlu0
        %v1590 = vpop.trf.xlu0
        %v1591 = vpop.trf.xlu0
        %v1592 = vpop.trf.xlu0
        %v1593 = vpop.trf.xlu0
        %v1594 = vpop.trf.xlu0
        %v1595 = vpop.trf.xlu0
        %v1596 = vpop.trf.xlu0
        %v1597 = vpop.trf.xlu0
        %v1598 = vpop.trf.xlu0
        %v1599 = vpop.trf.xlu0
        %v1600 = vpop.trf.xlu0
        %v1601 = vpop.trf.xlu0
        %v1602 = vpop.trf.xlu0
        %v1603 = vpop.trf.xlu0
        %v1604 = vpop.trf.xlu0
        %1605 = vxpose.xlu0.b32.start [1/16] %v1096, 128
        %1606 = vxpose.xlu0.b32.cont [2/16] 0.0, 128
        %1607 = vxpose.xlu0.b32.cont [3/16] 0.0, 128
        %1608 = vxpose.xlu0.b32.cont [4/16] 0.0, 128
        %1609 = vxpose.xlu0.b32.cont [5/16] 0.0, 128
        %1610 = vxpose.xlu0.b32.cont [6/16] 0.0, 128
        %1611 = vxpose.xlu0.b32.cont [7/16] 0.0, 128
        %1612 = vxpose.xlu0.b32.cont [8/16] 0.0, 128
        %1613 = vxpose.xlu0.b32.cont [9/16] 0.0, 128
        %1614 = vxpose.xlu0.b32.cont [10/16] 0.0, 128
        %1615 = vxpose.xlu0.b32.cont [11/16] 0.0, 128
        %1616 = vxpose.xlu0.b32.cont [12/16] 0.0, 128
        %1617 = vxpose.xlu0.b32.cont [13/16] 0.0, 128
        %1618 = vxpose.xlu0.b32.cont [14/16] 0.0, 128
        %1619 = vxpose.xlu0.b32.cont [15/16] 0.0, 128
        %1620 = vxpose.xlu0.b32.end [16/16] 0.0, 128
        %v1621 = vpop.trf.xlu0
        %v1622 = vpop.trf.xlu0
        %v1623 = vpop.trf.xlu0
        %v1624 = vpop.trf.xlu0
        %v1625 = vpop.trf.xlu0
        %v1626 = vpop.trf.xlu0
        %v1627 = vpop.trf.xlu0
        %v1628 = vpop.trf.xlu0
        %v1629 = vpop.trf.xlu0
        %v1630 = vpop.trf.xlu0
        %v1631 = vpop.trf.xlu0
        %v1632 = vpop.trf.xlu0
        %v1633 = vpop.trf.xlu0
        %v1634 = vpop.trf.xlu0
        %v1635 = vpop.trf.xlu0
        %v1636 = vpop.trf.xlu0
        %1637 = vxpose.xlu0.b32.start [1/16] %v1097, 128
        %1638 = vxpose.xlu0.b32.cont [2/16] 0.0, 128
        %1639 = vxpose.xlu0.b32.cont [3/16] 0.0, 128
        %1640 = vxpose.xlu0.b32.cont [4/16] 0.0, 128
        %1641 = vxpose.xlu0.b32.cont [5/16] 0.0, 128
        %1642 = vxpose.xlu0.b32.cont [6/16] 0.0, 128
        %1643 = vxpose.xlu0.b32.cont [7/16] 0.0, 128
        %1644 = vxpose.xlu0.b32.cont [8/16] 0.0, 128
        %1645 = vxpose.xlu0.b32.cont [9/16] 0.0, 128
        %1646 = vxpose.xlu0.b32.cont [10/16] 0.0, 128
        %1647 = vxpose.xlu0.b32.cont [11/16] 0.0, 128
        %1648 = vxpose.xlu0.b32.cont [12/16] 0.0, 128
        %1649 = vxpose.xlu0.b32.cont [13/16] 0.0, 128
        %1650 = vxpose.xlu0.b32.cont [14/16] 0.0, 128
        %1651 = vxpose.xlu0.b32.cont [15/16] 0.0, 128
        %1652 = vxpose.xlu0.b32.end [16/16] 0.0, 128
        %v1653 = vpop.trf.xlu0
        %v1654 = vpop.trf.xlu0
        %v1655 = vpop.trf.xlu0
        %v1656 = vpop.trf.xlu0
        %v1657 = vpop.trf.xlu0
        %v1658 = vpop.trf.xlu0
        %v1659 = vpop.trf.xlu0
        %v1660 = vpop.trf.xlu0
        %v1661 = vpop.trf.xlu0
        %v1662 = vpop.trf.xlu0
        %v1663 = vpop.trf.xlu0
        %v1664 = vpop.trf.xlu0
        %v1665 = vpop.trf.xlu0
        %v1666 = vpop.trf.xlu0
        %v1667 = vpop.trf.xlu0
        %v1668 = vpop.trf.xlu0
        %1669 = vxpose.xlu0.b32.start [1/16] %v1098, 128
        %1670 = vxpose.xlu0.b32.cont [2/16] 0.0, 128
        %1671 = vxpose.xlu0.b32.cont [3/16] 0.0, 128
        %1672 = vxpose.xlu0.b32.cont [4/16] 0.0, 128
        %1673 = vxpose.xlu0.b32.cont [5/16] 0.0, 128
        %1674 = vxpose.xlu0.b32.cont [6/16] 0.0, 128
        %1675 = vxpose.xlu0.b32.cont [7/16] 0.0, 128
        %1676 = vxpose.xlu0.b32.cont [8/16] 0.0, 128
        %1677 = vxpose.xlu0.b32.cont [9/16] 0.0, 128
        %1678 = vxpose.xlu0.b32.cont [10/16] 0.0, 128
        %1679 = vxpose.xlu0.b32.cont [11/16] 0.0, 128
        %1680 = vxpose.xlu0.b32.cont [12/16] 0.0, 128
        %1681 = vxpose.xlu0.b32.cont [13/16] 0.0, 128
        %1682 = vxpose.xlu0.b32.cont [14/16] 0.0, 128
        %1683 = vxpose.xlu0.b32.cont [15/16] 0.0, 128
        %1684 = vxpose.xlu0.b32.end [16/16] 0.0, 128
        %v1685 = vpop.trf.xlu0
        %v1686 = vpop.trf.xlu0
        %v1687 = vpop.trf.xlu0
        %v1688 = vpop.trf.xlu0
        %v1689 = vpop.trf.xlu0
        %v1690 = vpop.trf.xlu0
        %v1691 = vpop.trf.xlu0
        %v1692 = vpop.trf.xlu0
        %v1693 = vpop.trf.xlu0
        %v1694 = vpop.trf.xlu0
        %v1695 = vpop.trf.xlu0
        %v1696 = vpop.trf.xlu0
        %v1697 = vpop.trf.xlu0
        %v1698 = vpop.trf.xlu0
        %v1699 = vpop.trf.xlu0
        %v1700 = vpop.trf.xlu0
        %1701 = vxpose.xlu0.b32.start [1/16] %v1099, 128
        %1702 = vxpose.xlu0.b32.cont [2/16] 0.0, 128
        %1703 = vxpose.xlu0.b32.cont [3/16] 0.0, 128
        %1704 = vxpose.xlu0.b32.cont [4/16] 0.0, 128
        %1705 = vxpose.xlu0.b32.cont [5/16] 0.0, 128
        %1706 = vxpose.xlu0.b32.cont [6/16] 0.0, 128
        %1707 = vxpose.xlu0.b32.cont [7/16] 0.0, 128
        %1708 = vxpose.xlu0.b32.cont [8/16] 0.0, 128
        %1709 = vxpose.xlu0.b32.cont [9/16] 0.0, 128
        %1710 = vxpose.xlu0.b32.cont [10/16] 0.0, 128
        %1711 = vxpose.xlu0.b32.cont [11/16] 0.0, 128
        %1712 = vxpose.xlu0.b32.cont [12/16] 0.0, 128
        %1713 = vxpose.xlu0.b32.cont [13/16] 0.0, 128
        %1714 = vxpose.xlu0.b32.cont [14/16] 0.0, 128
        %1715 = vxpose.xlu0.b32.cont [15/16] 0.0, 128
        %1716 = vxpose.xlu0.b32.end [16/16] 0.0, 128
        %v1717 = vpop.trf.xlu0
        %v1718 = vpop.trf.xlu0
        %v1719 = vpop.trf.xlu0
        %v1720 = vpop.trf.xlu0
        %v1721 = vpop.trf.xlu0
        %v1722 = vpop.trf.xlu0
        %v1723 = vpop.trf.xlu0
        %v1724 = vpop.trf.xlu0
        %v1725 = vpop.trf.xlu0
        %v1726 = vpop.trf.xlu0
        %v1727 = vpop.trf.xlu0
        %v1728 = vpop.trf.xlu0
        %v1729 = vpop.trf.xlu0
        %v1730 = vpop.trf.xlu0
        %v1731 = vpop.trf.xlu0
        %v1732 = vpop.trf.xlu0
        %1733 = vxpose.xlu0.b32.start [1/16] %v1100, 128
        %1734 = vxpose.xlu0.b32.cont [2/16] 0.0, 128
        %1735 = vxpose.xlu0.b32.cont [3/16] 0.0, 128
        %1736 = vxpose.xlu0.b32.cont [4/16] 0.0, 128
        %1737 = vxpose.xlu0.b32.cont [5/16] 0.0, 128
        %1738 = vxpose.xlu0.b32.cont [6/16] 0.0, 128
        %1739 = vxpose.xlu0.b32.cont [7/16] 0.0, 128
        %1740 = vxpose.xlu0.b32.cont [8/16] 0.0, 128
        %1741 = vxpose.xlu0.b32.cont [9/16] 0.0, 128
        %1742 = vxpose.xlu0.b32.cont [10/16] 0.0, 128
        %1743 = vxpose.xlu0.b32.cont [11/16] 0.0, 128
        %1744 = vxpose.xlu0.b32.cont [12/16] 0.0, 128
        %1745 = vxpose.xlu0.b32.cont [13/16] 0.0, 128
        %1746 = vxpose.xlu0.b32.cont [14/16] 0.0, 128
        %1747 = vxpose.xlu0.b32.cont [15/16] 0.0, 128
        %1748 = vxpose.xlu0.b32.end [16/16] 0.0, 128
        %v1749 = vpop.trf.xlu0
        %v1750 = vpop.trf.xlu0
        %v1751 = vpop.trf.xlu0
        %v1752 = vpop.trf.xlu0
        %v1753 = vpop.trf.xlu0
        %v1754 = vpop.trf.xlu0
        %v1755 = vpop.trf.xlu0
        %v1756 = vpop.trf.xlu0
        %v1757 = vpop.trf.xlu0
        %v1758 = vpop.trf.xlu0
        %v1759 = vpop.trf.xlu0
        %v1760 = vpop.trf.xlu0
        %v1761 = vpop.trf.xlu0
        %v1762 = vpop.trf.xlu0
        %v1763 = vpop.trf.xlu0
        %v1764 = vpop.trf.xlu0
        %1765 = vxpose.xlu0.b32.start [1/16] %v1229, 128
        %1766 = vxpose.xlu0.b32.cont [2/16] 0.0, 128
        %1767 = vxpose.xlu0.b32.cont [3/16] 0.0, 128
        %1768 = vxpose.xlu0.b32.cont [4/16] 0.0, 128
        %1769 = vxpose.xlu0.b32.cont [5/16] 0.0, 128
        %1770 = vxpose.xlu0.b32.cont [6/16] 0.0, 128
        %1771 = vxpose.xlu0.b32.cont [7/16] 0.0, 128
        %1772 = vxpose.xlu0.b32.cont [8/16] 0.0, 128
        %1773 = vxpose.xlu0.b32.cont [9/16] 0.0, 128
        %1774 = vxpose.xlu0.b32.cont [10/16] 0.0, 128
        %1775 = vxpose.xlu0.b32.cont [11/16] 0.0, 128
        %1776 = vxpose.xlu0.b32.cont [12/16] 0.0, 128
        %1777 = vxpose.xlu0.b32.cont [13/16] 0.0, 128
        %1778 = vxpose.xlu0.b32.cont [14/16] 0.0, 128
        %1779 = vxpose.xlu0.b32.cont [15/16] 0.0, 128
        %1780 = vxpose.xlu0.b32.end [16/16] 0.0, 128
        %v1781 = vpop.trf.xlu0
        %v1782 = vpop.trf.xlu0
        %v1783 = vpop.trf.xlu0
        %v1784 = vpop.trf.xlu0
        %v1785 = vpop.trf.xlu0
        %v1786 = vpop.trf.xlu0
        %v1787 = vpop.trf.xlu0
        %v1788 = vpop.trf.xlu0
        %v1789 = vpop.trf.xlu0
        %v1790 = vpop.trf.xlu0
        %v1791 = vpop.trf.xlu0
        %v1792 = vpop.trf.xlu0
        %v1793 = vpop.trf.xlu0
        %v1794 = vpop.trf.xlu0
        %v1795 = vpop.trf.xlu0
        %v1796 = vpop.trf.xlu0
        %1797 = vxpose.xlu0.b32.start [1/16] %v1230, 128
        %1798 = vxpose.xlu0.b32.cont [2/16] 0.0, 128
        %1799 = vxpose.xlu0.b32.cont [3/16] 0.0, 128
        %1800 = vxpose.xlu0.b32.cont [4/16] 0.0, 128
        %1801 = vxpose.xlu0.b32.cont [5/16] 0.0, 128
        %1802 = vxpose.xlu0.b32.cont [6/16] 0.0, 128
        %1803 = vxpose.xlu0.b32.cont [7/16] 0.0, 128
        %1804 = vxpose.xlu0.b32.cont [8/16] 0.0, 128
        %1805 = vxpose.xlu0.b32.cont [9/16] 0.0, 128
        %1806 = vxpose.xlu0.b32.cont [10/16] 0.0, 128
        %1807 = vxpose.xlu0.b32.cont [11/16] 0.0, 128
        %1808 = vxpose.xlu0.b32.cont [12/16] 0.0, 128
        %1809 = vxpose.xlu0.b32.cont [13/16] 0.0, 128
        %1810 = vxpose.xlu0.b32.cont [14/16] 0.0, 128
        %1811 = vxpose.xlu0.b32.cont [15/16] 0.0, 128
        %1812 = vxpose.xlu0.b32.end [16/16] 0.0, 128
        %v1813 = vpop.trf.xlu0
        %v1814 = vpop.trf.xlu0
        %v1815 = vpop.trf.xlu0
        %v1816 = vpop.trf.xlu0
        %v1817 = vpop.trf.xlu0
        %v1818 = vpop.trf.xlu0
        %v1819 = vpop.trf.xlu0
        %v1820 = vpop.trf.xlu0
        %v1821 = vpop.trf.xlu0
        %v1822 = vpop.trf.xlu0
        %v1823 = vpop.trf.xlu0
        %v1824 = vpop.trf.xlu0
        %v1825 = vpop.trf.xlu0
        %v1826 = vpop.trf.xlu0
        %v1827 = vpop.trf.xlu0
        %v1828 = vpop.trf.xlu0
        %1829 = vxpose.xlu0.b32.start [1/16] %v1231, 128
        %1830 = vxpose.xlu0.b32.cont [2/16] 0.0, 128
        %1831 = vxpose.xlu0.b32.cont [3/16] 0.0, 128
        %1832 = vxpose.xlu0.b32.cont [4/16] 0.0, 128
        %1833 = vxpose.xlu0.b32.cont [5/16] 0.0, 128
        %1834 = vxpose.xlu0.b32.cont [6/16] 0.0, 128
        %1835 = vxpose.xlu0.b32.cont [7/16] 0.0, 128
        %1836 = vxpose.xlu0.b32.cont [8/16] 0.0, 128
        %1837 = vxpose.xlu0.b32.cont [9/16] 0.0, 128
        %1838 = vxpose.xlu0.b32.cont [10/16] 0.0, 128
        %1839 = vxpose.xlu0.b32.cont [11/16] 0.0, 128
        %1840 = vxpose.xlu0.b32.cont [12/16] 0.0, 128
        %1841 = vxpose.xlu0.b32.cont [13/16] 0.0, 128
        %1842 = vxpose.xlu0.b32.cont [14/16] 0.0, 128
        %1843 = vxpose.xlu0.b32.cont [15/16] 0.0, 128
        %1844 = vxpose.xlu0.b32.end [16/16] 0.0, 128
        %v1845 = vpop.trf.xlu0
        %v1846 = vpop.trf.xlu0
        %v1847 = vpop.trf.xlu0
        %v1848 = vpop.trf.xlu0
        %v1849 = vpop.trf.xlu0
        %v1850 = vpop.trf.xlu0
        %v1851 = vpop.trf.xlu0
        %v1852 = vpop.trf.xlu0
        %v1853 = vpop.trf.xlu0
        %v1854 = vpop.trf.xlu0
        %v1855 = vpop.trf.xlu0
        %v1856 = vpop.trf.xlu0
        %v1857 = vpop.trf.xlu0
        %v1858 = vpop.trf.xlu0
        %v1859 = vpop.trf.xlu0
        %v1860 = vpop.trf.xlu0
        %1861 = vxpose.xlu0.b32.start [1/16] %v1232, 128
        %1862 = vxpose.xlu0.b32.cont [2/16] 0.0, 128
        %1863 = vxpose.xlu0.b32.cont [3/16] 0.0, 128
        %1864 = vxpose.xlu0.b32.cont [4/16] 0.0, 128
        %1865 = vxpose.xlu0.b32.cont [5/16] 0.0, 128
        %1866 = vxpose.xlu0.b32.cont [6/16] 0.0, 128
        %1867 = vxpose.xlu0.b32.cont [7/16] 0.0, 128
        %1868 = vxpose.xlu0.b32.cont [8/16] 0.0, 128
        %1869 = vxpose.xlu0.b32.cont [9/16] 0.0, 128
        %1870 = vxpose.xlu0.b32.cont [10/16] 0.0, 128
        %1871 = vxpose.xlu0.b32.cont [11/16] 0.0, 128
        %1872 = vxpose.xlu0.b32.cont [12/16] 0.0, 128
        %1873 = vxpose.xlu0.b32.cont [13/16] 0.0, 128
        %1874 = vxpose.xlu0.b32.cont [14/16] 0.0, 128
        %1875 = vxpose.xlu0.b32.cont [15/16] 0.0, 128
        %1876 = vxpose.xlu0.b32.end [16/16] 0.0, 128
        %v1877 = vpop.trf.xlu0
        %v1878 = vpop.trf.xlu0
        %v1879 = vpop.trf.xlu0
        %v1880 = vpop.trf.xlu0
        %v1881 = vpop.trf.xlu0
        %v1882 = vpop.trf.xlu0
        %v1883 = vpop.trf.xlu0
        %v1884 = vpop.trf.xlu0
        %v1885 = vpop.trf.xlu0
        %v1886 = vpop.trf.xlu0
        %v1887 = vpop.trf.xlu0
        %v1888 = vpop.trf.xlu0
        %v1889 = vpop.trf.xlu0
        %v1890 = vpop.trf.xlu0
        %v1891 = vpop.trf.xlu0
        %v1892 = vpop.trf.xlu0
        %1893 = vxpose.xlu0.b32.start [1/16] %v1233, 128
        %1894 = vxpose.xlu0.b32.cont [2/16] 0.0, 128
        %1895 = vxpose.xlu0.b32.cont [3/16] 0.0, 128
        %1896 = vxpose.xlu0.b32.cont [4/16] 0.0, 128
        %1897 = vxpose.xlu0.b32.cont [5/16] 0.0, 128
        %1898 = vxpose.xlu0.b32.cont [6/16] 0.0, 128
        %1899 = vxpose.xlu0.b32.cont [7/16] 0.0, 128
        %1900 = vxpose.xlu0.b32.cont [8/16] 0.0, 128
        %1901 = vxpose.xlu0.b32.cont [9/16] 0.0, 128
        %1902 = vxpose.xlu0.b32.cont [10/16] 0.0, 128
        %1903 = vxpose.xlu0.b32.cont [11/16] 0.0, 128
        %1904 = vxpose.xlu0.b32.cont [12/16] 0.0, 128
        %1905 = vxpose.xlu0.b32.cont [13/16] 0.0, 128
        %1906 = vxpose.xlu0.b32.cont [14/16] 0.0, 128
        %1907 = vxpose.xlu0.b32.cont [15/16] 0.0, 128
        %1908 = vxpose.xlu0.b32.end [16/16] 0.0, 128
        %v1909 = vpop.trf.xlu0
        %v1910 = vpop.trf.xlu0
        %v1911 = vpop.trf.xlu0
        %v1912 = vpop.trf.xlu0
        %v1913 = vpop.trf.xlu0
        %v1914 = vpop.trf.xlu0
        %v1915 = vpop.trf.xlu0
        %v1916 = vpop.trf.xlu0
        %v1917 = vpop.trf.xlu0
        %v1918 = vpop.trf.xlu0
        %v1919 = vpop.trf.xlu0
        %v1920 = vpop.trf.xlu0
        %v1921 = vpop.trf.xlu0
        %v1922 = vpop.trf.xlu0
        %v1923 = vpop.trf.xlu0
        %v1924 = vpop.trf.xlu0
        %1925 = vxpose.xlu0.b32.start [1/16] %v1234, 128
        %1926 = vxpose.xlu0.b32.cont [2/16] 0.0, 128
        %1927 = vxpose.xlu0.b32.cont [3/16] 0.0, 128
        %1928 = vxpose.xlu0.b32.cont [4/16] 0.0, 128
        %1929 = vxpose.xlu0.b32.cont [5/16] 0.0, 128
        %1930 = vxpose.xlu0.b32.cont [6/16] 0.0, 128
        %1931 = vxpose.xlu0.b32.cont [7/16] 0.0, 128
        %1932 = vxpose.xlu0.b32.cont [8/16] 0.0, 128
        %1933 = vxpose.xlu0.b32.cont [9/16] 0.0, 128
        %1934 = vxpose.xlu0.b32.cont [10/16] 0.0, 128
        %1935 = vxpose.xlu0.b32.cont [11/16] 0.0, 128
        %1936 = vxpose.xlu0.b32.cont [12/16] 0.0, 128
        %1937 = vxpose.xlu0.b32.cont [13/16] 0.0, 128
        %1938 = vxpose.xlu0.b32.cont [14/16] 0.0, 128
        %1939 = vxpose.xlu0.b32.cont [15/16] 0.0, 128
        %1940 = vxpose.xlu0.b32.end [16/16] 0.0, 128
        %v1941 = vpop.trf.xlu0
        %v1942 = vpop.trf.xlu0
        %v1943 = vpop.trf.xlu0
        %v1944 = vpop.trf.xlu0
        %v1945 = vpop.trf.xlu0
        %v1946 = vpop.trf.xlu0
        %v1947 = vpop.trf.xlu0
        %v1948 = vpop.trf.xlu0
        %v1949 = vpop.trf.xlu0
        %v1950 = vpop.trf.xlu0
        %v1951 = vpop.trf.xlu0
        %v1952 = vpop.trf.xlu0
        %v1953 = vpop.trf.xlu0
        %v1954 = vpop.trf.xlu0
        %v1955 = vpop.trf.xlu0
        %v1956 = vpop.trf.xlu0
        %1957 = vxpose.xlu0.b32.start [1/16] %v1235, 128
        %1958 = vxpose.xlu0.b32.cont [2/16] 0.0, 128
        %1959 = vxpose.xlu0.b32.cont [3/16] 0.0, 128
        %1960 = vxpose.xlu0.b32.cont [4/16] 0.0, 128
        %1961 = vxpose.xlu0.b32.cont [5/16] 0.0, 128
        %1962 = vxpose.xlu0.b32.cont [6/16] 0.0, 128
        %1963 = vxpose.xlu0.b32.cont [7/16] 0.0, 128
        %1964 = vxpose.xlu0.b32.cont [8/16] 0.0, 128
        %1965 = vxpose.xlu0.b32.cont [9/16] 0.0, 128
        %1966 = vxpose.xlu0.b32.cont [10/16] 0.0, 128
        %1967 = vxpose.xlu0.b32.cont [11/16] 0.0, 128
        %1968 = vxpose.xlu0.b32.cont [12/16] 0.0, 128
        %1969 = vxpose.xlu0.b32.cont [13/16] 0.0, 128
        %1970 = vxpose.xlu0.b32.cont [14/16] 0.0, 128
        %1971 = vxpose.xlu0.b32.cont [15/16] 0.0, 128
        %1972 = vxpose.xlu0.b32.end [16/16] 0.0, 128
        %v1973 = vpop.trf.xlu0
        %v1974 = vpop.trf.xlu0
        %v1975 = vpop.trf.xlu0
        %v1976 = vpop.trf.xlu0
        %v1977 = vpop.trf.xlu0
        %v1978 = vpop.trf.xlu0
        %v1979 = vpop.trf.xlu0
        %v1980 = vpop.trf.xlu0
        %v1981 = vpop.trf.xlu0
        %v1982 = vpop.trf.xlu0
        %v1983 = vpop.trf.xlu0
        %v1984 = vpop.trf.xlu0
        %v1985 = vpop.trf.xlu0
        %v1986 = vpop.trf.xlu0
        %v1987 = vpop.trf.xlu0
        %v1988 = vpop.trf.xlu0
        %1989 = vxpose.xlu0.b32.start [1/16] %v1236, 128
        %1990 = vxpose.xlu0.b32.cont [2/16] 0.0, 128
        %1991 = vxpose.xlu0.b32.cont [3/16] 0.0, 128
        %1992 = vxpose.xlu0.b32.cont [4/16] 0.0, 128
        %1993 = vxpose.xlu0.b32.cont [5/16] 0.0, 128
        %1994 = vxpose.xlu0.b32.cont [6/16] 0.0, 128
        %1995 = vxpose.xlu0.b32.cont [7/16] 0.0, 128
        %1996 = vxpose.xlu0.b32.cont [8/16] 0.0, 128
        %1997 = vxpose.xlu0.b32.cont [9/16] 0.0, 128
        %1998 = vxpose.xlu0.b32.cont [10/16] 0.0, 128
        %1999 = vxpose.xlu0.b32.cont [11/16] 0.0, 128
        %2000 = vxpose.xlu0.b32.cont [12/16] 0.0, 128
        %2001 = vxpose.xlu0.b32.cont [13/16] 0.0, 128
        %2002 = vxpose.xlu0.b32.cont [14/16] 0.0, 128
        %2003 = vxpose.xlu0.b32.cont [15/16] 0.0, 128
        %2004 = vxpose.xlu0.b32.end [16/16] 0.0, 128
        %v2005 = vpop.trf.xlu0
        %v2006 = vpop.trf.xlu0
        %v2007 = vpop.trf.xlu0
        %v2008 = vpop.trf.xlu0
        %v2009 = vpop.trf.xlu0
        %v2010 = vpop.trf.xlu0
        %v2011 = vpop.trf.xlu0
        %v2012 = vpop.trf.xlu0
        %v2013 = vpop.trf.xlu0
        %v2014 = vpop.trf.xlu0
        %v2015 = vpop.trf.xlu0
        %v2016 = vpop.trf.xlu0
        %v2017 = vpop.trf.xlu0
        %v2018 = vpop.trf.xlu0
        %v2019 = vpop.trf.xlu0
        %v2020 = vpop.trf.xlu0
        %2021 = vxpose.xlu0.b32.start [1/16] %v1365, 128
        %2022 = vxpose.xlu0.b32.cont [2/16] 0.0, 128
        %2023 = vxpose.xlu0.b32.cont [3/16] 0.0, 128
        %2024 = vxpose.xlu0.b32.cont [4/16] 0.0, 128
        %2025 = vxpose.xlu0.b32.cont [5/16] 0.0, 128
        %2026 = vxpose.xlu0.b32.cont [6/16] 0.0, 128
        %2027 = vxpose.xlu0.b32.cont [7/16] 0.0, 128
        %2028 = vxpose.xlu0.b32.cont [8/16] 0.0, 128
        %2029 = vxpose.xlu0.b32.cont [9/16] 0.0, 128
        %2030 = vxpose.xlu0.b32.cont [10/16] 0.0, 128
        %2031 = vxpose.xlu0.b32.cont [11/16] 0.0, 128
        %2032 = vxpose.xlu0.b32.cont [12/16] 0.0, 128
        %2033 = vxpose.xlu0.b32.cont [13/16] 0.0, 128
        %2034 = vxpose.xlu0.b32.cont [14/16] 0.0, 128
        %2035 = vxpose.xlu0.b32.cont [15/16] 0.0, 128
        %2036 = vxpose.xlu0.b32.end [16/16] 0.0, 128
        %v2037 = vpop.trf.xlu0
        %v2038 = vpop.trf.xlu0
        %v2039 = vpop.trf.xlu0
        %v2040 = vpop.trf.xlu0
        %v2041 = vpop.trf.xlu0
        %v2042 = vpop.trf.xlu0
        %v2043 = vpop.trf.xlu0
        %v2044 = vpop.trf.xlu0
        %v2045 = vpop.trf.xlu0
        %v2046 = vpop.trf.xlu0
        %v2047 = vpop.trf.xlu0
        %v2048 = vpop.trf.xlu0
        %v2049 = vpop.trf.xlu0
        %v2050 = vpop.trf.xlu0
        %v2051 = vpop.trf.xlu0
        %v2052 = vpop.trf.xlu0
        %2053 = vxpose.xlu0.b32.start [1/16] %v1366, 128
        %2054 = vxpose.xlu0.b32.cont [2/16] 0.0, 128
        %2055 = vxpose.xlu0.b32.cont [3/16] 0.0, 128
        %2056 = vxpose.xlu0.b32.cont [4/16] 0.0, 128
        %2057 = vxpose.xlu0.b32.cont [5/16] 0.0, 128
        %2058 = vxpose.xlu0.b32.cont [6/16] 0.0, 128
        %2059 = vxpose.xlu0.b32.cont [7/16] 0.0, 128
        %2060 = vxpose.xlu0.b32.cont [8/16] 0.0, 128
        %2061 = vxpose.xlu0.b32.cont [9/16] 0.0, 128
        %2062 = vxpose.xlu0.b32.cont [10/16] 0.0, 128
        %2063 = vxpose.xlu0.b32.cont [11/16] 0.0, 128
        %2064 = vxpose.xlu0.b32.cont [12/16] 0.0, 128
        %2065 = vxpose.xlu0.b32.cont [13/16] 0.0, 128
        %2066 = vxpose.xlu0.b32.cont [14/16] 0.0, 128
        %2067 = vxpose.xlu0.b32.cont [15/16] 0.0, 128
        %2068 = vxpose.xlu0.b32.end [16/16] 0.0, 128
        %v2069 = vpop.trf.xlu0
        %v2070 = vpop.trf.xlu0
        %v2071 = vpop.trf.xlu0
        %v2072 = vpop.trf.xlu0
        %v2073 = vpop.trf.xlu0
        %v2074 = vpop.trf.xlu0
        %v2075 = vpop.trf.xlu0
        %v2076 = vpop.trf.xlu0
        %v2077 = vpop.trf.xlu0
        %v2078 = vpop.trf.xlu0
        %v2079 = vpop.trf.xlu0
        %v2080 = vpop.trf.xlu0
        %v2081 = vpop.trf.xlu0
        %v2082 = vpop.trf.xlu0
        %v2083 = vpop.trf.xlu0
        %v2084 = vpop.trf.xlu0
        %2085 = vxpose.xlu0.b32.start [1/16] %v1367, 128
        %2086 = vxpose.xlu0.b32.cont [2/16] 0.0, 128
        %2087 = vxpose.xlu0.b32.cont [3/16] 0.0, 128
        %2088 = vxpose.xlu0.b32.cont [4/16] 0.0, 128
        %2089 = vxpose.xlu0.b32.cont [5/16] 0.0, 128
        %2090 = vxpose.xlu0.b32.cont [6/16] 0.0, 128
        %2091 = vxpose.xlu0.b32.cont [7/16] 0.0, 128
        %2092 = vxpose.xlu0.b32.cont [8/16] 0.0, 128
        %2093 = vxpose.xlu0.b32.cont [9/16] 0.0, 128
        %2094 = vxpose.xlu0.b32.cont [10/16] 0.0, 128
        %2095 = vxpose.xlu0.b32.cont [11/16] 0.0, 128
        %2096 = vxpose.xlu0.b32.cont [12/16] 0.0, 128
        %2097 = vxpose.xlu0.b32.cont [13/16] 0.0, 128
        %2098 = vxpose.xlu0.b32.cont [14/16] 0.0, 128
        %2099 = vxpose.xlu0.b32.cont [15/16] 0.0, 128
        %2100 = vxpose.xlu0.b32.end [16/16] 0.0, 128
        %v2101 = vpop.trf.xlu0
        %v2102 = vpop.trf.xlu0
        %v2103 = vpop.trf.xlu0
        %v2104 = vpop.trf.xlu0
        %v2105 = vpop.trf.xlu0
        %v2106 = vpop.trf.xlu0
        %v2107 = vpop.trf.xlu0
        %v2108 = vpop.trf.xlu0
        %v2109 = vpop.trf.xlu0
        %v2110 = vpop.trf.xlu0
        %v2111 = vpop.trf.xlu0
        %v2112 = vpop.trf.xlu0
        %v2113 = vpop.trf.xlu0
        %v2114 = vpop.trf.xlu0
        %v2115 = vpop.trf.xlu0
        %v2116 = vpop.trf.xlu0
        %2117 = vxpose.xlu0.b32.start [1/16] %v1368, 128
        %2118 = vxpose.xlu0.b32.cont [2/16] 0.0, 128
        %2119 = vxpose.xlu0.b32.cont [3/16] 0.0, 128
        %2120 = vxpose.xlu0.b32.cont [4/16] 0.0, 128
        %2121 = vxpose.xlu0.b32.cont [5/16] 0.0, 128
        %2122 = vxpose.xlu0.b32.cont [6/16] 0.0, 128
        %2123 = vxpose.xlu0.b32.cont [7/16] 0.0, 128
        %2124 = vxpose.xlu0.b32.cont [8/16] 0.0, 128
        %2125 = vxpose.xlu0.b32.cont [9/16] 0.0, 128
        %2126 = vxpose.xlu0.b32.cont [10/16] 0.0, 128
        %2127 = vxpose.xlu0.b32.cont [11/16] 0.0, 128
        %2128 = vxpose.xlu0.b32.cont [12/16] 0.0, 128
        %2129 = vxpose.xlu0.b32.cont [13/16] 0.0, 128
        %2130 = vxpose.xlu0.b32.cont [14/16] 0.0, 128
        %2131 = vxpose.xlu0.b32.cont [15/16] 0.0, 128
        %2132 = vxpose.xlu0.b32.end [16/16] 0.0, 128
        %v2133 = vpop.trf.xlu0
        %v2134 = vpop.trf.xlu0
        %v2135 = vpop.trf.xlu0
        %v2136 = vpop.trf.xlu0
        %v2137 = vpop.trf.xlu0
        %v2138 = vpop.trf.xlu0
        %v2139 = vpop.trf.xlu0
        %v2140 = vpop.trf.xlu0
        %v2141 = vpop.trf.xlu0
        %v2142 = vpop.trf.xlu0
        %v2143 = vpop.trf.xlu0
        %v2144 = vpop.trf.xlu0
        %v2145 = vpop.trf.xlu0
        %v2146 = vpop.trf.xlu0
        %v2147 = vpop.trf.xlu0
        %v2148 = vpop.trf.xlu0
        %2149 = vxpose.xlu0.b32.start [1/16] %v1369, 128
        %2150 = vxpose.xlu0.b32.cont [2/16] 0.0, 128
        %2151 = vxpose.xlu0.b32.cont [3/16] 0.0, 128
        %2152 = vxpose.xlu0.b32.cont [4/16] 0.0, 128
        %2153 = vxpose.xlu0.b32.cont [5/16] 0.0, 128
        %2154 = vxpose.xlu0.b32.cont [6/16] 0.0, 128
        %2155 = vxpose.xlu0.b32.cont [7/16] 0.0, 128
        %2156 = vxpose.xlu0.b32.cont [8/16] 0.0, 128
        %2157 = vxpose.xlu0.b32.cont [9/16] 0.0, 128
        %2158 = vxpose.xlu0.b32.cont [10/16] 0.0, 128
        %2159 = vxpose.xlu0.b32.cont [11/16] 0.0, 128
        %2160 = vxpose.xlu0.b32.cont [12/16] 0.0, 128
        %2161 = vxpose.xlu0.b32.cont [13/16] 0.0, 128
        %2162 = vxpose.xlu0.b32.cont [14/16] 0.0, 128
        %2163 = vxpose.xlu0.b32.cont [15/16] 0.0, 128
        %2164 = vxpose.xlu0.b32.end [16/16] 0.0, 128
        %v2165 = vpop.trf.xlu0
        %v2166 = vpop.trf.xlu0
        %v2167 = vpop.trf.xlu0
        %v2168 = vpop.trf.xlu0
        %v2169 = vpop.trf.xlu0
        %v2170 = vpop.trf.xlu0
        %v2171 = vpop.trf.xlu0
        %v2172 = vpop.trf.xlu0
        %v2173 = vpop.trf.xlu0
        %v2174 = vpop.trf.xlu0
        %v2175 = vpop.trf.xlu0
        %v2176 = vpop.trf.xlu0
        %v2177 = vpop.trf.xlu0
        %v2178 = vpop.trf.xlu0
        %v2179 = vpop.trf.xlu0
        %v2180 = vpop.trf.xlu0
        %2181 = vxpose.xlu0.b32.start [1/16] %v1370, 128
        %2182 = vxpose.xlu0.b32.cont [2/16] 0.0, 128
        %2183 = vxpose.xlu0.b32.cont [3/16] 0.0, 128
        %2184 = vxpose.xlu0.b32.cont [4/16] 0.0, 128
        %2185 = vxpose.xlu0.b32.cont [5/16] 0.0, 128
        %2186 = vxpose.xlu0.b32.cont [6/16] 0.0, 128
        %2187 = vxpose.xlu0.b32.cont [7/16] 0.0, 128
        %2188 = vxpose.xlu0.b32.cont [8/16] 0.0, 128
        %2189 = vxpose.xlu0.b32.cont [9/16] 0.0, 128
        %2190 = vxpose.xlu0.b32.cont [10/16] 0.0, 128
        %2191 = vxpose.xlu0.b32.cont [11/16] 0.0, 128
        %2192 = vxpose.xlu0.b32.cont [12/16] 0.0, 128
        %2193 = vxpose.xlu0.b32.cont [13/16] 0.0, 128
        %2194 = vxpose.xlu0.b32.cont [14/16] 0.0, 128
        %2195 = vxpose.xlu0.b32.cont [15/16] 0.0, 128
        %2196 = vxpose.xlu0.b32.end [16/16] 0.0, 128
        %v2197 = vpop.trf.xlu0
        %v2198 = vpop.trf.xlu0
        %v2199 = vpop.trf.xlu0
        %v2200 = vpop.trf.xlu0
        %v2201 = vpop.trf.xlu0
        %v2202 = vpop.trf.xlu0
        %v2203 = vpop.trf.xlu0
        %v2204 = vpop.trf.xlu0
        %v2205 = vpop.trf.xlu0
        %v2206 = vpop.trf.xlu0
        %v2207 = vpop.trf.xlu0
        %v2208 = vpop.trf.xlu0
        %v2209 = vpop.trf.xlu0
        %v2210 = vpop.trf.xlu0
        %v2211 = vpop.trf.xlu0
        %v2212 = vpop.trf.xlu0
        %2213 = vxpose.xlu0.b32.start [1/16] %v1371, 128
        %2214 = vxpose.xlu0.b32.cont [2/16] 0.0, 128
        %2215 = vxpose.xlu0.b32.cont [3/16] 0.0, 128
        %2216 = vxpose.xlu0.b32.cont [4/16] 0.0, 128
        %2217 = vxpose.xlu0.b32.cont [5/16] 0.0, 128
        %2218 = vxpose.xlu0.b32.cont [6/16] 0.0, 128
        %2219 = vxpose.xlu0.b32.cont [7/16] 0.0, 128
        %2220 = vxpose.xlu0.b32.cont [8/16] 0.0, 128
        %2221 = vxpose.xlu0.b32.cont [9/16] 0.0, 128
        %2222 = vxpose.xlu0.b32.cont [10/16] 0.0, 128
        %2223 = vxpose.xlu0.b32.cont [11/16] 0.0, 128
        %2224 = vxpose.xlu0.b32.cont [12/16] 0.0, 128
        %2225 = vxpose.xlu0.b32.cont [13/16] 0.0, 128
        %2226 = vxpose.xlu0.b32.cont [14/16] 0.0, 128
        %2227 = vxpose.xlu0.b32.cont [15/16] 0.0, 128
        %2228 = vxpose.xlu0.b32.end [16/16] 0.0, 128
        %v2229 = vpop.trf.xlu0
        %v2230 = vpop.trf.xlu0
        %v2231 = vpop.trf.xlu0
        %v2232 = vpop.trf.xlu0
        %v2233 = vpop.trf.xlu0
        %v2234 = vpop.trf.xlu0
        %v2235 = vpop.trf.xlu0
        %v2236 = vpop.trf.xlu0
        %v2237 = vpop.trf.xlu0
        %v2238 = vpop.trf.xlu0
        %v2239 = vpop.trf.xlu0
        %v2240 = vpop.trf.xlu0
        %v2241 = vpop.trf.xlu0
        %v2242 = vpop.trf.xlu0
        %v2243 = vpop.trf.xlu0
        %v2244 = vpop.trf.xlu0
        %2245 = vxpose.xlu0.b32.start [1/16] %v1372, 128
        %2246 = vxpose.xlu0.b32.cont [2/16] 0.0, 128
        %2247 = vxpose.xlu0.b32.cont [3/16] 0.0, 128
        %2248 = vxpose.xlu0.b32.cont [4/16] 0.0, 128
        %2249 = vxpose.xlu0.b32.cont [5/16] 0.0, 128
        %2250 = vxpose.xlu0.b32.cont [6/16] 0.0, 128
        %2251 = vxpose.xlu0.b32.cont [7/16] 0.0, 128
        %2252 = vxpose.xlu0.b32.cont [8/16] 0.0, 128
        %2253 = vxpose.xlu0.b32.cont [9/16] 0.0, 128
        %2254 = vxpose.xlu0.b32.cont [10/16] 0.0, 128
        %2255 = vxpose.xlu0.b32.cont [11/16] 0.0, 128
        %2256 = vxpose.xlu0.b32.cont [12/16] 0.0, 128
        %2257 = vxpose.xlu0.b32.cont [13/16] 0.0, 128
        %2258 = vxpose.xlu0.b32.cont [14/16] 0.0, 128
        %2259 = vxpose.xlu0.b32.cont [15/16] 0.0, 128
        %2260 = vxpose.xlu0.b32.end [16/16] 0.0, 128
        %v2261 = vpop.trf.xlu0
        %v2262 = vpop.trf.xlu0
        %v2263 = vpop.trf.xlu0
        %v2264 = vpop.trf.xlu0
        %v2265 = vpop.trf.xlu0
        %v2266 = vpop.trf.xlu0
        %v2267 = vpop.trf.xlu0
        %v2268 = vpop.trf.xlu0
        %v2269 = vpop.trf.xlu0
        %v2270 = vpop.trf.xlu0
        %v2271 = vpop.trf.xlu0
        %v2272 = vpop.trf.xlu0
        %v2273 = vpop.trf.xlu0
        %v2274 = vpop.trf.xlu0
        %v2275 = vpop.trf.xlu0
        %v2276 = vpop.trf.xlu0
        %2277 = vxpose.xlu0.b32.start [1/16] %v1501, 128
        %2278 = vxpose.xlu0.b32.cont [2/16] 0.0, 128
        %2279 = vxpose.xlu0.b32.cont [3/16] 0.0, 128
        %2280 = vxpose.xlu0.b32.cont [4/16] 0.0, 128
        %2281 = vxpose.xlu0.b32.cont [5/16] 0.0, 128
        %2282 = vxpose.xlu0.b32.cont [6/16] 0.0, 128
        %2283 = vxpose.xlu0.b32.cont [7/16] 0.0, 128
        %2284 = vxpose.xlu0.b32.cont [8/16] 0.0, 128
        %2285 = vxpose.xlu0.b32.cont [9/16] 0.0, 128
        %2286 = vxpose.xlu0.b32.cont [10/16] 0.0, 128
        %2287 = vxpose.xlu0.b32.cont [11/16] 0.0, 128
        %2288 = vxpose.xlu0.b32.cont [12/16] 0.0, 128
        %2289 = vxpose.xlu0.b32.cont [13/16] 0.0, 128
        %2290 = vxpose.xlu0.b32.cont [14/16] 0.0, 128
        %2291 = vxpose.xlu0.b32.cont [15/16] 0.0, 128
        %2292 = vxpose.xlu0.b32.end [16/16] 0.0, 128
        %v2293 = vpop.trf.xlu0
        %v2294 = vpop.trf.xlu0
        %v2295 = vpop.trf.xlu0
        %v2296 = vpop.trf.xlu0
        %v2297 = vpop.trf.xlu0
        %v2298 = vpop.trf.xlu0
        %v2299 = vpop.trf.xlu0
        %v2300 = vpop.trf.xlu0
        %v2301 = vpop.trf.xlu0
        %v2302 = vpop.trf.xlu0
        %v2303 = vpop.trf.xlu0
        %v2304 = vpop.trf.xlu0
        %v2305 = vpop.trf.xlu0
        %v2306 = vpop.trf.xlu0
        %v2307 = vpop.trf.xlu0
        %v2308 = vpop.trf.xlu0
        %2309 = vxpose.xlu0.b32.start [1/16] %v1502, 128
        %2310 = vxpose.xlu0.b32.cont [2/16] 0.0, 128
        %2311 = vxpose.xlu0.b32.cont [3/16] 0.0, 128
        %2312 = vxpose.xlu0.b32.cont [4/16] 0.0, 128
        %2313 = vxpose.xlu0.b32.cont [5/16] 0.0, 128
        %2314 = vxpose.xlu0.b32.cont [6/16] 0.0, 128
        %2315 = vxpose.xlu0.b32.cont [7/16] 0.0, 128
        %2316 = vxpose.xlu0.b32.cont [8/16] 0.0, 128
        %2317 = vxpose.xlu0.b32.cont [9/16] 0.0, 128
        %2318 = vxpose.xlu0.b32.cont [10/16] 0.0, 128
        %2319 = vxpose.xlu0.b32.cont [11/16] 0.0, 128
        %2320 = vxpose.xlu0.b32.cont [12/16] 0.0, 128
        %2321 = vxpose.xlu0.b32.cont [13/16] 0.0, 128
        %2322 = vxpose.xlu0.b32.cont [14/16] 0.0, 128
        %2323 = vxpose.xlu0.b32.cont [15/16] 0.0, 128
        %2324 = vxpose.xlu0.b32.end [16/16] 0.0, 128
        %v2325 = vpop.trf.xlu0
        %v2326 = vpop.trf.xlu0
        %v2327 = vpop.trf.xlu0
        %v2328 = vpop.trf.xlu0
        %v2329 = vpop.trf.xlu0
        %v2330 = vpop.trf.xlu0
        %v2331 = vpop.trf.xlu0
        %v2332 = vpop.trf.xlu0
        %v2333 = vpop.trf.xlu0
        %v2334 = vpop.trf.xlu0
        %v2335 = vpop.trf.xlu0
        %v2336 = vpop.trf.xlu0
        %v2337 = vpop.trf.xlu0
        %v2338 = vpop.trf.xlu0
        %v2339 = vpop.trf.xlu0
        %v2340 = vpop.trf.xlu0
        %2341 = vxpose.xlu0.b32.start [1/16] %v1503, 128
        %2342 = vxpose.xlu0.b32.cont [2/16] 0.0, 128
        %2343 = vxpose.xlu0.b32.cont [3/16] 0.0, 128
        %2344 = vxpose.xlu0.b32.cont [4/16] 0.0, 128
        %2345 = vxpose.xlu0.b32.cont [5/16] 0.0, 128
        %2346 = vxpose.xlu0.b32.cont [6/16] 0.0, 128
        %2347 = vxpose.xlu0.b32.cont [7/16] 0.0, 128
        %2348 = vxpose.xlu0.b32.cont [8/16] 0.0, 128
        %2349 = vxpose.xlu0.b32.cont [9/16] 0.0, 128
        %2350 = vxpose.xlu0.b32.cont [10/16] 0.0, 128
        %2351 = vxpose.xlu0.b32.cont [11/16] 0.0, 128
        %2352 = vxpose.xlu0.b32.cont [12/16] 0.0, 128
        %2353 = vxpose.xlu0.b32.cont [13/16] 0.0, 128
        %2354 = vxpose.xlu0.b32.cont [14/16] 0.0, 128
        %2355 = vxpose.xlu0.b32.cont [15/16] 0.0, 128
        %2356 = vxpose.xlu0.b32.end [16/16] 0.0, 128
        %v2357 = vpop.trf.xlu0
        %v2358 = vpop.trf.xlu0
        %v2359 = vpop.trf.xlu0
        %v2360 = vpop.trf.xlu0
        %v2361 = vpop.trf.xlu0
        %v2362 = vpop.trf.xlu0
        %v2363 = vpop.trf.xlu0
        %v2364 = vpop.trf.xlu0
        %v2365 = vpop.trf.xlu0
        %v2366 = vpop.trf.xlu0
        %v2367 = vpop.trf.xlu0
        %v2368 = vpop.trf.xlu0
        %v2369 = vpop.trf.xlu0
        %v2370 = vpop.trf.xlu0
        %v2371 = vpop.trf.xlu0
        %v2372 = vpop.trf.xlu0
        %2373 = vxpose.xlu0.b32.start [1/16] %v1504, 128
        %2374 = vxpose.xlu0.b32.cont [2/16] 0.0, 128
        %2375 = vxpose.xlu0.b32.cont [3/16] 0.0, 128
        %2376 = vxpose.xlu0.b32.cont [4/16] 0.0, 128
        %2377 = vxpose.xlu0.b32.cont [5/16] 0.0, 128
        %2378 = vxpose.xlu0.b32.cont [6/16] 0.0, 128
        %2379 = vxpose.xlu0.b32.cont [7/16] 0.0, 128
        %2380 = vxpose.xlu0.b32.cont [8/16] 0.0, 128
        %2381 = vxpose.xlu0.b32.cont [9/16] 0.0, 128
        %2382 = vxpose.xlu0.b32.cont [10/16] 0.0, 128
        %2383 = vxpose.xlu0.b32.cont [11/16] 0.0, 128
        %2384 = vxpose.xlu0.b32.cont [12/16] 0.0, 128
        %2385 = vxpose.xlu0.b32.cont [13/16] 0.0, 128
        %2386 = vxpose.xlu0.b32.cont [14/16] 0.0, 128
        %2387 = vxpose.xlu0.b32.cont [15/16] 0.0, 128
        %2388 = vxpose.xlu0.b32.end [16/16] 0.0, 128
        %v2389 = vpop.trf.xlu0
        %v2390 = vpop.trf.xlu0
        %v2391 = vpop.trf.xlu0
        %v2392 = vpop.trf.xlu0
        %v2393 = vpop.trf.xlu0
        %v2394 = vpop.trf.xlu0
        %v2395 = vpop.trf.xlu0
        %v2396 = vpop.trf.xlu0
        %v2397 = vpop.trf.xlu0
        %v2398 = vpop.trf.xlu0
        %v2399 = vpop.trf.xlu0
        %v2400 = vpop.trf.xlu0
        %v2401 = vpop.trf.xlu0
        %v2402 = vpop.trf.xlu0
        %v2403 = vpop.trf.xlu0
        %v2404 = vpop.trf.xlu0
        %2405 = vxpose.xlu0.b32.start [1/16] %v1505, 128
        %2406 = vxpose.xlu0.b32.cont [2/16] 0.0, 128
        %2407 = vxpose.xlu0.b32.cont [3/16] 0.0, 128
        %2408 = vxpose.xlu0.b32.cont [4/16] 0.0, 128
        %2409 = vxpose.xlu0.b32.cont [5/16] 0.0, 128
        %2410 = vxpose.xlu0.b32.cont [6/16] 0.0, 128
        %2411 = vxpose.xlu0.b32.cont [7/16] 0.0, 128
        %2412 = vxpose.xlu0.b32.cont [8/16] 0.0, 128
        %2413 = vxpose.xlu0.b32.cont [9/16] 0.0, 128
        %2414 = vxpose.xlu0.b32.cont [10/16] 0.0, 128
        %2415 = vxpose.xlu0.b32.cont [11/16] 0.0, 128
        %2416 = vxpose.xlu0.b32.cont [12/16] 0.0, 128
        %2417 = vxpose.xlu0.b32.cont [13/16] 0.0, 128
        %2418 = vxpose.xlu0.b32.cont [14/16] 0.0, 128
        %2419 = vxpose.xlu0.b32.cont [15/16] 0.0, 128
        %2420 = vxpose.xlu0.b32.end [16/16] 0.0, 128
        %v2421 = vpop.trf.xlu0
        %v2422 = vpop.trf.xlu0
        %v2423 = vpop.trf.xlu0
        %v2424 = vpop.trf.xlu0
        %v2425 = vpop.trf.xlu0
        %v2426 = vpop.trf.xlu0
        %v2427 = vpop.trf.xlu0
        %v2428 = vpop.trf.xlu0
        %v2429 = vpop.trf.xlu0
        %v2430 = vpop.trf.xlu0
        %v2431 = vpop.trf.xlu0
        %v2432 = vpop.trf.xlu0
        %v2433 = vpop.trf.xlu0
        %v2434 = vpop.trf.xlu0
        %v2435 = vpop.trf.xlu0
        %v2436 = vpop.trf.xlu0
        %2437 = vxpose.xlu0.b32.start [1/16] %v1506, 128
        %2438 = vxpose.xlu0.b32.cont [2/16] 0.0, 128
        %2439 = vxpose.xlu0.b32.cont [3/16] 0.0, 128
        %2440 = vxpose.xlu0.b32.cont [4/16] 0.0, 128
        %2441 = vxpose.xlu0.b32.cont [5/16] 0.0, 128
        %2442 = vxpose.xlu0.b32.cont [6/16] 0.0, 128
        %2443 = vxpose.xlu0.b32.cont [7/16] 0.0, 128
        %2444 = vxpose.xlu0.b32.cont [8/16] 0.0, 128
        %2445 = vxpose.xlu0.b32.cont [9/16] 0.0, 128
        %2446 = vxpose.xlu0.b32.cont [10/16] 0.0, 128
        %2447 = vxpose.xlu0.b32.cont [11/16] 0.0, 128
        %2448 = vxpose.xlu0.b32.cont [12/16] 0.0, 128
        %2449 = vxpose.xlu0.b32.cont [13/16] 0.0, 128
        %2450 = vxpose.xlu0.b32.cont [14/16] 0.0, 128
        %2451 = vxpose.xlu0.b32.cont [15/16] 0.0, 128
        %2452 = vxpose.xlu0.b32.end [16/16] 0.0, 128
        %v2453 = vpop.trf.xlu0
        %v2454 = vpop.trf.xlu0
        %v2455 = vpop.trf.xlu0
        %v2456 = vpop.trf.xlu0
        %v2457 = vpop.trf.xlu0
        %v2458 = vpop.trf.xlu0
        %v2459 = vpop.trf.xlu0
        %v2460 = vpop.trf.xlu0
        %v2461 = vpop.trf.xlu0
        %v2462 = vpop.trf.xlu0
        %v2463 = vpop.trf.xlu0
        %v2464 = vpop.trf.xlu0
        %v2465 = vpop.trf.xlu0
        %v2466 = vpop.trf.xlu0
        %v2467 = vpop.trf.xlu0
        %v2468 = vpop.trf.xlu0
        %2469 = vxpose.xlu0.b32.start [1/16] %v1507, 128
        %2470 = vxpose.xlu0.b32.cont [2/16] 0.0, 128
        %2471 = vxpose.xlu0.b32.cont [3/16] 0.0, 128
        %2472 = vxpose.xlu0.b32.cont [4/16] 0.0, 128
        %2473 = vxpose.xlu0.b32.cont [5/16] 0.0, 128
        %2474 = vxpose.xlu0.b32.cont [6/16] 0.0, 128
        %2475 = vxpose.xlu0.b32.cont [7/16] 0.0, 128
        %2476 = vxpose.xlu0.b32.cont [8/16] 0.0, 128
        %2477 = vxpose.xlu0.b32.cont [9/16] 0.0, 128
        %2478 = vxpose.xlu0.b32.cont [10/16] 0.0, 128
        %2479 = vxpose.xlu0.b32.cont [11/16] 0.0, 128
        %2480 = vxpose.xlu0.b32.cont [12/16] 0.0, 128
        %2481 = vxpose.xlu0.b32.cont [13/16] 0.0, 128
        %2482 = vxpose.xlu0.b32.cont [14/16] 0.0, 128
        %2483 = vxpose.xlu0.b32.cont [15/16] 0.0, 128
        %2484 = vxpose.xlu0.b32.end [16/16] 0.0, 128
        %v2485 = vpop.trf.xlu0
        %v2486 = vpop.trf.xlu0
        %v2487 = vpop.trf.xlu0
        %v2488 = vpop.trf.xlu0
        %v2489 = vpop.trf.xlu0
        %v2490 = vpop.trf.xlu0
        %v2491 = vpop.trf.xlu0
        %v2492 = vpop.trf.xlu0
        %v2493 = vpop.trf.xlu0
        %v2494 = vpop.trf.xlu0
        %v2495 = vpop.trf.xlu0
        %v2496 = vpop.trf.xlu0
        %v2497 = vpop.trf.xlu0
        %v2498 = vpop.trf.xlu0
        %v2499 = vpop.trf.xlu0
        %v2500 = vpop.trf.xlu0
        %2501 = vxpose.xlu0.b32.start [1/16] %v1508, 128
        %2502 = vxpose.xlu0.b32.cont [2/16] 0.0, 128
        %2503 = vxpose.xlu0.b32.cont [3/16] 0.0, 128
        %2504 = vxpose.xlu0.b32.cont [4/16] 0.0, 128
        %2505 = vxpose.xlu0.b32.cont [5/16] 0.0, 128
        %2506 = vxpose.xlu0.b32.cont [6/16] 0.0, 128
        %2507 = vxpose.xlu0.b32.cont [7/16] 0.0, 128
        %2508 = vxpose.xlu0.b32.cont [8/16] 0.0, 128
        %2509 = vxpose.xlu0.b32.cont [9/16] 0.0, 128
        %2510 = vxpose.xlu0.b32.cont [10/16] 0.0, 128
        %2511 = vxpose.xlu0.b32.cont [11/16] 0.0, 128
        %2512 = vxpose.xlu0.b32.cont [12/16] 0.0, 128
        %2513 = vxpose.xlu0.b32.cont [13/16] 0.0, 128
        %2514 = vxpose.xlu0.b32.cont [14/16] 0.0, 128
        %2515 = vxpose.xlu0.b32.cont [15/16] 0.0, 128
        %2516 = vxpose.xlu0.b32.end [16/16] 0.0, 128
        %v2517 = vpop.trf.xlu0
        %v2518 = vpop.trf.xlu0
        %v2519 = vpop.trf.xlu0
        %v2520 = vpop.trf.xlu0
        %v2521 = vpop.trf.xlu0
        %v2522 = vpop.trf.xlu0
        %v2523 = vpop.trf.xlu0
        %v2524 = vpop.trf.xlu0
        %v2525 = vpop.trf.xlu0
        %v2526 = vpop.trf.xlu0
        %v2527 = vpop.trf.xlu0
        %v2528 = vpop.trf.xlu0
        %v2529 = vpop.trf.xlu0
        %v2530 = vpop.trf.xlu0
        %v2531 = vpop.trf.xlu0
        %v2532 = vpop.trf.xlu0
        %v2533 = vcombine.low %v1525, %v1589
        %v2535 = vunpack.c.l.s4 1983009808
        %v2536 = vunpack.c.0.s8 %v2535
        %v2537 = vlaneseq
        %v2538 = vshrl.u32 %v2537, 7
        %v2539 = vsub.s32 %v2536, %v2538
        %v2540 = vrot.slane %v2533, %v2539
        %v2541 = vcombine.low %v1557, %v1621
        %v2543 = vunpack.c.l.s4 1983009808
        %v2544 = vunpack.c.0.s8 %v2543
        %v2545 = vlaneseq
        %v2546 = vshrl.u32 %v2545, 7
        %v2547 = vsub.s32 %v2544, %v2546
        %v2548 = vrot.slane %v2541, %v2547
        %v2549 = vcombine.low %v1653, %v1717
        %v2551 = vunpack.c.l.s4 1983009808
        %v2552 = vunpack.c.0.s8 %v2551
        %v2553 = vlaneseq
        %v2554 = vshrl.u32 %v2553, 7
        %v2555 = vsub.s32 %v2552, %v2554
        %v2556 = vrot.slane %v2549, %v2555
        %v2557 = vcombine.low %v1685, %v1749
        %v2559 = vunpack.c.l.s4 1983009808
        %v2560 = vunpack.c.0.s8 %v2559
        %v2561 = vlaneseq
        %v2562 = vshrl.u32 %v2561, 7
        %v2563 = vsub.s32 %v2560, %v2562
        %v2564 = vrot.slane %v2557, %v2563
        %v2565 = vcombine.low %v2540, %v2548
        %v2567 = vunpack.c.l.s4 1934713408
        %v2568 = vunpack.c.0.s8 %v2567
        %v2569 = vlaneseq
        %v2570 = vshrl.u32 %v2569, 7
        %v2571 = vsub.s32 %v2568, %v2570
        %v2572 = vrot.slane %v2565, %v2571
        %v2573 = vcombine.low %v2556, %v2564
        %v2575 = vunpack.c.l.s4 1934713408
        %v2576 = vunpack.c.0.s8 %v2575
        %v2577 = vlaneseq
        %v2578 = vshrl.u32 %v2577, 7
        %v2579 = vsub.s32 %v2576, %v2578
        %v2580 = vrot.slane %v2573, %v2579
        %v2581 = vcombine.low %v2572, %v2580
        %v2582 = vcombine.low %v1781, %v1845
        %v2584 = vunpack.c.l.s4 1983009808
        %v2585 = vunpack.c.0.s8 %v2584
        %v2586 = vlaneseq
        %v2587 = vshrl.u32 %v2586, 7
        %v2588 = vsub.s32 %v2585, %v2587
        %v2589 = vrot.slane %v2582, %v2588
        %v2590 = vcombine.low %v1813, %v1877
        %v2592 = vunpack.c.l.s4 1983009808
        %v2593 = vunpack.c.0.s8 %v2592
        %v2594 = vlaneseq
        %v2595 = vshrl.u32 %v2594, 7
        %v2596 = vsub.s32 %v2593, %v2595
        %v2597 = vrot.slane %v2590, %v2596
        %v2598 = vcombine.low %v1909, %v1973
        %v2600 = vunpack.c.l.s4 1983009808
        %v2601 = vunpack.c.0.s8 %v2600
        %v2602 = vlaneseq
        %v2603 = vshrl.u32 %v2602, 7
        %v2604 = vsub.s32 %v2601, %v2603
        %v2605 = vrot.slane %v2598, %v2604
        %v2606 = vcombine.low %v1941, %v2005
        %v2608 = vunpack.c.l.s4 1983009808
        %v2609 = vunpack.c.0.s8 %v2608
        %v2610 = vlaneseq
        %v2611 = vshrl.u32 %v2610, 7
        %v2612 = vsub.s32 %v2609, %v2611
        %v2613 = vrot.slane %v2606, %v2612
        %v2614 = vcombine.low %v2589, %v2597
        %v2616 = vunpack.c.l.s4 1934713408
        %v2617 = vunpack.c.0.s8 %v2616
        %v2618 = vlaneseq
        %v2619 = vshrl.u32 %v2618, 7
        %v2620 = vsub.s32 %v2617, %v2619
        %v2621 = vrot.slane %v2614, %v2620
        %v2622 = vcombine.low %v2605, %v2613
        %v2624 = vunpack.c.l.s4 1934713408
        %v2625 = vunpack.c.0.s8 %v2624
        %v2626 = vlaneseq
        %v2627 = vshrl.u32 %v2626, 7
        %v2628 = vsub.s32 %v2625, %v2627
        %v2629 = vrot.slane %v2622, %v2628
        %v2630 = vcombine.low %v2621, %v2629
        %v2631 = vcombine.low %v2037, %v2101
        %v2633 = vunpack.c.l.s4 1983009808
        %v2634 = vunpack.c.0.s8 %v2633
        %v2635 = vlaneseq
        %v2636 = vshrl.u32 %v2635, 7
        %v2637 = vsub.s32 %v2634, %v2636
        %v2638 = vrot.slane %v2631, %v2637
        %v2639 = vcombine.low %v2069, %v2133
        %v2641 = vunpack.c.l.s4 1983009808
        %v2642 = vunpack.c.0.s8 %v2641
        %v2643 = vlaneseq
        %v2644 = vshrl.u32 %v2643, 7
        %v2645 = vsub.s32 %v2642, %v2644
        %v2646 = vrot.slane %v2639, %v2645
        %v2647 = vcombine.low %v2165, %v2229
        %v2649 = vunpack.c.l.s4 1983009808
        %v2650 = vunpack.c.0.s8 %v2649
        %v2651 = vlaneseq
        %v2652 = vshrl.u32 %v2651, 7
        %v2653 = vsub.s32 %v2650, %v2652
        %v2654 = vrot.slane %v2647, %v2653
        %v2655 = vcombine.low %v2197, %v2261
        %v2657 = vunpack.c.l.s4 1983009808
        %v2658 = vunpack.c.0.s8 %v2657
        %v2659 = vlaneseq
        %v2660 = vshrl.u32 %v2659, 7
        %v2661 = vsub.s32 %v2658, %v2660
        %v2662 = vrot.slane %v2655, %v2661
        %v2663 = vcombine.low %v2638, %v2646
        %v2665 = vunpack.c.l.s4 1934713408
        %v2666 = vunpack.c.0.s8 %v2665
        %v2667 = vlaneseq
        %v2668 = vshrl.u32 %v2667, 7
        %v2669 = vsub.s32 %v2666, %v2668
        %v2670 = vrot.slane %v2663, %v2669
        %v2671 = vcombine.low %v2654, %v2662
        %v2673 = vunpack.c.l.s4 1934713408
        %v2674 = vunpack.c.0.s8 %v2673
        %v2675 = vlaneseq
        %v2676 = vshrl.u32 %v2675, 7
        %v2677 = vsub.s32 %v2674, %v2676
        %v2678 = vrot.slane %v2671, %v2677
        %v2679 = vcombine.low %v2670, %v2678
        %v2680 = vcombine.low %v2293, %v2357
        %v2682 = vunpack.c.l.s4 1983009808
        %v2683 = vunpack.c.0.s8 %v2682
        %v2684 = vlaneseq
        %v2685 = vshrl.u32 %v2684, 7
        %v2686 = vsub.s32 %v2683, %v2685
        %v2687 = vrot.slane %v2680, %v2686
        %v2688 = vcombine.low %v2325, %v2389
        %v2690 = vunpack.c.l.s4 1983009808
        %v2691 = vunpack.c.0.s8 %v2690
        %v2692 = vlaneseq
        %v2693 = vshrl.u32 %v2692, 7
        %v2694 = vsub.s32 %v2691, %v2693
        %v2695 = vrot.slane %v2688, %v2694
        %v2696 = vcombine.low %v2421, %v2485
        %v2698 = vunpack.c.l.s4 1983009808
        %v2699 = vunpack.c.0.s8 %v2698
        %v2700 = vlaneseq
        %v2701 = vshrl.u32 %v2700, 7
        %v2702 = vsub.s32 %v2699, %v2701
        %v2703 = vrot.slane %v2696, %v2702
        %v2704 = vcombine.low %v2453, %v2517
        %v2706 = vunpack.c.l.s4 1983009808
        %v2707 = vunpack.c.0.s8 %v2706
        %v2708 = vlaneseq
        %v2709 = vshrl.u32 %v2708, 7
        %v2710 = vsub.s32 %v2707, %v2709
        %v2711 = vrot.slane %v2704, %v2710
        %v2712 = vcombine.low %v2687, %v2695
        %v2714 = vunpack.c.l.s4 1934713408
        %v2715 = vunpack.c.0.s8 %v2714
        %v2716 = vlaneseq
        %v2717 = vshrl.u32 %v2716, 7
        %v2718 = vsub.s32 %v2715, %v2717
        %v2719 = vrot.slane %v2712, %v2718
        %v2720 = vcombine.low %v2703, %v2711
        %v2722 = vunpack.c.l.s4 1934713408
        %v2723 = vunpack.c.0.s8 %v2722
        %v2724 = vlaneseq
        %v2725 = vshrl.u32 %v2724, 7
        %v2726 = vsub.s32 %v2723, %v2725
        %v2727 = vrot.slane %v2720, %v2726
        %v2728 = vcombine.low %v2719, %v2727
        %v2729 = vcombine.low %v577, %v591
        %v2730 = vcombine.low %v599, %v601
        %v2731 = vcombine.low %v584, %v598
        %v2732 = vcombine.low %v600, %v602
        %v2734 = vunpack.c.l.s4 1966171168
        %v2735 = vunpack.c.0.s8 %v2734
        %v2736 = vlaneseq
        %v2737 = vshrl.u32 %v2736, 7
        %v2738 = vsub.s32 %v2735, %v2737
        %v2739 = vrot.slane %v2729, %v2738
        %v2741 = vunpack.c.l.s4 1966171168
        %v2742 = vunpack.c.0.s8 %v2741
        %v2743 = vlaneseq
        %v2744 = vshrl.u32 %v2743, 7
        %v2745 = vsub.s32 %v2742, %v2744
        %v2746 = vrot.slane %v2730, %v2745
        %v2748 = vunpack.c.l.s4 1966171168
        %v2749 = vunpack.c.0.s8 %v2748
        %v2750 = vlaneseq
        %v2751 = vshrl.u32 %v2750, 7
        %v2752 = vsub.s32 %v2749, %v2751
        %v2753 = vrot.slane %v2731, %v2752
        %v2755 = vunpack.c.l.s4 1966171168
        %v2756 = vunpack.c.0.s8 %v2755
        %v2757 = vlaneseq
        %v2758 = vshrl.u32 %v2757, 7
        %v2759 = vsub.s32 %v2756, %v2758
        %v2760 = vrot.slane %v2732, %v2759
        %v2761 = vcombine.low %v2739, %v2746
        %v2762 = vcombine.low %v2753, %v2760
        %v2764 = vunpack.c.l.s4 1966171168
        %v2765 = vunpack.c.0.s8 %v2764
        %v2766 = vlaneseq
        %v2767 = vshrl.u32 %v2766, 7
        %v2768 = vsub.s32 %v2765, %v2767
        %v2769 = vrot.slane %v2761, %v2768
        %v2771 = vunpack.c.l.s4 1966171168
        %v2772 = vunpack.c.0.s8 %v2771
        %v2773 = vlaneseq
        %v2774 = vshrl.u32 %v2773, 7
        %v2775 = vsub.s32 %v2772, %v2774
        %v2776 = vrot.slane %v2762, %v2775
        %v2777 = vcombine.low %v2769, %v2776
        %v2778 = vsel %vm439, %v2777, 0
        %2780 = vmatprep.subr.mxu0 0.0
        %2781 = vmatpush1.msra.mxu0 %v2581
        %2782 = vmatprep.subr.mxu0 0.0
        %2783 = vmatpush1.msra.mxu0 %v2630
        %2784 = vmatprep.subr.mxu0 0.0
        %2785 = vmatpush1.msra.mxu0 %v2679
        %2786 = vmatprep.subr.mxu0 0.0
        %2787 = vmatpush1.msra.mxu0 %v2728
        %2788 = vmatprep.subr.mxu0 0.0
        %2789 = vmatpush1.msra.mxu0 0.0
        %2790 = vmatprep.subr.mxu0 0.0
        %2791 = vmatpush1.msra.mxu0 0.0
        %2792 = vmatprep.subr.mxu0 0.0
        %2793 = vmatpush1.msra.mxu0 0.0
        %2794 = vmatprep.subr.mxu0 0.0
        %2795 = vmatpush1.msra.mxu0 0.0
        %2796 = vmatprep.subr.mxu0 0.0
        %2797 = vmatpush1.msra.mxu0 0.0
        %2798 = vmatprep.subr.mxu0 0.0
        %2799 = vmatpush1.msra.mxu0 0.0
        %2800 = vmatprep.subr.mxu0 0.0
        %2801 = vmatpush1.msra.mxu0 0.0
        %2802 = vmatprep.subr.mxu0 0.0
        %2803 = vmatpush1.msra.mxu0 0.0
        %2804 = vmatprep.subr.mxu0 0.0
        %2805 = vmatpush1.msra.mxu0 0.0
        %2806 = vmatprep.subr.mxu0 0.0
        %2807 = vmatpush1.msra.mxu0 0.0
        %2808 = vmatprep.subr.mxu0 0.0
        %2809 = vmatpush1.msra.mxu0 0.0
        %2810 = vmatprep.subr.mxu0 0.0
        %2811 = vmatpush1.msra.mxu0 0.0
        %2812 = vmatprep.subr.mxu0 0.0
        %2813 = vmatpush1.msra.mxu0 0.0
        %2814 = vmatprep.subr.mxu0 0.0
        %2815 = vmatpush1.msra.mxu0 0.0
        %2816 = vmatprep.subr.mxu0 0.0
        %2817 = vmatpush1.msra.mxu0 0.0
        %2818 = vmatprep.subr.mxu0 0.0
        %2819 = vmatpush1.msra.mxu0 0.0
        %2820 = vmatprep.subr.mxu0 0.0
        %2821 = vmatpush1.msra.mxu0 0.0
        %2822 = vmatprep.subr.mxu0 0.0
        %2823 = vmatpush1.msra.mxu0 0.0
        %2824 = vmatprep.subr.mxu0 0.0
        %2825 = vmatpush1.msra.mxu0 0.0
        %2826 = vmatprep.subr.mxu0 0.0
        %2827 = vmatpush1.msra.mxu0 0.0
        %2828 = vmatprep.subr.mxu0 0.0
        %2829 = vmatpush1.msra.mxu0 0.0
        %2830 = vmatprep.subr.mxu0 0.0
        %2831 = vmatpush1.msra.mxu0 0.0
        %2832 = vmatprep.subr.mxu0 0.0
        %2833 = vmatpush1.msra.mxu0 0.0
        %2834 = vmatprep.subr.mxu0 0.0
        %2835 = vmatpush1.msra.mxu0 0.0
        %2836 = vmatprep.subr.mxu0 0.0
        %2837 = vmatpush1.msra.mxu0 0.0
        %2838 = vmatprep.subr.mxu0 0.0
        %2839 = vmatpush1.msra.mxu0 0.0
        %2840 = vmatprep.subr.mxu0 0.0
        %2841 = vmatpush1.msra.mxu0 0.0
        %2842 = vmatprep.subr.mxu0 0.0
        %2843 = vmatpush1.msra.mxu0 0.0
        %2844 = vmatprep.mubr.f32.mxu0 0.0
        %2845 = vmatmul.mubr.f32.gmra.mrb[0].mxu0 %v2778
        %v2846 = vpop.f32.mrb[0].mxu0
        %v2847 = vadd.f32 0.0, %v2846
        %v2848 = vpop.f32.mrb[0].mxu0
        %2849 = vdwg.mxu0
        %vm2850 = vcmask 64512
        %v2851 = vsel %vm2850, %v2847, -inf
        %2852 = vmax.xlane.f32.xlu0 %v2851
        %v2853 = vpop.xlane.xlu0 %2852
        %v2854 = vsub.f32 %v2847, %v2853
        %v2855 = vmul.f32 %v2854, 1.442695
        %v2856 = vpow.pop %v2855
        %v2857 = vsel %vm2850, %v2856, 0.0
        %2858 = vadd.xlane.f32.xlu0 %v2857
        %v2859 = vpop.xlane.xlu0 %2858
        %v2860 = vrcp.pop %v2859
        %v2861 = vmul.f32 %v2856, %v2860
        %2862 = vrot.lane.b32.xlu0 %v656, 64
        %v2863 = vpop.permute.xlu0 %2862
        %2864 = vrot.lane.b32.xlu0 %v660, 64
        %v2865 = vpop.permute.xlu0 %2864
        %2866 = vrot.lane.b32.xlu0 %v664, 64
        %v2867 = vpop.permute.xlu0 %2866
        %2868 = vrot.lane.b32.xlu0 %v668, 64
        %v2869 = vpop.permute.xlu0 %2868
        %2870 = vrot.lane.b32.xlu0 %v672, 64
        %v2871 = vpop.permute.xlu0 %2870
        %2872 = vrot.lane.b32.xlu0 %v676, 64
        %v2873 = vpop.permute.xlu0 %2872
        %2874 = vrot.lane.b32.xlu0 %v680, 64
        %v2875 = vpop.permute.xlu0 %2874
        %2876 = vrot.lane.b32.xlu0 %v684, 64
        %v2877 = vpop.permute.xlu0 %2876
        %2886 = vxpose.xlu0.b32.start [1/16] %v2863, 128
        %2887 = vxpose.xlu0.b32.cont [2/16] 0.0, 128
        %2888 = vxpose.xlu0.b32.cont [3/16] 0.0, 128
        %2889 = vxpose.xlu0.b32.cont [4/16] 0.0, 128
        %2890 = vxpose.xlu0.b32.cont [5/16] 0.0, 128
        %2891 = vxpose.xlu0.b32.cont [6/16] 0.0, 128
        %2892 = vxpose.xlu0.b32.cont [7/16] 0.0, 128
        %2893 = vxpose.xlu0.b32.cont [8/16] 0.0, 128
        %2894 = vxpose.xlu0.b32.cont [9/16] 0.0, 128
        %2895 = vxpose.xlu0.b32.cont [10/16] 0.0, 128
        %2896 = vxpose.xlu0.b32.cont [11/16] 0.0, 128
        %2897 = vxpose.xlu0.b32.cont [12/16] 0.0, 128
        %2898 = vxpose.xlu0.b32.cont [13/16] 0.0, 128
        %2899 = vxpose.xlu0.b32.cont [14/16] 0.0, 128
        %2900 = vxpose.xlu0.b32.cont [15/16] 0.0, 128
        %2901 = vxpose.xlu0.b32.end [16/16] 0.0, 128
        %v2902 = vpop.trf.xlu0
        %v2903 = vpop.trf.xlu0
        %v2904 = vpop.trf.xlu0
        %v2905 = vpop.trf.xlu0
        %v2906 = vpop.trf.xlu0
        %v2907 = vpop.trf.xlu0
        %v2908 = vpop.trf.xlu0
        %v2909 = vpop.trf.xlu0
        %v2910 = vpop.trf.xlu0
        %v2911 = vpop.trf.xlu0
        %v2912 = vpop.trf.xlu0
        %v2913 = vpop.trf.xlu0
        %v2914 = vpop.trf.xlu0
        %v2915 = vpop.trf.xlu0
        %v2916 = vpop.trf.xlu0
        %v2917 = vpop.trf.xlu0
        %2918 = vxpose.xlu0.b32.start [1/16] %v2865, 128
        %2919 = vxpose.xlu0.b32.cont [2/16] 0.0, 128
        %2920 = vxpose.xlu0.b32.cont [3/16] 0.0, 128
        %2921 = vxpose.xlu0.b32.cont [4/16] 0.0, 128
        %2922 = vxpose.xlu0.b32.cont [5/16] 0.0, 128
        %2923 = vxpose.xlu0.b32.cont [6/16] 0.0, 128
        %2924 = vxpose.xlu0.b32.cont [7/16] 0.0, 128
        %2925 = vxpose.xlu0.b32.cont [8/16] 0.0, 128
        %2926 = vxpose.xlu0.b32.cont [9/16] 0.0, 128
        %2927 = vxpose.xlu0.b32.cont [10/16] 0.0, 128
        %2928 = vxpose.xlu0.b32.cont [11/16] 0.0, 128
        %2929 = vxpose.xlu0.b32.cont [12/16] 0.0, 128
        %2930 = vxpose.xlu0.b32.cont [13/16] 0.0, 128
        %2931 = vxpose.xlu0.b32.cont [14/16] 0.0, 128
        %2932 = vxpose.xlu0.b32.cont [15/16] 0.0, 128
        %2933 = vxpose.xlu0.b32.end [16/16] 0.0, 128
        %v2934 = vpop.trf.xlu0
        %v2935 = vpop.trf.xlu0
        %v2936 = vpop.trf.xlu0
        %v2937 = vpop.trf.xlu0
        %v2938 = vpop.trf.xlu0
        %v2939 = vpop.trf.xlu0
        %v2940 = vpop.trf.xlu0
        %v2941 = vpop.trf.xlu0
        %v2942 = vpop.trf.xlu0
        %v2943 = vpop.trf.xlu0
        %v2944 = vpop.trf.xlu0
        %v2945 = vpop.trf.xlu0
        %v2946 = vpop.trf.xlu0
        %v2947 = vpop.trf.xlu0
        %v2948 = vpop.trf.xlu0
        %v2949 = vpop.trf.xlu0
        %2950 = vxpose.xlu0.b32.start [1/16] %v2867, 128
        %2951 = vxpose.xlu0.b32.cont [2/16] 0.0, 128
        %2952 = vxpose.xlu0.b32.cont [3/16] 0.0, 128
        %2953 = vxpose.xlu0.b32.cont [4/16] 0.0, 128
        %2954 = vxpose.xlu0.b32.cont [5/16] 0.0, 128
        %2955 = vxpose.xlu0.b32.cont [6/16] 0.0, 128
        %2956 = vxpose.xlu0.b32.cont [7/16] 0.0, 128
        %2957 = vxpose.xlu0.b32.cont [8/16] 0.0, 128
        %2958 = vxpose.xlu0.b32.cont [9/16] 0.0, 128
        %2959 = vxpose.xlu0.b32.cont [10/16] 0.0, 128
        %2960 = vxpose.xlu0.b32.cont [11/16] 0.0, 128
        %2961 = vxpose.xlu0.b32.cont [12/16] 0.0, 128
        %2962 = vxpose.xlu0.b32.cont [13/16] 0.0, 128
        %2963 = vxpose.xlu0.b32.cont [14/16] 0.0, 128
        %2964 = vxpose.xlu0.b32.cont [15/16] 0.0, 128
        %2965 = vxpose.xlu0.b32.end [16/16] 0.0, 128
        %v2966 = vpop.trf.xlu0
        %v2967 = vpop.trf.xlu0
        %v2968 = vpop.trf.xlu0
        %v2969 = vpop.trf.xlu0
        %v2970 = vpop.trf.xlu0
        %v2971 = vpop.trf.xlu0
        %v2972 = vpop.trf.xlu0
        %v2973 = vpop.trf.xlu0
        %v2974 = vpop.trf.xlu0
        %v2975 = vpop.trf.xlu0
        %v2976 = vpop.trf.xlu0
        %v2977 = vpop.trf.xlu0
        %v2978 = vpop.trf.xlu0
        %v2979 = vpop.trf.xlu0
        %v2980 = vpop.trf.xlu0
        %v2981 = vpop.trf.xlu0
        %2982 = vxpose.xlu0.b32.start [1/16] %v2869, 128
        %2983 = vxpose.xlu0.b32.cont [2/16] 0.0, 128
        %2984 = vxpose.xlu0.b32.cont [3/16] 0.0, 128
        %2985 = vxpose.xlu0.b32.cont [4/16] 0.0, 128
        %2986 = vxpose.xlu0.b32.cont [5/16] 0.0, 128
        %2987 = vxpose.xlu0.b32.cont [6/16] 0.0, 128
        %2988 = vxpose.xlu0.b32.cont [7/16] 0.0, 128
        %2989 = vxpose.xlu0.b32.cont [8/16] 0.0, 128
        %2990 = vxpose.xlu0.b32.cont [9/16] 0.0, 128
        %2991 = vxpose.xlu0.b32.cont [10/16] 0.0, 128
        %2992 = vxpose.xlu0.b32.cont [11/16] 0.0, 128
        %2993 = vxpose.xlu0.b32.cont [12/16] 0.0, 128
        %2994 = vxpose.xlu0.b32.cont [13/16] 0.0, 128
        %2995 = vxpose.xlu0.b32.cont [14/16] 0.0, 128
        %2996 = vxpose.xlu0.b32.cont [15/16] 0.0, 128
        %2997 = vxpose.xlu0.b32.end [16/16] 0.0, 128
        %v2998 = vpop.trf.xlu0
        %v2999 = vpop.trf.xlu0
        %v3000 = vpop.trf.xlu0
        %v3001 = vpop.trf.xlu0
        %v3002 = vpop.trf.xlu0
        %v3003 = vpop.trf.xlu0
        %v3004 = vpop.trf.xlu0
        %v3005 = vpop.trf.xlu0
        %v3006 = vpop.trf.xlu0
        %v3007 = vpop.trf.xlu0
        %v3008 = vpop.trf.xlu0
        %v3009 = vpop.trf.xlu0
        %v3010 = vpop.trf.xlu0
        %v3011 = vpop.trf.xlu0
        %v3012 = vpop.trf.xlu0
        %v3013 = vpop.trf.xlu0
        %3014 = vxpose.xlu0.b32.start [1/16] %v2871, 128
        %3015 = vxpose.xlu0.b32.cont [2/16] 0.0, 128
        %3016 = vxpose.xlu0.b32.cont [3/16] 0.0, 128
        %3017 = vxpose.xlu0.b32.cont [4/16] 0.0, 128
        %3018 = vxpose.xlu0.b32.cont [5/16] 0.0, 128
        %3019 = vxpose.xlu0.b32.cont [6/16] 0.0, 128
        %3020 = vxpose.xlu0.b32.cont [7/16] 0.0, 128
        %3021 = vxpose.xlu0.b32.cont [8/16] 0.0, 128
        %3022 = vxpose.xlu0.b32.cont [9/16] 0.0, 128
        %3023 = vxpose.xlu0.b32.cont [10/16] 0.0, 128
        %3024 = vxpose.xlu0.b32.cont [11/16] 0.0, 128
        %3025 = vxpose.xlu0.b32.cont [12/16] 0.0, 128
        %3026 = vxpose.xlu0.b32.cont [13/16] 0.0, 128
        %3027 = vxpose.xlu0.b32.cont [14/16] 0.0, 128
        %3028 = vxpose.xlu0.b32.cont [15/16] 0.0, 128
        %3029 = vxpose.xlu0.b32.end [16/16] 0.0, 128
        %v3030 = vpop.trf.xlu0
        %v3031 = vpop.trf.xlu0
        %v3032 = vpop.trf.xlu0
        %v3033 = vpop.trf.xlu0
        %v3034 = vpop.trf.xlu0
        %v3035 = vpop.trf.xlu0
        %v3036 = vpop.trf.xlu0
        %v3037 = vpop.trf.xlu0
        %v3038 = vpop.trf.xlu0
        %v3039 = vpop.trf.xlu0
        %v3040 = vpop.trf.xlu0
        %v3041 = vpop.trf.xlu0
        %v3042 = vpop.trf.xlu0
        %v3043 = vpop.trf.xlu0
        %v3044 = vpop.trf.xlu0
        %v3045 = vpop.trf.xlu0
        %3046 = vxpose.xlu0.b32.start [1/16] %v2873, 128
        %3047 = vxpose.xlu0.b32.cont [2/16] 0.0, 128
        %3048 = vxpose.xlu0.b32.cont [3/16] 0.0, 128
        %3049 = vxpose.xlu0.b32.cont [4/16] 0.0, 128
        %3050 = vxpose.xlu0.b32.cont [5/16] 0.0, 128
        %3051 = vxpose.xlu0.b32.cont [6/16] 0.0, 128
        %3052 = vxpose.xlu0.b32.cont [7/16] 0.0, 128
        %3053 = vxpose.xlu0.b32.cont [8/16] 0.0, 128
        %3054 = vxpose.xlu0.b32.cont [9/16] 0.0, 128
        %3055 = vxpose.xlu0.b32.cont [10/16] 0.0, 128
        %3056 = vxpose.xlu0.b32.cont [11/16] 0.0, 128
        %3057 = vxpose.xlu0.b32.cont [12/16] 0.0, 128
        %3058 = vxpose.xlu0.b32.cont [13/16] 0.0, 128
        %3059 = vxpose.xlu0.b32.cont [14/16] 0.0, 128
        %3060 = vxpose.xlu0.b32.cont [15/16] 0.0, 128
        %3061 = vxpose.xlu0.b32.end [16/16] 0.0, 128
        %v3062 = vpop.trf.xlu0
        %v3063 = vpop.trf.xlu0
        %v3064 = vpop.trf.xlu0
        %v3065 = vpop.trf.xlu0
        %v3066 = vpop.trf.xlu0
        %v3067 = vpop.trf.xlu0
        %v3068 = vpop.trf.xlu0
        %v3069 = vpop.trf.xlu0
        %v3070 = vpop.trf.xlu0
        %v3071 = vpop.trf.xlu0
        %v3072 = vpop.trf.xlu0
        %v3073 = vpop.trf.xlu0
        %v3074 = vpop.trf.xlu0
        %v3075 = vpop.trf.xlu0
        %v3076 = vpop.trf.xlu0
        %v3077 = vpop.trf.xlu0
        %3078 = vxpose.xlu0.b32.start [1/16] %v2875, 128
        %3079 = vxpose.xlu0.b32.cont [2/16] 0.0, 128
        %3080 = vxpose.xlu0.b32.cont [3/16] 0.0, 128
        %3081 = vxpose.xlu0.b32.cont [4/16] 0.0, 128
        %3082 = vxpose.xlu0.b32.cont [5/16] 0.0, 128
        %3083 = vxpose.xlu0.b32.cont [6/16] 0.0, 128
        %3084 = vxpose.xlu0.b32.cont [7/16] 0.0, 128
        %3085 = vxpose.xlu0.b32.cont [8/16] 0.0, 128
        %3086 = vxpose.xlu0.b32.cont [9/16] 0.0, 128
        %3087 = vxpose.xlu0.b32.cont [10/16] 0.0, 128
        %3088 = vxpose.xlu0.b32.cont [11/16] 0.0, 128
        %3089 = vxpose.xlu0.b32.cont [12/16] 0.0, 128
        %3090 = vxpose.xlu0.b32.cont [13/16] 0.0, 128
        %3091 = vxpose.xlu0.b32.cont [14/16] 0.0, 128
        %3092 = vxpose.xlu0.b32.cont [15/16] 0.0, 128
        %3093 = vxpose.xlu0.b32.end [16/16] 0.0, 128
        %v3094 = vpop.trf.xlu0
        %v3095 = vpop.trf.xlu0
        %v3096 = vpop.trf.xlu0
        %v3097 = vpop.trf.xlu0
        %v3098 = vpop.trf.xlu0
        %v3099 = vpop.trf.xlu0
        %v3100 = vpop.trf.xlu0
        %v3101 = vpop.trf.xlu0
        %v3102 = vpop.trf.xlu0
        %v3103 = vpop.trf.xlu0
        %v3104 = vpop.trf.xlu0
        %v3105 = vpop.trf.xlu0
        %v3106 = vpop.trf.xlu0
        %v3107 = vpop.trf.xlu0
        %v3108 = vpop.trf.xlu0
        %v3109 = vpop.trf.xlu0
        %3110 = vxpose.xlu0.b32.start [1/16] %v2877, 128
        %3111 = vxpose.xlu0.b32.cont [2/16] 0.0, 128
        %3112 = vxpose.xlu0.b32.cont [3/16] 0.0, 128
        %3113 = vxpose.xlu0.b32.cont [4/16] 0.0, 128
        %3114 = vxpose.xlu0.b32.cont [5/16] 0.0, 128
        %3115 = vxpose.xlu0.b32.cont [6/16] 0.0, 128
        %3116 = vxpose.xlu0.b32.cont [7/16] 0.0, 128
        %3117 = vxpose.xlu0.b32.cont [8/16] 0.0, 128
        %3118 = vxpose.xlu0.b32.cont [9/16] 0.0, 128
        %3119 = vxpose.xlu0.b32.cont [10/16] 0.0, 128
        %3120 = vxpose.xlu0.b32.cont [11/16] 0.0, 128
        %3121 = vxpose.xlu0.b32.cont [12/16] 0.0, 128
        %3122 = vxpose.xlu0.b32.cont [13/16] 0.0, 128
        %3123 = vxpose.xlu0.b32.cont [14/16] 0.0, 128
        %3124 = vxpose.xlu0.b32.cont [15/16] 0.0, 128
        %3125 = vxpose.xlu0.b32.end [16/16] 0.0, 128
        %v3126 = vpop.trf.xlu0
        %v3127 = vpop.trf.xlu0
        %v3128 = vpop.trf.xlu0
        %v3129 = vpop.trf.xlu0
        %v3130 = vpop.trf.xlu0
        %v3131 = vpop.trf.xlu0
        %v3132 = vpop.trf.xlu0
        %v3133 = vpop.trf.xlu0
        %v3134 = vpop.trf.xlu0
        %v3135 = vpop.trf.xlu0
        %v3136 = vpop.trf.xlu0
        %v3137 = vpop.trf.xlu0
        %v3138 = vpop.trf.xlu0
        %v3139 = vpop.trf.xlu0
        %v3140 = vpop.trf.xlu0
        %v3141 = vpop.trf.xlu0
        %v3142 = vcombine.low %v2902, %v2966
        %v3143 = vcombine.high %v2902, %v2966
        %v3145 = vunpack.c.l.s4 1983009808
        %v3146 = vunpack.c.0.s8 %v3145
        %v3147 = vlaneseq
        %v3148 = vshrl.u32 %v3147, 7
        %v3149 = vsub.s32 %v3146, %v3148
        %v3150 = vrot.slane %v3142, %v3149
        %v3152 = vunpack.c.l.s4 1983009808
        %v3153 = vunpack.c.0.s8 %v3152
        %v3154 = vlaneseq
        %v3155 = vshrl.u32 %v3154, 7
        %v3156 = vsub.s32 %v3153, %v3155
        %v3157 = vrot.slane %v3143, %v3156
        %v3158 = vcombine.low %v2934, %v2998
        %v3159 = vcombine.high %v2934, %v2998
        %v3161 = vunpack.c.l.s4 1983009808
        %v3162 = vunpack.c.0.s8 %v3161
        %v3163 = vlaneseq
        %v3164 = vshrl.u32 %v3163, 7
        %v3165 = vsub.s32 %v3162, %v3164
        %v3166 = vrot.slane %v3158, %v3165
        %v3168 = vunpack.c.l.s4 1983009808
        %v3169 = vunpack.c.0.s8 %v3168
        %v3170 = vlaneseq
        %v3171 = vshrl.u32 %v3170, 7
        %v3172 = vsub.s32 %v3169, %v3171
        %v3173 = vrot.slane %v3159, %v3172
        %v3174 = vcombine.low %v3030, %v3094
        %v3175 = vcombine.high %v3030, %v3094
        %v3177 = vunpack.c.l.s4 1983009808
        %v3178 = vunpack.c.0.s8 %v3177
        %v3179 = vlaneseq
        %v3180 = vshrl.u32 %v3179, 7
        %v3181 = vsub.s32 %v3178, %v3180
        %v3182 = vrot.slane %v3174, %v3181
        %v3184 = vunpack.c.l.s4 1983009808
        %v3185 = vunpack.c.0.s8 %v3184
        %v3186 = vlaneseq
        %v3187 = vshrl.u32 %v3186, 7
        %v3188 = vsub.s32 %v3185, %v3187
        %v3189 = vrot.slane %v3175, %v3188
        %v3190 = vcombine.low %v3062, %v3126
        %v3191 = vcombine.high %v3062, %v3126
        %v3193 = vunpack.c.l.s4 1983009808
        %v3194 = vunpack.c.0.s8 %v3193
        %v3195 = vlaneseq
        %v3196 = vshrl.u32 %v3195, 7
        %v3197 = vsub.s32 %v3194, %v3196
        %v3198 = vrot.slane %v3190, %v3197
        %v3200 = vunpack.c.l.s4 1983009808
        %v3201 = vunpack.c.0.s8 %v3200
        %v3202 = vlaneseq
        %v3203 = vshrl.u32 %v3202, 7
        %v3204 = vsub.s32 %v3201, %v3203
        %v3205 = vrot.slane %v3191, %v3204
        %v3206 = vcombine.low %v3150, %v3166
        %v3207 = vcombine.high %v3150, %v3166
        %v3209 = vunpack.c.l.s4 1934713408
        %v3210 = vunpack.c.0.s8 %v3209
        %v3211 = vlaneseq
        %v3212 = vshrl.u32 %v3211, 7
        %v3213 = vsub.s32 %v3210, %v3212
        %v3214 = vrot.slane %v3206, %v3213
        %v3216 = vunpack.c.l.s4 1934713408
        %v3217 = vunpack.c.0.s8 %v3216
        %v3218 = vlaneseq
        %v3219 = vshrl.u32 %v3218, 7
        %v3220 = vsub.s32 %v3217, %v3219
        %v3221 = vrot.slane %v3207, %v3220
        %v3222 = vcombine.low %v3157, %v3173
        %v3223 = vcombine.high %v3157, %v3173
        %v3225 = vunpack.c.l.s4 1934713408
        %v3226 = vunpack.c.0.s8 %v3225
        %v3227 = vlaneseq
        %v3228 = vshrl.u32 %v3227, 7
        %v3229 = vsub.s32 %v3226, %v3228
        %v3230 = vrot.slane %v3222, %v3229
        %v3232 = vunpack.c.l.s4 1934713408
        %v3233 = vunpack.c.0.s8 %v3232
        %v3234 = vlaneseq
        %v3235 = vshrl.u32 %v3234, 7
        %v3236 = vsub.s32 %v3233, %v3235
        %v3237 = vrot.slane %v3223, %v3236
        %v3238 = vcombine.low %v3182, %v3198
        %v3239 = vcombine.high %v3182, %v3198
        %v3241 = vunpack.c.l.s4 1934713408
        %v3242 = vunpack.c.0.s8 %v3241
        %v3243 = vlaneseq
        %v3244 = vshrl.u32 %v3243, 7
        %v3245 = vsub.s32 %v3242, %v3244
        %v3246 = vrot.slane %v3238, %v3245
        %v3248 = vunpack.c.l.s4 1934713408
        %v3249 = vunpack.c.0.s8 %v3248
        %v3250 = vlaneseq
        %v3251 = vshrl.u32 %v3250, 7
        %v3252 = vsub.s32 %v3249, %v3251
        %v3253 = vrot.slane %v3239, %v3252
        %v3254 = vcombine.low %v3189, %v3205
        %v3255 = vcombine.high %v3189, %v3205
        %v3257 = vunpack.c.l.s4 1934713408
        %v3258 = vunpack.c.0.s8 %v3257
        %v3259 = vlaneseq
        %v3260 = vshrl.u32 %v3259, 7
        %v3261 = vsub.s32 %v3258, %v3260
        %v3262 = vrot.slane %v3254, %v3261
        %v3264 = vunpack.c.l.s4 1934713408
        %v3265 = vunpack.c.0.s8 %v3264
        %v3266 = vlaneseq
        %v3267 = vshrl.u32 %v3266, 7
        %v3268 = vsub.s32 %v3265, %v3267
        %v3269 = vrot.slane %v3255, %v3268
        %v3270 = vcombine.low %v3214, %v3246
        %v3271 = vcombine.high %v3214, %v3246
        %v3272 = vcombine.low %v3221, %v3253
        %v3273 = vcombine.high %v3221, %v3253
        %v3274 = vcombine.low %v3230, %v3262
        %v3275 = vcombine.high %v3230, %v3262
        %v3276 = vcombine.low %v3237, %v3269
        %v3277 = vcombine.high %v3237, %v3269
        %v3278 = vcombine.low %v2903, %v2967
        %v3279 = vcombine.high %v2903, %v2967
        %v3281 = vunpack.c.l.s4 1983009808
        %v3282 = vunpack.c.0.s8 %v3281
        %v3283 = vlaneseq
        %v3284 = vshrl.u32 %v3283, 7
        %v3285 = vsub.s32 %v3282, %v3284
        %v3286 = vrot.slane %v3278, %v3285
        %v3288 = vunpack.c.l.s4 1983009808
        %v3289 = vunpack.c.0.s8 %v3288
        %v3290 = vlaneseq
        %v3291 = vshrl.u32 %v3290, 7
        %v3292 = vsub.s32 %v3289, %v3291
        %v3293 = vrot.slane %v3279, %v3292
        %v3294 = vcombine.low %v2935, %v2999
        %v3295 = vcombine.high %v2935, %v2999
        %v3297 = vunpack.c.l.s4 1983009808
        %v3298 = vunpack.c.0.s8 %v3297
        %v3299 = vlaneseq
        %v3300 = vshrl.u32 %v3299, 7
        %v3301 = vsub.s32 %v3298, %v3300
        %v3302 = vrot.slane %v3294, %v3301
        %v3304 = vunpack.c.l.s4 1983009808
        %v3305 = vunpack.c.0.s8 %v3304
        %v3306 = vlaneseq
        %v3307 = vshrl.u32 %v3306, 7
        %v3308 = vsub.s32 %v3305, %v3307
        %v3309 = vrot.slane %v3295, %v3308
        %v3310 = vcombine.low %v3031, %v3095
        %v3311 = vcombine.high %v3031, %v3095
        %v3313 = vunpack.c.l.s4 1983009808
        %v3314 = vunpack.c.0.s8 %v3313
        %v3315 = vlaneseq
        %v3316 = vshrl.u32 %v3315, 7
        %v3317 = vsub.s32 %v3314, %v3316
        %v3318 = vrot.slane %v3310, %v3317
        %v3320 = vunpack.c.l.s4 1983009808
        %v3321 = vunpack.c.0.s8 %v3320
        %v3322 = vlaneseq
        %v3323 = vshrl.u32 %v3322, 7
        %v3324 = vsub.s32 %v3321, %v3323
        %v3325 = vrot.slane %v3311, %v3324
        %v3326 = vcombine.low %v3063, %v3127
        %v3327 = vcombine.high %v3063, %v3127
        %v3329 = vunpack.c.l.s4 1983009808
        %v3330 = vunpack.c.0.s8 %v3329
        %v3331 = vlaneseq
        %v3332 = vshrl.u32 %v3331, 7
        %v3333 = vsub.s32 %v3330, %v3332
        %v3334 = vrot.slane %v3326, %v3333
        %v3336 = vunpack.c.l.s4 1983009808
        %v3337 = vunpack.c.0.s8 %v3336
        %v3338 = vlaneseq
        %v3339 = vshrl.u32 %v3338, 7
        %v3340 = vsub.s32 %v3337, %v3339
        %v3341 = vrot.slane %v3327, %v3340
        %v3342 = vcombine.low %v3286, %v3302
        %v3343 = vcombine.high %v3286, %v3302
        %v3345 = vunpack.c.l.s4 1934713408
        %v3346 = vunpack.c.0.s8 %v3345
        %v3347 = vlaneseq
        %v3348 = vshrl.u32 %v3347, 7
        %v3349 = vsub.s32 %v3346, %v3348
        %v3350 = vrot.slane %v3342, %v3349
        %v3352 = vunpack.c.l.s4 1934713408
        %v3353 = vunpack.c.0.s8 %v3352
        %v3354 = vlaneseq
        %v3355 = vshrl.u32 %v3354, 7
        %v3356 = vsub.s32 %v3353, %v3355
        %v3357 = vrot.slane %v3343, %v3356
        %v3358 = vcombine.low %v3293, %v3309
        %v3359 = vcombine.high %v3293, %v3309
        %v3361 = vunpack.c.l.s4 1934713408
        %v3362 = vunpack.c.0.s8 %v3361
        %v3363 = vlaneseq
        %v3364 = vshrl.u32 %v3363, 7
        %v3365 = vsub.s32 %v3362, %v3364
        %v3366 = vrot.slane %v3358, %v3365
        %v3368 = vunpack.c.l.s4 1934713408
        %v3369 = vunpack.c.0.s8 %v3368
        %v3370 = vlaneseq
        %v3371 = vshrl.u32 %v3370, 7
        %v3372 = vsub.s32 %v3369, %v3371
        %v3373 = vrot.slane %v3359, %v3372
        %v3374 = vcombine.low %v3318, %v3334
        %v3375 = vcombine.high %v3318, %v3334
        %v3377 = vunpack.c.l.s4 1934713408
        %v3378 = vunpack.c.0.s8 %v3377
        %v3379 = vlaneseq
        %v3380 = vshrl.u32 %v3379, 7
        %v3381 = vsub.s32 %v3378, %v3380
        %v3382 = vrot.slane %v3374, %v3381
        %v3384 = vunpack.c.l.s4 1934713408
        %v3385 = vunpack.c.0.s8 %v3384
        %v3386 = vlaneseq
        %v3387 = vshrl.u32 %v3386, 7
        %v3388 = vsub.s32 %v3385, %v3387
        %v3389 = vrot.slane %v3375, %v3388
        %v3390 = vcombine.low %v3325, %v3341
        %v3391 = vcombine.high %v3325, %v3341
        %v3393 = vunpack.c.l.s4 1934713408
        %v3394 = vunpack.c.0.s8 %v3393
        %v3395 = vlaneseq
        %v3396 = vshrl.u32 %v3395, 7
        %v3397 = vsub.s32 %v3394, %v3396
        %v3398 = vrot.slane %v3390, %v3397
        %v3400 = vunpack.c.l.s4 1934713408
        %v3401 = vunpack.c.0.s8 %v3400
        %v3402 = vlaneseq
        %v3403 = vshrl.u32 %v3402, 7
        %v3404 = vsub.s32 %v3401, %v3403
        %v3405 = vrot.slane %v3391, %v3404
        %v3406 = vcombine.low %v3350, %v3382
        %v3407 = vcombine.high %v3350, %v3382
        %v3408 = vcombine.low %v3357, %v3389
        %v3409 = vcombine.high %v3357, %v3389
        %v3410 = vcombine.low %v3366, %v3398
        %v3411 = vcombine.high %v3366, %v3398
        %v3412 = vcombine.low %v3373, %v3405
        %v3413 = vcombine.high %v3373, %v3405
        %v3414 = vcombine.low %v2904, %v2968
        %v3415 = vcombine.high %v2904, %v2968
        %v3417 = vunpack.c.l.s4 1983009808
        %v3418 = vunpack.c.0.s8 %v3417
        %v3419 = vlaneseq
        %v3420 = vshrl.u32 %v3419, 7
        %v3421 = vsub.s32 %v3418, %v3420
        %v3422 = vrot.slane %v3414, %v3421
        %v3424 = vunpack.c.l.s4 1983009808
        %v3425 = vunpack.c.0.s8 %v3424
        %v3426 = vlaneseq
        %v3427 = vshrl.u32 %v3426, 7
        %v3428 = vsub.s32 %v3425, %v3427
        %v3429 = vrot.slane %v3415, %v3428
        %v3430 = vcombine.low %v2936, %v3000
        %v3431 = vcombine.high %v2936, %v3000
        %v3433 = vunpack.c.l.s4 1983009808
        %v3434 = vunpack.c.0.s8 %v3433
        %v3435 = vlaneseq
        %v3436 = vshrl.u32 %v3435, 7
        %v3437 = vsub.s32 %v3434, %v3436
        %v3438 = vrot.slane %v3430, %v3437
        %v3440 = vunpack.c.l.s4 1983009808
        %v3441 = vunpack.c.0.s8 %v3440
        %v3442 = vlaneseq
        %v3443 = vshrl.u32 %v3442, 7
        %v3444 = vsub.s32 %v3441, %v3443
        %v3445 = vrot.slane %v3431, %v3444
        %v3446 = vcombine.low %v3032, %v3096
        %v3447 = vcombine.high %v3032, %v3096
        %v3449 = vunpack.c.l.s4 1983009808
        %v3450 = vunpack.c.0.s8 %v3449
        %v3451 = vlaneseq
        %v3452 = vshrl.u32 %v3451, 7
        %v3453 = vsub.s32 %v3450, %v3452
        %v3454 = vrot.slane %v3446, %v3453
        %v3456 = vunpack.c.l.s4 1983009808
        %v3457 = vunpack.c.0.s8 %v3456
        %v3458 = vlaneseq
        %v3459 = vshrl.u32 %v3458, 7
        %v3460 = vsub.s32 %v3457, %v3459
        %v3461 = vrot.slane %v3447, %v3460
        %v3462 = vcombine.low %v3064, %v3128
        %v3463 = vcombine.high %v3064, %v3128
        %v3465 = vunpack.c.l.s4 1983009808
        %v3466 = vunpack.c.0.s8 %v3465
        %v3467 = vlaneseq
        %v3468 = vshrl.u32 %v3467, 7
        %v3469 = vsub.s32 %v3466, %v3468
        %v3470 = vrot.slane %v3462, %v3469
        %v3472 = vunpack.c.l.s4 1983009808
        %v3473 = vunpack.c.0.s8 %v3472
        %v3474 = vlaneseq
        %v3475 = vshrl.u32 %v3474, 7
        %v3476 = vsub.s32 %v3473, %v3475
        %v3477 = vrot.slane %v3463, %v3476
        %v3478 = vcombine.low %v3422, %v3438
        %v3479 = vcombine.high %v3422, %v3438
        %v3481 = vunpack.c.l.s4 1934713408
        %v3482 = vunpack.c.0.s8 %v3481
        %v3483 = vlaneseq
        %v3484 = vshrl.u32 %v3483, 7
        %v3485 = vsub.s32 %v3482, %v3484
        %v3486 = vrot.slane %v3478, %v3485
        %v3488 = vunpack.c.l.s4 1934713408
        %v3489 = vunpack.c.0.s8 %v3488
        %v3490 = vlaneseq
        %v3491 = vshrl.u32 %v3490, 7
        %v3492 = vsub.s32 %v3489, %v3491
        %v3493 = vrot.slane %v3479, %v3492
        %v3494 = vcombine.low %v3429, %v3445
        %v3495 = vcombine.high %v3429, %v3445
        %v3497 = vunpack.c.l.s4 1934713408
        %v3498 = vunpack.c.0.s8 %v3497
        %v3499 = vlaneseq
        %v3500 = vshrl.u32 %v3499, 7
        %v3501 = vsub.s32 %v3498, %v3500
        %v3502 = vrot.slane %v3494, %v3501
        %v3504 = vunpack.c.l.s4 1934713408
        %v3505 = vunpack.c.0.s8 %v3504
        %v3506 = vlaneseq
        %v3507 = vshrl.u32 %v3506, 7
        %v3508 = vsub.s32 %v3505, %v3507
        %v3509 = vrot.slane %v3495, %v3508
        %v3510 = vcombine.low %v3454, %v3470
        %v3511 = vcombine.high %v3454, %v3470
        %v3513 = vunpack.c.l.s4 1934713408
        %v3514 = vunpack.c.0.s8 %v3513
        %v3515 = vlaneseq
        %v3516 = vshrl.u32 %v3515, 7
        %v3517 = vsub.s32 %v3514, %v3516
        %v3518 = vrot.slane %v3510, %v3517
        %v3520 = vunpack.c.l.s4 1934713408
        %v3521 = vunpack.c.0.s8 %v3520
        %v3522 = vlaneseq
        %v3523 = vshrl.u32 %v3522, 7
        %v3524 = vsub.s32 %v3521, %v3523
        %v3525 = vrot.slane %v3511, %v3524
        %v3526 = vcombine.low %v3461, %v3477
        %v3527 = vcombine.high %v3461, %v3477
        %v3529 = vunpack.c.l.s4 1934713408
        %v3530 = vunpack.c.0.s8 %v3529
        %v3531 = vlaneseq
        %v3532 = vshrl.u32 %v3531, 7
        %v3533 = vsub.s32 %v3530, %v3532
        %v3534 = vrot.slane %v3526, %v3533
        %v3536 = vunpack.c.l.s4 1934713408
        %v3537 = vunpack.c.0.s8 %v3536
        %v3538 = vlaneseq
        %v3539 = vshrl.u32 %v3538, 7
        %v3540 = vsub.s32 %v3537, %v3539
        %v3541 = vrot.slane %v3527, %v3540
        %v3542 = vcombine.low %v3486, %v3518
        %v3543 = vcombine.high %v3486, %v3518
        %v3544 = vcombine.low %v3493, %v3525
        %v3545 = vcombine.high %v3493, %v3525
        %v3546 = vcombine.low %v3502, %v3534
        %v3547 = vcombine.high %v3502, %v3534
        %v3548 = vcombine.low %v3509, %v3541
        %v3549 = vcombine.high %v3509, %v3541
        %v3550 = vcombine.low %v2905, %v2969
        %v3551 = vcombine.high %v2905, %v2969
        %v3553 = vunpack.c.l.s4 1983009808
        %v3554 = vunpack.c.0.s8 %v3553
        %v3555 = vlaneseq
        %v3556 = vshrl.u32 %v3555, 7
        %v3557 = vsub.s32 %v3554, %v3556
        %v3558 = vrot.slane %v3550, %v3557
        %v3560 = vunpack.c.l.s4 1983009808
        %v3561 = vunpack.c.0.s8 %v3560
        %v3562 = vlaneseq
        %v3563 = vshrl.u32 %v3562, 7
        %v3564 = vsub.s32 %v3561, %v3563
        %v3565 = vrot.slane %v3551, %v3564
        %v3566 = vcombine.low %v2937, %v3001
        %v3567 = vcombine.high %v2937, %v3001
        %v3569 = vunpack.c.l.s4 1983009808
        %v3570 = vunpack.c.0.s8 %v3569
        %v3571 = vlaneseq
        %v3572 = vshrl.u32 %v3571, 7
        %v3573 = vsub.s32 %v3570, %v3572
        %v3574 = vrot.slane %v3566, %v3573
        %v3576 = vunpack.c.l.s4 1983009808
        %v3577 = vunpack.c.0.s8 %v3576
        %v3578 = vlaneseq
        %v3579 = vshrl.u32 %v3578, 7
        %v3580 = vsub.s32 %v3577, %v3579
        %v3581 = vrot.slane %v3567, %v3580
        %v3582 = vcombine.low %v3033, %v3097
        %v3583 = vcombine.high %v3033, %v3097
        %v3585 = vunpack.c.l.s4 1983009808
        %v3586 = vunpack.c.0.s8 %v3585
        %v3587 = vlaneseq
        %v3588 = vshrl.u32 %v3587, 7
        %v3589 = vsub.s32 %v3586, %v3588
        %v3590 = vrot.slane %v3582, %v3589
        %v3592 = vunpack.c.l.s4 1983009808
        %v3593 = vunpack.c.0.s8 %v3592
        %v3594 = vlaneseq
        %v3595 = vshrl.u32 %v3594, 7
        %v3596 = vsub.s32 %v3593, %v3595
        %v3597 = vrot.slane %v3583, %v3596
        %v3598 = vcombine.low %v3065, %v3129
        %v3599 = vcombine.high %v3065, %v3129
        %v3601 = vunpack.c.l.s4 1983009808
        %v3602 = vunpack.c.0.s8 %v3601
        %v3603 = vlaneseq
        %v3604 = vshrl.u32 %v3603, 7
        %v3605 = vsub.s32 %v3602, %v3604
        %v3606 = vrot.slane %v3598, %v3605
        %v3608 = vunpack.c.l.s4 1983009808
        %v3609 = vunpack.c.0.s8 %v3608
        %v3610 = vlaneseq
        %v3611 = vshrl.u32 %v3610, 7
        %v3612 = vsub.s32 %v3609, %v3611
        %v3613 = vrot.slane %v3599, %v3612
        %v3614 = vcombine.low %v3558, %v3574
        %v3615 = vcombine.high %v3558, %v3574
        %v3617 = vunpack.c.l.s4 1934713408
        %v3618 = vunpack.c.0.s8 %v3617
        %v3619 = vlaneseq
        %v3620 = vshrl.u32 %v3619, 7
        %v3621 = vsub.s32 %v3618, %v3620
        %v3622 = vrot.slane %v3614, %v3621
        %v3624 = vunpack.c.l.s4 1934713408
        %v3625 = vunpack.c.0.s8 %v3624
        %v3626 = vlaneseq
        %v3627 = vshrl.u32 %v3626, 7
        %v3628 = vsub.s32 %v3625, %v3627
        %v3629 = vrot.slane %v3615, %v3628
        %v3630 = vcombine.low %v3565, %v3581
        %v3631 = vcombine.high %v3565, %v3581
        %v3633 = vunpack.c.l.s4 1934713408
        %v3634 = vunpack.c.0.s8 %v3633
        %v3635 = vlaneseq
        %v3636 = vshrl.u32 %v3635, 7
        %v3637 = vsub.s32 %v3634, %v3636
        %v3638 = vrot.slane %v3630, %v3637
        %v3640 = vunpack.c.l.s4 1934713408
        %v3641 = vunpack.c.0.s8 %v3640
        %v3642 = vlaneseq
        %v3643 = vshrl.u32 %v3642, 7
        %v3644 = vsub.s32 %v3641, %v3643
        %v3645 = vrot.slane %v3631, %v3644
        %v3646 = vcombine.low %v3590, %v3606
        %v3647 = vcombine.high %v3590, %v3606
        %v3649 = vunpack.c.l.s4 1934713408
        %v3650 = vunpack.c.0.s8 %v3649
        %v3651 = vlaneseq
        %v3652 = vshrl.u32 %v3651, 7
        %v3653 = vsub.s32 %v3650, %v3652
        %v3654 = vrot.slane %v3646, %v3653
        %v3656 = vunpack.c.l.s4 1934713408
        %v3657 = vunpack.c.0.s8 %v3656
        %v3658 = vlaneseq
        %v3659 = vshrl.u32 %v3658, 7
        %v3660 = vsub.s32 %v3657, %v3659
        %v3661 = vrot.slane %v3647, %v3660
        %v3662 = vcombine.low %v3597, %v3613
        %v3663 = vcombine.high %v3597, %v3613
        %v3665 = vunpack.c.l.s4 1934713408
        %v3666 = vunpack.c.0.s8 %v3665
        %v3667 = vlaneseq
        %v3668 = vshrl.u32 %v3667, 7
        %v3669 = vsub.s32 %v3666, %v3668
        %v3670 = vrot.slane %v3662, %v3669
        %v3672 = vunpack.c.l.s4 1934713408
        %v3673 = vunpack.c.0.s8 %v3672
        %v3674 = vlaneseq
        %v3675 = vshrl.u32 %v3674, 7
        %v3676 = vsub.s32 %v3673, %v3675
        %v3677 = vrot.slane %v3663, %v3676
        %v3678 = vcombine.low %v3622, %v3654
        %v3679 = vcombine.high %v3622, %v3654
        %v3680 = vcombine.low %v3629, %v3661
        %v3681 = vcombine.high %v3629, %v3661
        %v3682 = vcombine.low %v3638, %v3670
        %v3683 = vcombine.high %v3638, %v3670
        %v3684 = vcombine.low %v3645, %v3677
        %v3685 = vcombine.high %v3645, %v3677
        %3686 = vxpose.xlu0.b32.start [1/16] %v3270, 128
        %3687 = vxpose.xlu0.b32.cont [2/16] 0.0, 128
        %3688 = vxpose.xlu0.b32.cont [3/16] 0.0, 128
        %3689 = vxpose.xlu0.b32.cont [4/16] 0.0, 128
        %3690 = vxpose.xlu0.b32.cont [5/16] 0.0, 128
        %3691 = vxpose.xlu0.b32.cont [6/16] 0.0, 128
        %3692 = vxpose.xlu0.b32.cont [7/16] 0.0, 128
        %3693 = vxpose.xlu0.b32.cont [8/16] 0.0, 128
        %3694 = vxpose.xlu0.b32.cont [9/16] 0.0, 128
        %3695 = vxpose.xlu0.b32.cont [10/16] 0.0, 128
        %3696 = vxpose.xlu0.b32.cont [11/16] 0.0, 128
        %3697 = vxpose.xlu0.b32.cont [12/16] 0.0, 128
        %3698 = vxpose.xlu0.b32.cont [13/16] 0.0, 128
        %3699 = vxpose.xlu0.b32.cont [14/16] 0.0, 128
        %3700 = vxpose.xlu0.b32.cont [15/16] 0.0, 128
        %3701 = vxpose.xlu0.b32.end [16/16] 0.0, 128
        %v3702 = vpop.trf.xlu0
        %v3703 = vpop.trf.xlu0
        %v3704 = vpop.trf.xlu0
        %v3705 = vpop.trf.xlu0
        %v3706 = vpop.trf.xlu0
        %v3707 = vpop.trf.xlu0
        %v3708 = vpop.trf.xlu0
        %v3709 = vpop.trf.xlu0
        %v3710 = vpop.trf.xlu0
        %v3711 = vpop.trf.xlu0
        %v3712 = vpop.trf.xlu0
        %v3713 = vpop.trf.xlu0
        %v3714 = vpop.trf.xlu0
        %v3715 = vpop.trf.xlu0
        %v3716 = vpop.trf.xlu0
        %v3717 = vpop.trf.xlu0
        %3718 = vxpose.xlu0.b32.start [1/16] %v3271, 128
        %3719 = vxpose.xlu0.b32.cont [2/16] 0.0, 128
        %3720 = vxpose.xlu0.b32.cont [3/16] 0.0, 128
        %3721 = vxpose.xlu0.b32.cont [4/16] 0.0, 128
        %3722 = vxpose.xlu0.b32.cont [5/16] 0.0, 128
        %3723 = vxpose.xlu0.b32.cont [6/16] 0.0, 128
        %3724 = vxpose.xlu0.b32.cont [7/16] 0.0, 128
        %3725 = vxpose.xlu0.b32.cont [8/16] 0.0, 128
        %3726 = vxpose.xlu0.b32.cont [9/16] 0.0, 128
        %3727 = vxpose.xlu0.b32.cont [10/16] 0.0, 128
        %3728 = vxpose.xlu0.b32.cont [11/16] 0.0, 128
        %3729 = vxpose.xlu0.b32.cont [12/16] 0.0, 128
        %3730 = vxpose.xlu0.b32.cont [13/16] 0.0, 128
        %3731 = vxpose.xlu0.b32.cont [14/16] 0.0, 128
        %3732 = vxpose.xlu0.b32.cont [15/16] 0.0, 128
        %3733 = vxpose.xlu0.b32.end [16/16] 0.0, 128
        %v3734 = vpop.trf.xlu0
        %v3735 = vpop.trf.xlu0
        %v3736 = vpop.trf.xlu0
        %v3737 = vpop.trf.xlu0
        %v3738 = vpop.trf.xlu0
        %v3739 = vpop.trf.xlu0
        %v3740 = vpop.trf.xlu0
        %v3741 = vpop.trf.xlu0
        %v3742 = vpop.trf.xlu0
        %v3743 = vpop.trf.xlu0
        %v3744 = vpop.trf.xlu0
        %v3745 = vpop.trf.xlu0
        %v3746 = vpop.trf.xlu0
        %v3747 = vpop.trf.xlu0
        %v3748 = vpop.trf.xlu0
        %v3749 = vpop.trf.xlu0
        %3750 = vxpose.xlu0.b32.start [1/16] %v3272, 128
        %3751 = vxpose.xlu0.b32.cont [2/16] 0.0, 128
        %3752 = vxpose.xlu0.b32.cont [3/16] 0.0, 128
        %3753 = vxpose.xlu0.b32.cont [4/16] 0.0, 128
        %3754 = vxpose.xlu0.b32.cont [5/16] 0.0, 128
        %3755 = vxpose.xlu0.b32.cont [6/16] 0.0, 128
        %3756 = vxpose.xlu0.b32.cont [7/16] 0.0, 128
        %3757 = vxpose.xlu0.b32.cont [8/16] 0.0, 128
        %3758 = vxpose.xlu0.b32.cont [9/16] 0.0, 128
        %3759 = vxpose.xlu0.b32.cont [10/16] 0.0, 128
        %3760 = vxpose.xlu0.b32.cont [11/16] 0.0, 128
        %3761 = vxpose.xlu0.b32.cont [12/16] 0.0, 128
        %3762 = vxpose.xlu0.b32.cont [13/16] 0.0, 128
        %3763 = vxpose.xlu0.b32.cont [14/16] 0.0, 128
        %3764 = vxpose.xlu0.b32.cont [15/16] 0.0, 128
        %3765 = vxpose.xlu0.b32.end [16/16] 0.0, 128
        %v3766 = vpop.trf.xlu0
        %v3767 = vpop.trf.xlu0
        %v3768 = vpop.trf.xlu0
        %v3769 = vpop.trf.xlu0
        %v3770 = vpop.trf.xlu0
        %v3771 = vpop.trf.xlu0
        %v3772 = vpop.trf.xlu0
        %v3773 = vpop.trf.xlu0
        %v3774 = vpop.trf.xlu0
        %v3775 = vpop.trf.xlu0
        %v3776 = vpop.trf.xlu0
        %v3777 = vpop.trf.xlu0
        %v3778 = vpop.trf.xlu0
        %v3779 = vpop.trf.xlu0
        %v3780 = vpop.trf.xlu0
        %v3781 = vpop.trf.xlu0
        %3782 = vxpose.xlu0.b32.start [1/16] %v3273, 128
        %3783 = vxpose.xlu0.b32.cont [2/16] 0.0, 128
        %3784 = vxpose.xlu0.b32.cont [3/16] 0.0, 128
        %3785 = vxpose.xlu0.b32.cont [4/16] 0.0, 128
        %3786 = vxpose.xlu0.b32.cont [5/16] 0.0, 128
        %3787 = vxpose.xlu0.b32.cont [6/16] 0.0, 128
        %3788 = vxpose.xlu0.b32.cont [7/16] 0.0, 128
        %3789 = vxpose.xlu0.b32.cont [8/16] 0.0, 128
        %3790 = vxpose.xlu0.b32.cont [9/16] 0.0, 128
        %3791 = vxpose.xlu0.b32.cont [10/16] 0.0, 128
        %3792 = vxpose.xlu0.b32.cont [11/16] 0.0, 128
        %3793 = vxpose.xlu0.b32.cont [12/16] 0.0, 128
        %3794 = vxpose.xlu0.b32.cont [13/16] 0.0, 128
        %3795 = vxpose.xlu0.b32.cont [14/16] 0.0, 128
        %3796 = vxpose.xlu0.b32.cont [15/16] 0.0, 128
        %3797 = vxpose.xlu0.b32.end [16/16] 0.0, 128
        %v3798 = vpop.trf.xlu0
        %v3799 = vpop.trf.xlu0
        %v3800 = vpop.trf.xlu0
        %v3801 = vpop.trf.xlu0
        %v3802 = vpop.trf.xlu0
        %v3803 = vpop.trf.xlu0
        %v3804 = vpop.trf.xlu0
        %v3805 = vpop.trf.xlu0
        %v3806 = vpop.trf.xlu0
        %v3807 = vpop.trf.xlu0
        %v3808 = vpop.trf.xlu0
        %v3809 = vpop.trf.xlu0
        %v3810 = vpop.trf.xlu0
        %v3811 = vpop.trf.xlu0
        %v3812 = vpop.trf.xlu0
        %v3813 = vpop.trf.xlu0
        %3814 = vxpose.xlu0.b32.start [1/16] %v3274, 128
        %3815 = vxpose.xlu0.b32.cont [2/16] 0.0, 128
        %3816 = vxpose.xlu0.b32.cont [3/16] 0.0, 128
        %3817 = vxpose.xlu0.b32.cont [4/16] 0.0, 128
        %3818 = vxpose.xlu0.b32.cont [5/16] 0.0, 128
        %3819 = vxpose.xlu0.b32.cont [6/16] 0.0, 128
        %3820 = vxpose.xlu0.b32.cont [7/16] 0.0, 128
        %3821 = vxpose.xlu0.b32.cont [8/16] 0.0, 128
        %3822 = vxpose.xlu0.b32.cont [9/16] 0.0, 128
        %3823 = vxpose.xlu0.b32.cont [10/16] 0.0, 128
        %3824 = vxpose.xlu0.b32.cont [11/16] 0.0, 128
        %3825 = vxpose.xlu0.b32.cont [12/16] 0.0, 128
        %3826 = vxpose.xlu0.b32.cont [13/16] 0.0, 128
        %3827 = vxpose.xlu0.b32.cont [14/16] 0.0, 128
        %3828 = vxpose.xlu0.b32.cont [15/16] 0.0, 128
        %3829 = vxpose.xlu0.b32.end [16/16] 0.0, 128
        %v3830 = vpop.trf.xlu0
        %v3831 = vpop.trf.xlu0
        %v3832 = vpop.trf.xlu0
        %v3833 = vpop.trf.xlu0
        %v3834 = vpop.trf.xlu0
        %v3835 = vpop.trf.xlu0
        %v3836 = vpop.trf.xlu0
        %v3837 = vpop.trf.xlu0
        %v3838 = vpop.trf.xlu0
        %v3839 = vpop.trf.xlu0
        %v3840 = vpop.trf.xlu0
        %v3841 = vpop.trf.xlu0
        %v3842 = vpop.trf.xlu0
        %v3843 = vpop.trf.xlu0
        %v3844 = vpop.trf.xlu0
        %v3845 = vpop.trf.xlu0
        %3846 = vxpose.xlu0.b32.start [1/16] %v3275, 128
        %3847 = vxpose.xlu0.b32.cont [2/16] 0.0, 128
        %3848 = vxpose.xlu0.b32.cont [3/16] 0.0, 128
        %3849 = vxpose.xlu0.b32.cont [4/16] 0.0, 128
        %3850 = vxpose.xlu0.b32.cont [5/16] 0.0, 128
        %3851 = vxpose.xlu0.b32.cont [6/16] 0.0, 128
        %3852 = vxpose.xlu0.b32.cont [7/16] 0.0, 128
        %3853 = vxpose.xlu0.b32.cont [8/16] 0.0, 128
        %3854 = vxpose.xlu0.b32.cont [9/16] 0.0, 128
        %3855 = vxpose.xlu0.b32.cont [10/16] 0.0, 128
        %3856 = vxpose.xlu0.b32.cont [11/16] 0.0, 128
        %3857 = vxpose.xlu0.b32.cont [12/16] 0.0, 128
        %3858 = vxpose.xlu0.b32.cont [13/16] 0.0, 128
        %3859 = vxpose.xlu0.b32.cont [14/16] 0.0, 128
        %3860 = vxpose.xlu0.b32.cont [15/16] 0.0, 128
        %3861 = vxpose.xlu0.b32.end [16/16] 0.0, 128
        %v3862 = vpop.trf.xlu0
        %v3863 = vpop.trf.xlu0
        %v3864 = vpop.trf.xlu0
        %v3865 = vpop.trf.xlu0
        %v3866 = vpop.trf.xlu0
        %v3867 = vpop.trf.xlu0
        %v3868 = vpop.trf.xlu0
        %v3869 = vpop.trf.xlu0
        %v3870 = vpop.trf.xlu0
        %v3871 = vpop.trf.xlu0
        %v3872 = vpop.trf.xlu0
        %v3873 = vpop.trf.xlu0
        %v3874 = vpop.trf.xlu0
        %v3875 = vpop.trf.xlu0
        %v3876 = vpop.trf.xlu0
        %v3877 = vpop.trf.xlu0
        %3878 = vxpose.xlu0.b32.start [1/16] %v3276, 128
        %3879 = vxpose.xlu0.b32.cont [2/16] 0.0, 128
        %3880 = vxpose.xlu0.b32.cont [3/16] 0.0, 128
        %3881 = vxpose.xlu0.b32.cont [4/16] 0.0, 128
        %3882 = vxpose.xlu0.b32.cont [5/16] 0.0, 128
        %3883 = vxpose.xlu0.b32.cont [6/16] 0.0, 128
        %3884 = vxpose.xlu0.b32.cont [7/16] 0.0, 128
        %3885 = vxpose.xlu0.b32.cont [8/16] 0.0, 128
        %3886 = vxpose.xlu0.b32.cont [9/16] 0.0, 128
        %3887 = vxpose.xlu0.b32.cont [10/16] 0.0, 128
        %3888 = vxpose.xlu0.b32.cont [11/16] 0.0, 128
        %3889 = vxpose.xlu0.b32.cont [12/16] 0.0, 128
        %3890 = vxpose.xlu0.b32.cont [13/16] 0.0, 128
        %3891 = vxpose.xlu0.b32.cont [14/16] 0.0, 128
        %3892 = vxpose.xlu0.b32.cont [15/16] 0.0, 128
        %3893 = vxpose.xlu0.b32.end [16/16] 0.0, 128
        %v3894 = vpop.trf.xlu0
        %v3895 = vpop.trf.xlu0
        %v3896 = vpop.trf.xlu0
        %v3897 = vpop.trf.xlu0
        %v3898 = vpop.trf.xlu0
        %v3899 = vpop.trf.xlu0
        %v3900 = vpop.trf.xlu0
        %v3901 = vpop.trf.xlu0
        %v3902 = vpop.trf.xlu0
        %v3903 = vpop.trf.xlu0
        %v3904 = vpop.trf.xlu0
        %v3905 = vpop.trf.xlu0
        %v3906 = vpop.trf.xlu0
        %v3907 = vpop.trf.xlu0
        %v3908 = vpop.trf.xlu0
        %v3909 = vpop.trf.xlu0
        %3910 = vxpose.xlu0.b32.start [1/16] %v3277, 128
        %3911 = vxpose.xlu0.b32.cont [2/16] 0.0, 128
        %3912 = vxpose.xlu0.b32.cont [3/16] 0.0, 128
        %3913 = vxpose.xlu0.b32.cont [4/16] 0.0, 128
        %3914 = vxpose.xlu0.b32.cont [5/16] 0.0, 128
        %3915 = vxpose.xlu0.b32.cont [6/16] 0.0, 128
        %3916 = vxpose.xlu0.b32.cont [7/16] 0.0, 128
        %3917 = vxpose.xlu0.b32.cont [8/16] 0.0, 128
        %3918 = vxpose.xlu0.b32.cont [9/16] 0.0, 128
        %3919 = vxpose.xlu0.b32.cont [10/16] 0.0, 128
        %3920 = vxpose.xlu0.b32.cont [11/16] 0.0, 128
        %3921 = vxpose.xlu0.b32.cont [12/16] 0.0, 128
        %3922 = vxpose.xlu0.b32.cont [13/16] 0.0, 128
        %3923 = vxpose.xlu0.b32.cont [14/16] 0.0, 128
        %3924 = vxpose.xlu0.b32.cont [15/16] 0.0, 128
        %3925 = vxpose.xlu0.b32.end [16/16] 0.0, 128
        %v3926 = vpop.trf.xlu0
        %v3927 = vpop.trf.xlu0
        %v3928 = vpop.trf.xlu0
        %v3929 = vpop.trf.xlu0
        %v3930 = vpop.trf.xlu0
        %v3931 = vpop.trf.xlu0
        %v3932 = vpop.trf.xlu0
        %v3933 = vpop.trf.xlu0
        %v3934 = vpop.trf.xlu0
        %v3935 = vpop.trf.xlu0
        %v3936 = vpop.trf.xlu0
        %v3937 = vpop.trf.xlu0
        %v3938 = vpop.trf.xlu0
        %v3939 = vpop.trf.xlu0
        %v3940 = vpop.trf.xlu0
        %v3941 = vpop.trf.xlu0
        %3942 = vxpose.xlu0.b32.start [1/16] %v3406, 128
        %3943 = vxpose.xlu0.b32.cont [2/16] 0.0, 128
        %3944 = vxpose.xlu0.b32.cont [3/16] 0.0, 128
        %3945 = vxpose.xlu0.b32.cont [4/16] 0.0, 128
        %3946 = vxpose.xlu0.b32.cont [5/16] 0.0, 128
        %3947 = vxpose.xlu0.b32.cont [6/16] 0.0, 128
        %3948 = vxpose.xlu0.b32.cont [7/16] 0.0, 128
        %3949 = vxpose.xlu0.b32.cont [8/16] 0.0, 128
        %3950 = vxpose.xlu0.b32.cont [9/16] 0.0, 128
        %3951 = vxpose.xlu0.b32.cont [10/16] 0.0, 128
        %3952 = vxpose.xlu0.b32.cont [11/16] 0.0, 128
        %3953 = vxpose.xlu0.b32.cont [12/16] 0.0, 128
        %3954 = vxpose.xlu0.b32.cont [13/16] 0.0, 128
        %3955 = vxpose.xlu0.b32.cont [14/16] 0.0, 128
        %3956 = vxpose.xlu0.b32.cont [15/16] 0.0, 128
        %3957 = vxpose.xlu0.b32.end [16/16] 0.0, 128
        %v3958 = vpop.trf.xlu0
        %v3959 = vpop.trf.xlu0
        %v3960 = vpop.trf.xlu0
        %v3961 = vpop.trf.xlu0
        %v3962 = vpop.trf.xlu0
        %v3963 = vpop.trf.xlu0
        %v3964 = vpop.trf.xlu0
        %v3965 = vpop.trf.xlu0
        %v3966 = vpop.trf.xlu0
        %v3967 = vpop.trf.xlu0
        %v3968 = vpop.trf.xlu0
        %v3969 = vpop.trf.xlu0
        %v3970 = vpop.trf.xlu0
        %v3971 = vpop.trf.xlu0
        %v3972 = vpop.trf.xlu0
        %v3973 = vpop.trf.xlu0
        %3974 = vxpose.xlu0.b32.start [1/16] %v3407, 128
        %3975 = vxpose.xlu0.b32.cont [2/16] 0.0, 128
        %3976 = vxpose.xlu0.b32.cont [3/16] 0.0, 128
        %3977 = vxpose.xlu0.b32.cont [4/16] 0.0, 128
        %3978 = vxpose.xlu0.b32.cont [5/16] 0.0, 128
        %3979 = vxpose.xlu0.b32.cont [6/16] 0.0, 128
        %3980 = vxpose.xlu0.b32.cont [7/16] 0.0, 128
        %3981 = vxpose.xlu0.b32.cont [8/16] 0.0, 128
        %3982 = vxpose.xlu0.b32.cont [9/16] 0.0, 128
        %3983 = vxpose.xlu0.b32.cont [10/16] 0.0, 128
        %3984 = vxpose.xlu0.b32.cont [11/16] 0.0, 128
        %3985 = vxpose.xlu0.b32.cont [12/16] 0.0, 128
        %3986 = vxpose.xlu0.b32.cont [13/16] 0.0, 128
        %3987 = vxpose.xlu0.b32.cont [14/16] 0.0, 128
        %3988 = vxpose.xlu0.b32.cont [15/16] 0.0, 128
        %3989 = vxpose.xlu0.b32.end [16/16] 0.0, 128
        %v3990 = vpop.trf.xlu0
        %v3991 = vpop.trf.xlu0
        %v3992 = vpop.trf.xlu0
        %v3993 = vpop.trf.xlu0
        %v3994 = vpop.trf.xlu0
        %v3995 = vpop.trf.xlu0
        %v3996 = vpop.trf.xlu0
        %v3997 = vpop.trf.xlu0
        %v3998 = vpop.trf.xlu0
        %v3999 = vpop.trf.xlu0
        %v4000 = vpop.trf.xlu0
        %v4001 = vpop.trf.xlu0
        %v4002 = vpop.trf.xlu0
        %v4003 = vpop.trf.xlu0
        %v4004 = vpop.trf.xlu0
        %v4005 = vpop.trf.xlu0
        %4006 = vxpose.xlu0.b32.start [1/16] %v3408, 128
        %4007 = vxpose.xlu0.b32.cont [2/16] 0.0, 128
        %4008 = vxpose.xlu0.b32.cont [3/16] 0.0, 128
        %4009 = vxpose.xlu0.b32.cont [4/16] 0.0, 128
        %4010 = vxpose.xlu0.b32.cont [5/16] 0.0, 128
        %4011 = vxpose.xlu0.b32.cont [6/16] 0.0, 128
        %4012 = vxpose.xlu0.b32.cont [7/16] 0.0, 128
        %4013 = vxpose.xlu0.b32.cont [8/16] 0.0, 128
        %4014 = vxpose.xlu0.b32.cont [9/16] 0.0, 128
        %4015 = vxpose.xlu0.b32.cont [10/16] 0.0, 128
        %4016 = vxpose.xlu0.b32.cont [11/16] 0.0, 128
        %4017 = vxpose.xlu0.b32.cont [12/16] 0.0, 128
        %4018 = vxpose.xlu0.b32.cont [13/16] 0.0, 128
        %4019 = vxpose.xlu0.b32.cont [14/16] 0.0, 128
        %4020 = vxpose.xlu0.b32.cont [15/16] 0.0, 128
        %4021 = vxpose.xlu0.b32.end [16/16] 0.0, 128
        %v4022 = vpop.trf.xlu0
        %v4023 = vpop.trf.xlu0
        %v4024 = vpop.trf.xlu0
        %v4025 = vpop.trf.xlu0
        %v4026 = vpop.trf.xlu0
        %v4027 = vpop.trf.xlu0
        %v4028 = vpop.trf.xlu0
        %v4029 = vpop.trf.xlu0
        %v4030 = vpop.trf.xlu0
        %v4031 = vpop.trf.xlu0
        %v4032 = vpop.trf.xlu0
        %v4033 = vpop.trf.xlu0
        %v4034 = vpop.trf.xlu0
        %v4035 = vpop.trf.xlu0
        %v4036 = vpop.trf.xlu0
        %v4037 = vpop.trf.xlu0
        %4038 = vxpose.xlu0.b32.start [1/16] %v3409, 128
        %4039 = vxpose.xlu0.b32.cont [2/16] 0.0, 128
        %4040 = vxpose.xlu0.b32.cont [3/16] 0.0, 128
        %4041 = vxpose.xlu0.b32.cont [4/16] 0.0, 128
        %4042 = vxpose.xlu0.b32.cont [5/16] 0.0, 128
        %4043 = vxpose.xlu0.b32.cont [6/16] 0.0, 128
        %4044 = vxpose.xlu0.b32.cont [7/16] 0.0, 128
        %4045 = vxpose.xlu0.b32.cont [8/16] 0.0, 128
        %4046 = vxpose.xlu0.b32.cont [9/16] 0.0, 128
        %4047 = vxpose.xlu0.b32.cont [10/16] 0.0, 128
        %4048 = vxpose.xlu0.b32.cont [11/16] 0.0, 128
        %4049 = vxpose.xlu0.b32.cont [12/16] 0.0, 128
        %4050 = vxpose.xlu0.b32.cont [13/16] 0.0, 128
        %4051 = vxpose.xlu0.b32.cont [14/16] 0.0, 128
        %4052 = vxpose.xlu0.b32.cont [15/16] 0.0, 128
        %4053 = vxpose.xlu0.b32.end [16/16] 0.0, 128
        %v4054 = vpop.trf.xlu0
        %v4055 = vpop.trf.xlu0
        %v4056 = vpop.trf.xlu0
        %v4057 = vpop.trf.xlu0
        %v4058 = vpop.trf.xlu0
        %v4059 = vpop.trf.xlu0
        %v4060 = vpop.trf.xlu0
        %v4061 = vpop.trf.xlu0
        %v4062 = vpop.trf.xlu0
        %v4063 = vpop.trf.xlu0
        %v4064 = vpop.trf.xlu0
        %v4065 = vpop.trf.xlu0
        %v4066 = vpop.trf.xlu0
        %v4067 = vpop.trf.xlu0
        %v4068 = vpop.trf.xlu0
        %v4069 = vpop.trf.xlu0
        %4070 = vxpose.xlu0.b32.start [1/16] %v3410, 128
        %4071 = vxpose.xlu0.b32.cont [2/16] 0.0, 128
        %4072 = vxpose.xlu0.b32.cont [3/16] 0.0, 128
        %4073 = vxpose.xlu0.b32.cont [4/16] 0.0, 128
        %4074 = vxpose.xlu0.b32.cont [5/16] 0.0, 128
        %4075 = vxpose.xlu0.b32.cont [6/16] 0.0, 128
        %4076 = vxpose.xlu0.b32.cont [7/16] 0.0, 128
        %4077 = vxpose.xlu0.b32.cont [8/16] 0.0, 128
        %4078 = vxpose.xlu0.b32.cont [9/16] 0.0, 128
        %4079 = vxpose.xlu0.b32.cont [10/16] 0.0, 128
        %4080 = vxpose.xlu0.b32.cont [11/16] 0.0, 128
        %4081 = vxpose.xlu0.b32.cont [12/16] 0.0, 128
        %4082 = vxpose.xlu0.b32.cont [13/16] 0.0, 128
        %4083 = vxpose.xlu0.b32.cont [14/16] 0.0, 128
        %4084 = vxpose.xlu0.b32.cont [15/16] 0.0, 128
        %4085 = vxpose.xlu0.b32.end [16/16] 0.0, 128
        %v4086 = vpop.trf.xlu0
        %v4087 = vpop.trf.xlu0
        %v4088 = vpop.trf.xlu0
        %v4089 = vpop.trf.xlu0
        %v4090 = vpop.trf.xlu0
        %v4091 = vpop.trf.xlu0
        %v4092 = vpop.trf.xlu0
        %v4093 = vpop.trf.xlu0
        %v4094 = vpop.trf.xlu0
        %v4095 = vpop.trf.xlu0
        %v4096 = vpop.trf.xlu0
        %v4097 = vpop.trf.xlu0
        %v4098 = vpop.trf.xlu0
        %v4099 = vpop.trf.xlu0
        %v4100 = vpop.trf.xlu0
        %v4101 = vpop.trf.xlu0
        %4102 = vxpose.xlu0.b32.start [1/16] %v3411, 128
        %4103 = vxpose.xlu0.b32.cont [2/16] 0.0, 128
        %4104 = vxpose.xlu0.b32.cont [3/16] 0.0, 128
        %4105 = vxpose.xlu0.b32.cont [4/16] 0.0, 128
        %4106 = vxpose.xlu0.b32.cont [5/16] 0.0, 128
        %4107 = vxpose.xlu0.b32.cont [6/16] 0.0, 128
        %4108 = vxpose.xlu0.b32.cont [7/16] 0.0, 128
        %4109 = vxpose.xlu0.b32.cont [8/16] 0.0, 128
        %4110 = vxpose.xlu0.b32.cont [9/16] 0.0, 128
        %4111 = vxpose.xlu0.b32.cont [10/16] 0.0, 128
        %4112 = vxpose.xlu0.b32.cont [11/16] 0.0, 128
        %4113 = vxpose.xlu0.b32.cont [12/16] 0.0, 128
        %4114 = vxpose.xlu0.b32.cont [13/16] 0.0, 128
        %4115 = vxpose.xlu0.b32.cont [14/16] 0.0, 128
        %4116 = vxpose.xlu0.b32.cont [15/16] 0.0, 128
        %4117 = vxpose.xlu0.b32.end [16/16] 0.0, 128
        %v4118 = vpop.trf.xlu0
        %v4119 = vpop.trf.xlu0
        %v4120 = vpop.trf.xlu0
        %v4121 = vpop.trf.xlu0
        %v4122 = vpop.trf.xlu0
        %v4123 = vpop.trf.xlu0
        %v4124 = vpop.trf.xlu0
        %v4125 = vpop.trf.xlu0
        %v4126 = vpop.trf.xlu0
        %v4127 = vpop.trf.xlu0
        %v4128 = vpop.trf.xlu0
        %v4129 = vpop.trf.xlu0
        %v4130 = vpop.trf.xlu0
        %v4131 = vpop.trf.xlu0
        %v4132 = vpop.trf.xlu0
        %v4133 = vpop.trf.xlu0
        %4134 = vxpose.xlu0.b32.start [1/16] %v3412, 128
        %4135 = vxpose.xlu0.b32.cont [2/16] 0.0, 128
        %4136 = vxpose.xlu0.b32.cont [3/16] 0.0, 128
        %4137 = vxpose.xlu0.b32.cont [4/16] 0.0, 128
        %4138 = vxpose.xlu0.b32.cont [5/16] 0.0, 128
        %4139 = vxpose.xlu0.b32.cont [6/16] 0.0, 128
        %4140 = vxpose.xlu0.b32.cont [7/16] 0.0, 128
        %4141 = vxpose.xlu0.b32.cont [8/16] 0.0, 128
        %4142 = vxpose.xlu0.b32.cont [9/16] 0.0, 128
        %4143 = vxpose.xlu0.b32.cont [10/16] 0.0, 128
        %4144 = vxpose.xlu0.b32.cont [11/16] 0.0, 128
        %4145 = vxpose.xlu0.b32.cont [12/16] 0.0, 128
        %4146 = vxpose.xlu0.b32.cont [13/16] 0.0, 128
        %4147 = vxpose.xlu0.b32.cont [14/16] 0.0, 128
        %4148 = vxpose.xlu0.b32.cont [15/16] 0.0, 128
        %4149 = vxpose.xlu0.b32.end [16/16] 0.0, 128
        %v4150 = vpop.trf.xlu0
        %v4151 = vpop.trf.xlu0
        %v4152 = vpop.trf.xlu0
        %v4153 = vpop.trf.xlu0
        %v4154 = vpop.trf.xlu0
        %v4155 = vpop.trf.xlu0
        %v4156 = vpop.trf.xlu0
        %v4157 = vpop.trf.xlu0
        %v4158 = vpop.trf.xlu0
        %v4159 = vpop.trf.xlu0
        %v4160 = vpop.trf.xlu0
        %v4161 = vpop.trf.xlu0
        %v4162 = vpop.trf.xlu0
        %v4163 = vpop.trf.xlu0
        %v4164 = vpop.trf.xlu0
        %v4165 = vpop.trf.xlu0
        %4166 = vxpose.xlu0.b32.start [1/16] %v3413, 128
        %4167 = vxpose.xlu0.b32.cont [2/16] 0.0, 128
        %4168 = vxpose.xlu0.b32.cont [3/16] 0.0, 128
        %4169 = vxpose.xlu0.b32.cont [4/16] 0.0, 128
        %4170 = vxpose.xlu0.b32.cont [5/16] 0.0, 128
        %4171 = vxpose.xlu0.b32.cont [6/16] 0.0, 128
        %4172 = vxpose.xlu0.b32.cont [7/16] 0.0, 128
        %4173 = vxpose.xlu0.b32.cont [8/16] 0.0, 128
        %4174 = vxpose.xlu0.b32.cont [9/16] 0.0, 128
        %4175 = vxpose.xlu0.b32.cont [10/16] 0.0, 128
        %4176 = vxpose.xlu0.b32.cont [11/16] 0.0, 128
        %4177 = vxpose.xlu0.b32.cont [12/16] 0.0, 128
        %4178 = vxpose.xlu0.b32.cont [13/16] 0.0, 128
        %4179 = vxpose.xlu0.b32.cont [14/16] 0.0, 128
        %4180 = vxpose.xlu0.b32.cont [15/16] 0.0, 128
        %4181 = vxpose.xlu0.b32.end [16/16] 0.0, 128
        %v4182 = vpop.trf.xlu0
        %v4183 = vpop.trf.xlu0
        %v4184 = vpop.trf.xlu0
        %v4185 = vpop.trf.xlu0
        %v4186 = vpop.trf.xlu0
        %v4187 = vpop.trf.xlu0
        %v4188 = vpop.trf.xlu0
        %v4189 = vpop.trf.xlu0
        %v4190 = vpop.trf.xlu0
        %v4191 = vpop.trf.xlu0
        %v4192 = vpop.trf.xlu0
        %v4193 = vpop.trf.xlu0
        %v4194 = vpop.trf.xlu0
        %v4195 = vpop.trf.xlu0
        %v4196 = vpop.trf.xlu0
        %v4197 = vpop.trf.xlu0
        %4198 = vxpose.xlu0.b32.start [1/16] %v3542, 128
        %4199 = vxpose.xlu0.b32.cont [2/16] 0.0, 128
        %4200 = vxpose.xlu0.b32.cont [3/16] 0.0, 128
        %4201 = vxpose.xlu0.b32.cont [4/16] 0.0, 128
        %4202 = vxpose.xlu0.b32.cont [5/16] 0.0, 128
        %4203 = vxpose.xlu0.b32.cont [6/16] 0.0, 128
        %4204 = vxpose.xlu0.b32.cont [7/16] 0.0, 128
        %4205 = vxpose.xlu0.b32.cont [8/16] 0.0, 128
        %4206 = vxpose.xlu0.b32.cont [9/16] 0.0, 128
        %4207 = vxpose.xlu0.b32.cont [10/16] 0.0, 128
        %4208 = vxpose.xlu0.b32.cont [11/16] 0.0, 128
        %4209 = vxpose.xlu0.b32.cont [12/16] 0.0, 128
        %4210 = vxpose.xlu0.b32.cont [13/16] 0.0, 128
        %4211 = vxpose.xlu0.b32.cont [14/16] 0.0, 128
        %4212 = vxpose.xlu0.b32.cont [15/16] 0.0, 128
        %4213 = vxpose.xlu0.b32.end [16/16] 0.0, 128
        %v4214 = vpop.trf.xlu0
        %v4215 = vpop.trf.xlu0
        %v4216 = vpop.trf.xlu0
        %v4217 = vpop.trf.xlu0
        %v4218 = vpop.trf.xlu0
        %v4219 = vpop.trf.xlu0
        %v4220 = vpop.trf.xlu0
        %v4221 = vpop.trf.xlu0
        %v4222 = vpop.trf.xlu0
        %v4223 = vpop.trf.xlu0
        %v4224 = vpop.trf.xlu0
        %v4225 = vpop.trf.xlu0
        %v4226 = vpop.trf.xlu0
        %v4227 = vpop.trf.xlu0
        %v4228 = vpop.trf.xlu0
        %v4229 = vpop.trf.xlu0
        %4230 = vxpose.xlu0.b32.start [1/16] %v3543, 128
        %4231 = vxpose.xlu0.b32.cont [2/16] 0.0, 128
        %4232 = vxpose.xlu0.b32.cont [3/16] 0.0, 128
        %4233 = vxpose.xlu0.b32.cont [4/16] 0.0, 128
        %4234 = vxpose.xlu0.b32.cont [5/16] 0.0, 128
        %4235 = vxpose.xlu0.b32.cont [6/16] 0.0, 128
        %4236 = vxpose.xlu0.b32.cont [7/16] 0.0, 128
        %4237 = vxpose.xlu0.b32.cont [8/16] 0.0, 128
        %4238 = vxpose.xlu0.b32.cont [9/16] 0.0, 128
        %4239 = vxpose.xlu0.b32.cont [10/16] 0.0, 128
        %4240 = vxpose.xlu0.b32.cont [11/16] 0.0, 128
        %4241 = vxpose.xlu0.b32.cont [12/16] 0.0, 128
        %4242 = vxpose.xlu0.b32.cont [13/16] 0.0, 128
        %4243 = vxpose.xlu0.b32.cont [14/16] 0.0, 128
        %4244 = vxpose.xlu0.b32.cont [15/16] 0.0, 128
        %4245 = vxpose.xlu0.b32.end [16/16] 0.0, 128
        %v4246 = vpop.trf.xlu0
        %v4247 = vpop.trf.xlu0
        %v4248 = vpop.trf.xlu0
        %v4249 = vpop.trf.xlu0
        %v4250 = vpop.trf.xlu0
        %v4251 = vpop.trf.xlu0
        %v4252 = vpop.trf.xlu0
        %v4253 = vpop.trf.xlu0
        %v4254 = vpop.trf.xlu0
        %v4255 = vpop.trf.xlu0
        %v4256 = vpop.trf.xlu0
        %v4257 = vpop.trf.xlu0
        %v4258 = vpop.trf.xlu0
        %v4259 = vpop.trf.xlu0
        %v4260 = vpop.trf.xlu0
        %v4261 = vpop.trf.xlu0
        %4262 = vxpose.xlu0.b32.start [1/16] %v3544, 128
        %4263 = vxpose.xlu0.b32.cont [2/16] 0.0, 128
        %4264 = vxpose.xlu0.b32.cont [3/16] 0.0, 128
        %4265 = vxpose.xlu0.b32.cont [4/16] 0.0, 128
        %4266 = vxpose.xlu0.b32.cont [5/16] 0.0, 128
        %4267 = vxpose.xlu0.b32.cont [6/16] 0.0, 128
        %4268 = vxpose.xlu0.b32.cont [7/16] 0.0, 128
        %4269 = vxpose.xlu0.b32.cont [8/16] 0.0, 128
        %4270 = vxpose.xlu0.b32.cont [9/16] 0.0, 128
        %4271 = vxpose.xlu0.b32.cont [10/16] 0.0, 128
        %4272 = vxpose.xlu0.b32.cont [11/16] 0.0, 128
        %4273 = vxpose.xlu0.b32.cont [12/16] 0.0, 128
        %4274 = vxpose.xlu0.b32.cont [13/16] 0.0, 128
        %4275 = vxpose.xlu0.b32.cont [14/16] 0.0, 128
        %4276 = vxpose.xlu0.b32.cont [15/16] 0.0, 128
        %4277 = vxpose.xlu0.b32.end [16/16] 0.0, 128
        %v4278 = vpop.trf.xlu0
        %v4279 = vpop.trf.xlu0
        %v4280 = vpop.trf.xlu0
        %v4281 = vpop.trf.xlu0
        %v4282 = vpop.trf.xlu0
        %v4283 = vpop.trf.xlu0
        %v4284 = vpop.trf.xlu0
        %v4285 = vpop.trf.xlu0
        %v4286 = vpop.trf.xlu0
        %v4287 = vpop.trf.xlu0
        %v4288 = vpop.trf.xlu0
        %v4289 = vpop.trf.xlu0
        %v4290 = vpop.trf.xlu0
        %v4291 = vpop.trf.xlu0
        %v4292 = vpop.trf.xlu0
        %v4293 = vpop.trf.xlu0
        %4294 = vxpose.xlu0.b32.start [1/16] %v3545, 128
        %4295 = vxpose.xlu0.b32.cont [2/16] 0.0, 128
        %4296 = vxpose.xlu0.b32.cont [3/16] 0.0, 128
        %4297 = vxpose.xlu0.b32.cont [4/16] 0.0, 128
        %4298 = vxpose.xlu0.b32.cont [5/16] 0.0, 128
        %4299 = vxpose.xlu0.b32.cont [6/16] 0.0, 128
        %4300 = vxpose.xlu0.b32.cont [7/16] 0.0, 128
        %4301 = vxpose.xlu0.b32.cont [8/16] 0.0, 128
        %4302 = vxpose.xlu0.b32.cont [9/16] 0.0, 128
        %4303 = vxpose.xlu0.b32.cont [10/16] 0.0, 128
        %4304 = vxpose.xlu0.b32.cont [11/16] 0.0, 128
        %4305 = vxpose.xlu0.b32.cont [12/16] 0.0, 128
        %4306 = vxpose.xlu0.b32.cont [13/16] 0.0, 128
        %4307 = vxpose.xlu0.b32.cont [14/16] 0.0, 128
        %4308 = vxpose.xlu0.b32.cont [15/16] 0.0, 128
        %4309 = vxpose.xlu0.b32.end [16/16] 0.0, 128
        %v4310 = vpop.trf.xlu0
        %v4311 = vpop.trf.xlu0
        %v4312 = vpop.trf.xlu0
        %v4313 = vpop.trf.xlu0
        %v4314 = vpop.trf.xlu0
        %v4315 = vpop.trf.xlu0
        %v4316 = vpop.trf.xlu0
        %v4317 = vpop.trf.xlu0
        %v4318 = vpop.trf.xlu0
        %v4319 = vpop.trf.xlu0
        %v4320 = vpop.trf.xlu0
        %v4321 = vpop.trf.xlu0
        %v4322 = vpop.trf.xlu0
        %v4323 = vpop.trf.xlu0
        %v4324 = vpop.trf.xlu0
        %v4325 = vpop.trf.xlu0
        %4326 = vxpose.xlu0.b32.start [1/16] %v3546, 128
        %4327 = vxpose.xlu0.b32.cont [2/16] 0.0, 128
        %4328 = vxpose.xlu0.b32.cont [3/16] 0.0, 128
        %4329 = vxpose.xlu0.b32.cont [4/16] 0.0, 128
        %4330 = vxpose.xlu0.b32.cont [5/16] 0.0, 128
        %4331 = vxpose.xlu0.b32.cont [6/16] 0.0, 128
        %4332 = vxpose.xlu0.b32.cont [7/16] 0.0, 128
        %4333 = vxpose.xlu0.b32.cont [8/16] 0.0, 128
        %4334 = vxpose.xlu0.b32.cont [9/16] 0.0, 128
        %4335 = vxpose.xlu0.b32.cont [10/16] 0.0, 128
        %4336 = vxpose.xlu0.b32.cont [11/16] 0.0, 128
        %4337 = vxpose.xlu0.b32.cont [12/16] 0.0, 128
        %4338 = vxpose.xlu0.b32.cont [13/16] 0.0, 128
        %4339 = vxpose.xlu0.b32.cont [14/16] 0.0, 128
        %4340 = vxpose.xlu0.b32.cont [15/16] 0.0, 128
        %4341 = vxpose.xlu0.b32.end [16/16] 0.0, 128
        %v4342 = vpop.trf.xlu0
        %v4343 = vpop.trf.xlu0
        %v4344 = vpop.trf.xlu0
        %v4345 = vpop.trf.xlu0
        %v4346 = vpop.trf.xlu0
        %v4347 = vpop.trf.xlu0
        %v4348 = vpop.trf.xlu0
        %v4349 = vpop.trf.xlu0
        %v4350 = vpop.trf.xlu0
        %v4351 = vpop.trf.xlu0
        %v4352 = vpop.trf.xlu0
        %v4353 = vpop.trf.xlu0
        %v4354 = vpop.trf.xlu0
        %v4355 = vpop.trf.xlu0
        %v4356 = vpop.trf.xlu0
        %v4357 = vpop.trf.xlu0
        %4358 = vxpose.xlu0.b32.start [1/16] %v3547, 128
        %4359 = vxpose.xlu0.b32.cont [2/16] 0.0, 128
        %4360 = vxpose.xlu0.b32.cont [3/16] 0.0, 128
        %4361 = vxpose.xlu0.b32.cont [4/16] 0.0, 128
        %4362 = vxpose.xlu0.b32.cont [5/16] 0.0, 128
        %4363 = vxpose.xlu0.b32.cont [6/16] 0.0, 128
        %4364 = vxpose.xlu0.b32.cont [7/16] 0.0, 128
        %4365 = vxpose.xlu0.b32.cont [8/16] 0.0, 128
        %4366 = vxpose.xlu0.b32.cont [9/16] 0.0, 128
        %4367 = vxpose.xlu0.b32.cont [10/16] 0.0, 128
        %4368 = vxpose.xlu0.b32.cont [11/16] 0.0, 128
        %4369 = vxpose.xlu0.b32.cont [12/16] 0.0, 128
        %4370 = vxpose.xlu0.b32.cont [13/16] 0.0, 128
        %4371 = vxpose.xlu0.b32.cont [14/16] 0.0, 128
        %4372 = vxpose.xlu0.b32.cont [15/16] 0.0, 128
        %4373 = vxpose.xlu0.b32.end [16/16] 0.0, 128
        %v4374 = vpop.trf.xlu0
        %v4375 = vpop.trf.xlu0
        %v4376 = vpop.trf.xlu0
        %v4377 = vpop.trf.xlu0
        %v4378 = vpop.trf.xlu0
        %v4379 = vpop.trf.xlu0
        %v4380 = vpop.trf.xlu0
        %v4381 = vpop.trf.xlu0
        %v4382 = vpop.trf.xlu0
        %v4383 = vpop.trf.xlu0
        %v4384 = vpop.trf.xlu0
        %v4385 = vpop.trf.xlu0
        %v4386 = vpop.trf.xlu0
        %v4387 = vpop.trf.xlu0
        %v4388 = vpop.trf.xlu0
        %v4389 = vpop.trf.xlu0
        %4390 = vxpose.xlu0.b32.start [1/16] %v3548, 128
        %4391 = vxpose.xlu0.b32.cont [2/16] 0.0, 128
        %4392 = vxpose.xlu0.b32.cont [3/16] 0.0, 128
        %4393 = vxpose.xlu0.b32.cont [4/16] 0.0, 128
        %4394 = vxpose.xlu0.b32.cont [5/16] 0.0, 128
        %4395 = vxpose.xlu0.b32.cont [6/16] 0.0, 128
        %4396 = vxpose.xlu0.b32.cont [7/16] 0.0, 128
        %4397 = vxpose.xlu0.b32.cont [8/16] 0.0, 128
        %4398 = vxpose.xlu0.b32.cont [9/16] 0.0, 128
        %4399 = vxpose.xlu0.b32.cont [10/16] 0.0, 128
        %4400 = vxpose.xlu0.b32.cont [11/16] 0.0, 128
        %4401 = vxpose.xlu0.b32.cont [12/16] 0.0, 128
        %4402 = vxpose.xlu0.b32.cont [13/16] 0.0, 128
        %4403 = vxpose.xlu0.b32.cont [14/16] 0.0, 128
        %4404 = vxpose.xlu0.b32.cont [15/16] 0.0, 128
        %4405 = vxpose.xlu0.b32.end [16/16] 0.0, 128
        %v4406 = vpop.trf.xlu0
        %v4407 = vpop.trf.xlu0
        %v4408 = vpop.trf.xlu0
        %v4409 = vpop.trf.xlu0
        %v4410 = vpop.trf.xlu0
        %v4411 = vpop.trf.xlu0
        %v4412 = vpop.trf.xlu0
        %v4413 = vpop.trf.xlu0
        %v4414 = vpop.trf.xlu0
        %v4415 = vpop.trf.xlu0
        %v4416 = vpop.trf.xlu0
        %v4417 = vpop.trf.xlu0
        %v4418 = vpop.trf.xlu0
        %v4419 = vpop.trf.xlu0
        %v4420 = vpop.trf.xlu0
        %v4421 = vpop.trf.xlu0
        %4422 = vxpose.xlu0.b32.start [1/16] %v3549, 128
        %4423 = vxpose.xlu0.b32.cont [2/16] 0.0, 128
        %4424 = vxpose.xlu0.b32.cont [3/16] 0.0, 128
        %4425 = vxpose.xlu0.b32.cont [4/16] 0.0, 128
        %4426 = vxpose.xlu0.b32.cont [5/16] 0.0, 128
        %4427 = vxpose.xlu0.b32.cont [6/16] 0.0, 128
        %4428 = vxpose.xlu0.b32.cont [7/16] 0.0, 128
        %4429 = vxpose.xlu0.b32.cont [8/16] 0.0, 128
        %4430 = vxpose.xlu0.b32.cont [9/16] 0.0, 128
        %4431 = vxpose.xlu0.b32.cont [10/16] 0.0, 128
        %4432 = vxpose.xlu0.b32.cont [11/16] 0.0, 128
        %4433 = vxpose.xlu0.b32.cont [12/16] 0.0, 128
        %4434 = vxpose.xlu0.b32.cont [13/16] 0.0, 128
        %4435 = vxpose.xlu0.b32.cont [14/16] 0.0, 128
        %4436 = vxpose.xlu0.b32.cont [15/16] 0.0, 128
        %4437 = vxpose.xlu0.b32.end [16/16] 0.0, 128
        %v4438 = vpop.trf.xlu0
        %v4439 = vpop.trf.xlu0
        %v4440 = vpop.trf.xlu0
        %v4441 = vpop.trf.xlu0
        %v4442 = vpop.trf.xlu0
        %v4443 = vpop.trf.xlu0
        %v4444 = vpop.trf.xlu0
        %v4445 = vpop.trf.xlu0
        %v4446 = vpop.trf.xlu0
        %v4447 = vpop.trf.xlu0
        %v4448 = vpop.trf.xlu0
        %v4449 = vpop.trf.xlu0
        %v4450 = vpop.trf.xlu0
        %v4451 = vpop.trf.xlu0
        %v4452 = vpop.trf.xlu0
        %v4453 = vpop.trf.xlu0
        %4454 = vxpose.xlu0.b32.start [1/16] %v3678, 128
        %4455 = vxpose.xlu0.b32.cont [2/16] 0.0, 128
        %4456 = vxpose.xlu0.b32.cont [3/16] 0.0, 128
        %4457 = vxpose.xlu0.b32.cont [4/16] 0.0, 128
        %4458 = vxpose.xlu0.b32.cont [5/16] 0.0, 128
        %4459 = vxpose.xlu0.b32.cont [6/16] 0.0, 128
        %4460 = vxpose.xlu0.b32.cont [7/16] 0.0, 128
        %4461 = vxpose.xlu0.b32.cont [8/16] 0.0, 128
        %4462 = vxpose.xlu0.b32.cont [9/16] 0.0, 128
        %4463 = vxpose.xlu0.b32.cont [10/16] 0.0, 128
        %4464 = vxpose.xlu0.b32.cont [11/16] 0.0, 128
        %4465 = vxpose.xlu0.b32.cont [12/16] 0.0, 128
        %4466 = vxpose.xlu0.b32.cont [13/16] 0.0, 128
        %4467 = vxpose.xlu0.b32.cont [14/16] 0.0, 128
        %4468 = vxpose.xlu0.b32.cont [15/16] 0.0, 128
        %4469 = vxpose.xlu0.b32.end [16/16] 0.0, 128
        %v4470 = vpop.trf.xlu0
        %v4471 = vpop.trf.xlu0
        %v4472 = vpop.trf.xlu0
        %v4473 = vpop.trf.xlu0
        %v4474 = vpop.trf.xlu0
        %v4475 = vpop.trf.xlu0
        %v4476 = vpop.trf.xlu0
        %v4477 = vpop.trf.xlu0
        %v4478 = vpop.trf.xlu0
        %v4479 = vpop.trf.xlu0
        %v4480 = vpop.trf.xlu0
        %v4481 = vpop.trf.xlu0
        %v4482 = vpop.trf.xlu0
        %v4483 = vpop.trf.xlu0
        %v4484 = vpop.trf.xlu0
        %v4485 = vpop.trf.xlu0
        %4486 = vxpose.xlu0.b32.start [1/16] %v3679, 128
        %4487 = vxpose.xlu0.b32.cont [2/16] 0.0, 128
        %4488 = vxpose.xlu0.b32.cont [3/16] 0.0, 128
        %4489 = vxpose.xlu0.b32.cont [4/16] 0.0, 128
        %4490 = vxpose.xlu0.b32.cont [5/16] 0.0, 128
        %4491 = vxpose.xlu0.b32.cont [6/16] 0.0, 128
        %4492 = vxpose.xlu0.b32.cont [7/16] 0.0, 128
        %4493 = vxpose.xlu0.b32.cont [8/16] 0.0, 128
        %4494 = vxpose.xlu0.b32.cont [9/16] 0.0, 128
        %4495 = vxpose.xlu0.b32.cont [10/16] 0.0, 128
        %4496 = vxpose.xlu0.b32.cont [11/16] 0.0, 128
        %4497 = vxpose.xlu0.b32.cont [12/16] 0.0, 128
        %4498 = vxpose.xlu0.b32.cont [13/16] 0.0, 128
        %4499 = vxpose.xlu0.b32.cont [14/16] 0.0, 128
        %4500 = vxpose.xlu0.b32.cont [15/16] 0.0, 128
        %4501 = vxpose.xlu0.b32.end [16/16] 0.0, 128
        %v4502 = vpop.trf.xlu0
        %v4503 = vpop.trf.xlu0
        %v4504 = vpop.trf.xlu0
        %v4505 = vpop.trf.xlu0
        %v4506 = vpop.trf.xlu0
        %v4507 = vpop.trf.xlu0
        %v4508 = vpop.trf.xlu0
        %v4509 = vpop.trf.xlu0
        %v4510 = vpop.trf.xlu0
        %v4511 = vpop.trf.xlu0
        %v4512 = vpop.trf.xlu0
        %v4513 = vpop.trf.xlu0
        %v4514 = vpop.trf.xlu0
        %v4515 = vpop.trf.xlu0
        %v4516 = vpop.trf.xlu0
        %v4517 = vpop.trf.xlu0
        %4518 = vxpose.xlu0.b32.start [1/16] %v3680, 128
        %4519 = vxpose.xlu0.b32.cont [2/16] 0.0, 128
        %4520 = vxpose.xlu0.b32.cont [3/16] 0.0, 128
        %4521 = vxpose.xlu0.b32.cont [4/16] 0.0, 128
        %4522 = vxpose.xlu0.b32.cont [5/16] 0.0, 128
        %4523 = vxpose.xlu0.b32.cont [6/16] 0.0, 128
        %4524 = vxpose.xlu0.b32.cont [7/16] 0.0, 128
        %4525 = vxpose.xlu0.b32.cont [8/16] 0.0, 128
        %4526 = vxpose.xlu0.b32.cont [9/16] 0.0, 128
        %4527 = vxpose.xlu0.b32.cont [10/16] 0.0, 128
        %4528 = vxpose.xlu0.b32.cont [11/16] 0.0, 128
        %4529 = vxpose.xlu0.b32.cont [12/16] 0.0, 128
        %4530 = vxpose.xlu0.b32.cont [13/16] 0.0, 128
        %4531 = vxpose.xlu0.b32.cont [14/16] 0.0, 128
        %4532 = vxpose.xlu0.b32.cont [15/16] 0.0, 128
        %4533 = vxpose.xlu0.b32.end [16/16] 0.0, 128
        %v4534 = vpop.trf.xlu0
        %v4535 = vpop.trf.xlu0
        %v4536 = vpop.trf.xlu0
        %v4537 = vpop.trf.xlu0
        %v4538 = vpop.trf.xlu0
        %v4539 = vpop.trf.xlu0
        %v4540 = vpop.trf.xlu0
        %v4541 = vpop.trf.xlu0
        %v4542 = vpop.trf.xlu0
        %v4543 = vpop.trf.xlu0
        %v4544 = vpop.trf.xlu0
        %v4545 = vpop.trf.xlu0
        %v4546 = vpop.trf.xlu0
        %v4547 = vpop.trf.xlu0
        %v4548 = vpop.trf.xlu0
        %v4549 = vpop.trf.xlu0
        %4550 = vxpose.xlu0.b32.start [1/16] %v3681, 128
        %4551 = vxpose.xlu0.b32.cont [2/16] 0.0, 128
        %4552 = vxpose.xlu0.b32.cont [3/16] 0.0, 128
        %4553 = vxpose.xlu0.b32.cont [4/16] 0.0, 128
        %4554 = vxpose.xlu0.b32.cont [5/16] 0.0, 128
        %4555 = vxpose.xlu0.b32.cont [6/16] 0.0, 128
        %4556 = vxpose.xlu0.b32.cont [7/16] 0.0, 128
        %4557 = vxpose.xlu0.b32.cont [8/16] 0.0, 128
        %4558 = vxpose.xlu0.b32.cont [9/16] 0.0, 128
        %4559 = vxpose.xlu0.b32.cont [10/16] 0.0, 128
        %4560 = vxpose.xlu0.b32.cont [11/16] 0.0, 128
        %4561 = vxpose.xlu0.b32.cont [12/16] 0.0, 128
        %4562 = vxpose.xlu0.b32.cont [13/16] 0.0, 128
        %4563 = vxpose.xlu0.b32.cont [14/16] 0.0, 128
        %4564 = vxpose.xlu0.b32.cont [15/16] 0.0, 128
        %4565 = vxpose.xlu0.b32.end [16/16] 0.0, 128
        %v4566 = vpop.trf.xlu0
        %v4567 = vpop.trf.xlu0
        %v4568 = vpop.trf.xlu0
        %v4569 = vpop.trf.xlu0
        %v4570 = vpop.trf.xlu0
        %v4571 = vpop.trf.xlu0
        %v4572 = vpop.trf.xlu0
        %v4573 = vpop.trf.xlu0
        %v4574 = vpop.trf.xlu0
        %v4575 = vpop.trf.xlu0
        %v4576 = vpop.trf.xlu0
        %v4577 = vpop.trf.xlu0
        %v4578 = vpop.trf.xlu0
        %v4579 = vpop.trf.xlu0
        %v4580 = vpop.trf.xlu0
        %v4581 = vpop.trf.xlu0
        %4582 = vxpose.xlu0.b32.start [1/16] %v3682, 128
        %4583 = vxpose.xlu0.b32.cont [2/16] 0.0, 128
        %4584 = vxpose.xlu0.b32.cont [3/16] 0.0, 128
        %4585 = vxpose.xlu0.b32.cont [4/16] 0.0, 128
        %4586 = vxpose.xlu0.b32.cont [5/16] 0.0, 128
        %4587 = vxpose.xlu0.b32.cont [6/16] 0.0, 128
        %4588 = vxpose.xlu0.b32.cont [7/16] 0.0, 128
        %4589 = vxpose.xlu0.b32.cont [8/16] 0.0, 128
        %4590 = vxpose.xlu0.b32.cont [9/16] 0.0, 128
        %4591 = vxpose.xlu0.b32.cont [10/16] 0.0, 128
        %4592 = vxpose.xlu0.b32.cont [11/16] 0.0, 128
        %4593 = vxpose.xlu0.b32.cont [12/16] 0.0, 128
        %4594 = vxpose.xlu0.b32.cont [13/16] 0.0, 128
        %4595 = vxpose.xlu0.b32.cont [14/16] 0.0, 128
        %4596 = vxpose.xlu0.b32.cont [15/16] 0.0, 128
        %4597 = vxpose.xlu0.b32.end [16/16] 0.0, 128
        %v4598 = vpop.trf.xlu0
        %v4599 = vpop.trf.xlu0
        %v4600 = vpop.trf.xlu0
        %v4601 = vpop.trf.xlu0
        %v4602 = vpop.trf.xlu0
        %v4603 = vpop.trf.xlu0
        %v4604 = vpop.trf.xlu0
        %v4605 = vpop.trf.xlu0
        %v4606 = vpop.trf.xlu0
        %v4607 = vpop.trf.xlu0
        %v4608 = vpop.trf.xlu0
        %v4609 = vpop.trf.xlu0
        %v4610 = vpop.trf.xlu0
        %v4611 = vpop.trf.xlu0
        %v4612 = vpop.trf.xlu0
        %v4613 = vpop.trf.xlu0
        %4614 = vxpose.xlu0.b32.start [1/16] %v3683, 128
        %4615 = vxpose.xlu0.b32.cont [2/16] 0.0, 128
        %4616 = vxpose.xlu0.b32.cont [3/16] 0.0, 128
        %4617 = vxpose.xlu0.b32.cont [4/16] 0.0, 128
        %4618 = vxpose.xlu0.b32.cont [5/16] 0.0, 128
        %4619 = vxpose.xlu0.b32.cont [6/16] 0.0, 128
        %4620 = vxpose.xlu0.b32.cont [7/16] 0.0, 128
        %4621 = vxpose.xlu0.b32.cont [8/16] 0.0, 128
        %4622 = vxpose.xlu0.b32.cont [9/16] 0.0, 128
        %4623 = vxpose.xlu0.b32.cont [10/16] 0.0, 128
        %4624 = vxpose.xlu0.b32.cont [11/16] 0.0, 128
        %4625 = vxpose.xlu0.b32.cont [12/16] 0.0, 128
        %4626 = vxpose.xlu0.b32.cont [13/16] 0.0, 128
        %4627 = vxpose.xlu0.b32.cont [14/16] 0.0, 128
        %4628 = vxpose.xlu0.b32.cont [15/16] 0.0, 128
        %4629 = vxpose.xlu0.b32.end [16/16] 0.0, 128
        %v4630 = vpop.trf.xlu0
        %v4631 = vpop.trf.xlu0
        %v4632 = vpop.trf.xlu0
        %v4633 = vpop.trf.xlu0
        %v4634 = vpop.trf.xlu0
        %v4635 = vpop.trf.xlu0
        %v4636 = vpop.trf.xlu0
        %v4637 = vpop.trf.xlu0
        %v4638 = vpop.trf.xlu0
        %v4639 = vpop.trf.xlu0
        %v4640 = vpop.trf.xlu0
        %v4641 = vpop.trf.xlu0
        %v4642 = vpop.trf.xlu0
        %v4643 = vpop.trf.xlu0
        %v4644 = vpop.trf.xlu0
        %v4645 = vpop.trf.xlu0
        %4646 = vxpose.xlu0.b32.start [1/16] %v3684, 128
        %4647 = vxpose.xlu0.b32.cont [2/16] 0.0, 128
        %4648 = vxpose.xlu0.b32.cont [3/16] 0.0, 128
        %4649 = vxpose.xlu0.b32.cont [4/16] 0.0, 128
        %4650 = vxpose.xlu0.b32.cont [5/16] 0.0, 128
        %4651 = vxpose.xlu0.b32.cont [6/16] 0.0, 128
        %4652 = vxpose.xlu0.b32.cont [7/16] 0.0, 128
        %4653 = vxpose.xlu0.b32.cont [8/16] 0.0, 128
        %4654 = vxpose.xlu0.b32.cont [9/16] 0.0, 128
        %4655 = vxpose.xlu0.b32.cont [10/16] 0.0, 128
        %4656 = vxpose.xlu0.b32.cont [11/16] 0.0, 128
        %4657 = vxpose.xlu0.b32.cont [12/16] 0.0, 128
        %4658 = vxpose.xlu0.b32.cont [13/16] 0.0, 128
        %4659 = vxpose.xlu0.b32.cont [14/16] 0.0, 128
        %4660 = vxpose.xlu0.b32.cont [15/16] 0.0, 128
        %4661 = vxpose.xlu0.b32.end [16/16] 0.0, 128
        %v4662 = vpop.trf.xlu0
        %v4663 = vpop.trf.xlu0
        %v4664 = vpop.trf.xlu0
        %v4665 = vpop.trf.xlu0
        %v4666 = vpop.trf.xlu0
        %v4667 = vpop.trf.xlu0
        %v4668 = vpop.trf.xlu0
        %v4669 = vpop.trf.xlu0
        %v4670 = vpop.trf.xlu0
        %v4671 = vpop.trf.xlu0
        %v4672 = vpop.trf.xlu0
        %v4673 = vpop.trf.xlu0
        %v4674 = vpop.trf.xlu0
        %v4675 = vpop.trf.xlu0
        %v4676 = vpop.trf.xlu0
        %v4677 = vpop.trf.xlu0
        %4678 = vxpose.xlu0.b32.start [1/16] %v3685, 128
        %4679 = vxpose.xlu0.b32.cont [2/16] 0.0, 128
        %4680 = vxpose.xlu0.b32.cont [3/16] 0.0, 128
        %4681 = vxpose.xlu0.b32.cont [4/16] 0.0, 128
        %4682 = vxpose.xlu0.b32.cont [5/16] 0.0, 128
        %4683 = vxpose.xlu0.b32.cont [6/16] 0.0, 128
        %4684 = vxpose.xlu0.b32.cont [7/16] 0.0, 128
        %4685 = vxpose.xlu0.b32.cont [8/16] 0.0, 128
        %4686 = vxpose.xlu0.b32.cont [9/16] 0.0, 128
        %4687 = vxpose.xlu0.b32.cont [10/16] 0.0, 128
        %4688 = vxpose.xlu0.b32.cont [11/16] 0.0, 128
        %4689 = vxpose.xlu0.b32.cont [12/16] 0.0, 128
        %4690 = vxpose.xlu0.b32.cont [13/16] 0.0, 128
        %4691 = vxpose.xlu0.b32.cont [14/16] 0.0, 128
        %4692 = vxpose.xlu0.b32.cont [15/16] 0.0, 128
        %4693 = vxpose.xlu0.b32.end [16/16] 0.0, 128
        %v4694 = vpop.trf.xlu0
        %v4695 = vpop.trf.xlu0
        %v4696 = vpop.trf.xlu0
        %v4697 = vpop.trf.xlu0
        %v4698 = vpop.trf.xlu0
        %v4699 = vpop.trf.xlu0
        %v4700 = vpop.trf.xlu0
        %v4701 = vpop.trf.xlu0
        %v4702 = vpop.trf.xlu0
        %v4703 = vpop.trf.xlu0
        %v4704 = vpop.trf.xlu0
        %v4705 = vpop.trf.xlu0
        %v4706 = vpop.trf.xlu0
        %v4707 = vpop.trf.xlu0
        %v4708 = vpop.trf.xlu0
        %v4709 = vpop.trf.xlu0
        %v4710 = vcombine.low %v3702, %v3766
        %v4712 = vunpack.c.l.s4 1983009808
        %v4713 = vunpack.c.0.s8 %v4712
        %v4714 = vlaneseq
        %v4715 = vshrl.u32 %v4714, 7
        %v4716 = vsub.s32 %v4713, %v4715
        %v4717 = vrot.slane %v4710, %v4716
        %v4718 = vcombine.low %v3734, %v3798
        %v4720 = vunpack.c.l.s4 1983009808
        %v4721 = vunpack.c.0.s8 %v4720
        %v4722 = vlaneseq
        %v4723 = vshrl.u32 %v4722, 7
        %v4724 = vsub.s32 %v4721, %v4723
        %v4725 = vrot.slane %v4718, %v4724
        %v4726 = vcombine.low %v3830, %v3894
        %v4728 = vunpack.c.l.s4 1983009808
        %v4729 = vunpack.c.0.s8 %v4728
        %v4730 = vlaneseq
        %v4731 = vshrl.u32 %v4730, 7
        %v4732 = vsub.s32 %v4729, %v4731
        %v4733 = vrot.slane %v4726, %v4732
        %v4734 = vcombine.low %v3862, %v3926
        %v4736 = vunpack.c.l.s4 1983009808
        %v4737 = vunpack.c.0.s8 %v4736
        %v4738 = vlaneseq
        %v4739 = vshrl.u32 %v4738, 7
        %v4740 = vsub.s32 %v4737, %v4739
        %v4741 = vrot.slane %v4734, %v4740
        %v4742 = vcombine.low %v4717, %v4725
        %v4744 = vunpack.c.l.s4 1934713408
        %v4745 = vunpack.c.0.s8 %v4744
        %v4746 = vlaneseq
        %v4747 = vshrl.u32 %v4746, 7
        %v4748 = vsub.s32 %v4745, %v4747
        %v4749 = vrot.slane %v4742, %v4748
        %v4750 = vcombine.low %v4733, %v4741
        %v4752 = vunpack.c.l.s4 1934713408
        %v4753 = vunpack.c.0.s8 %v4752
        %v4754 = vlaneseq
        %v4755 = vshrl.u32 %v4754, 7
        %v4756 = vsub.s32 %v4753, %v4755
        %v4757 = vrot.slane %v4750, %v4756
        %v4758 = vcombine.low %v4749, %v4757
        %v4759 = vcombine.low %v3958, %v4022
        %v4761 = vunpack.c.l.s4 1983009808
        %v4762 = vunpack.c.0.s8 %v4761
        %v4763 = vlaneseq
        %v4764 = vshrl.u32 %v4763, 7
        %v4765 = vsub.s32 %v4762, %v4764
        %v4766 = vrot.slane %v4759, %v4765
        %v4767 = vcombine.low %v3990, %v4054
        %v4769 = vunpack.c.l.s4 1983009808
        %v4770 = vunpack.c.0.s8 %v4769
        %v4771 = vlaneseq
        %v4772 = vshrl.u32 %v4771, 7
        %v4773 = vsub.s32 %v4770, %v4772
        %v4774 = vrot.slane %v4767, %v4773
        %v4775 = vcombine.low %v4086, %v4150
        %v4777 = vunpack.c.l.s4 1983009808
        %v4778 = vunpack.c.0.s8 %v4777
        %v4779 = vlaneseq
        %v4780 = vshrl.u32 %v4779, 7
        %v4781 = vsub.s32 %v4778, %v4780
        %v4782 = vrot.slane %v4775, %v4781
        %v4783 = vcombine.low %v4118, %v4182
        %v4785 = vunpack.c.l.s4 1983009808
        %v4786 = vunpack.c.0.s8 %v4785
        %v4787 = vlaneseq
        %v4788 = vshrl.u32 %v4787, 7
        %v4789 = vsub.s32 %v4786, %v4788
        %v4790 = vrot.slane %v4783, %v4789
        %v4791 = vcombine.low %v4766, %v4774
        %v4793 = vunpack.c.l.s4 1934713408
        %v4794 = vunpack.c.0.s8 %v4793
        %v4795 = vlaneseq
        %v4796 = vshrl.u32 %v4795, 7
        %v4797 = vsub.s32 %v4794, %v4796
        %v4798 = vrot.slane %v4791, %v4797
        %v4799 = vcombine.low %v4782, %v4790
        %v4801 = vunpack.c.l.s4 1934713408
        %v4802 = vunpack.c.0.s8 %v4801
        %v4803 = vlaneseq
        %v4804 = vshrl.u32 %v4803, 7
        %v4805 = vsub.s32 %v4802, %v4804
        %v4806 = vrot.slane %v4799, %v4805
        %v4807 = vcombine.low %v4798, %v4806
        %v4808 = vcombine.low %v4214, %v4278
        %v4810 = vunpack.c.l.s4 1983009808
        %v4811 = vunpack.c.0.s8 %v4810
        %v4812 = vlaneseq
        %v4813 = vshrl.u32 %v4812, 7
        %v4814 = vsub.s32 %v4811, %v4813
        %v4815 = vrot.slane %v4808, %v4814
        %v4816 = vcombine.low %v4246, %v4310
        %v4818 = vunpack.c.l.s4 1983009808
        %v4819 = vunpack.c.0.s8 %v4818
        %v4820 = vlaneseq
        %v4821 = vshrl.u32 %v4820, 7
        %v4822 = vsub.s32 %v4819, %v4821
        %v4823 = vrot.slane %v4816, %v4822
        %v4824 = vcombine.low %v4342, %v4406
        %v4826 = vunpack.c.l.s4 1983009808
        %v4827 = vunpack.c.0.s8 %v4826
        %v4828 = vlaneseq
        %v4829 = vshrl.u32 %v4828, 7
        %v4830 = vsub.s32 %v4827, %v4829
        %v4831 = vrot.slane %v4824, %v4830
        %v4832 = vcombine.low %v4374, %v4438
        %v4834 = vunpack.c.l.s4 1983009808
        %v4835 = vunpack.c.0.s8 %v4834
        %v4836 = vlaneseq
        %v4837 = vshrl.u32 %v4836, 7
        %v4838 = vsub.s32 %v4835, %v4837
        %v4839 = vrot.slane %v4832, %v4838
        %v4840 = vcombine.low %v4815, %v4823
        %v4842 = vunpack.c.l.s4 1934713408
        %v4843 = vunpack.c.0.s8 %v4842
        %v4844 = vlaneseq
        %v4845 = vshrl.u32 %v4844, 7
        %v4846 = vsub.s32 %v4843, %v4845
        %v4847 = vrot.slane %v4840, %v4846
        %v4848 = vcombine.low %v4831, %v4839
        %v4850 = vunpack.c.l.s4 1934713408
        %v4851 = vunpack.c.0.s8 %v4850
        %v4852 = vlaneseq
        %v4853 = vshrl.u32 %v4852, 7
        %v4854 = vsub.s32 %v4851, %v4853
        %v4855 = vrot.slane %v4848, %v4854
        %v4856 = vcombine.low %v4847, %v4855
        %v4857 = vcombine.low %v4470, %v4534
        %v4859 = vunpack.c.l.s4 1983009808
        %v4860 = vunpack.c.0.s8 %v4859
        %v4861 = vlaneseq
        %v4862 = vshrl.u32 %v4861, 7
        %v4863 = vsub.s32 %v4860, %v4862
        %v4864 = vrot.slane %v4857, %v4863
        %v4865 = vcombine.low %v4502, %v4566
        %v4867 = vunpack.c.l.s4 1983009808
        %v4868 = vunpack.c.0.s8 %v4867
        %v4869 = vlaneseq
        %v4870 = vshrl.u32 %v4869, 7
        %v4871 = vsub.s32 %v4868, %v4870
        %v4872 = vrot.slane %v4865, %v4871
        %v4873 = vcombine.low %v4598, %v4662
        %v4875 = vunpack.c.l.s4 1983009808
        %v4876 = vunpack.c.0.s8 %v4875
        %v4877 = vlaneseq
        %v4878 = vshrl.u32 %v4877, 7
        %v4879 = vsub.s32 %v4876, %v4878
        %v4880 = vrot.slane %v4873, %v4879
        %v4881 = vcombine.low %v4630, %v4694
        %v4883 = vunpack.c.l.s4 1983009808
        %v4884 = vunpack.c.0.s8 %v4883
        %v4885 = vlaneseq
        %v4886 = vshrl.u32 %v4885, 7
        %v4887 = vsub.s32 %v4884, %v4886
        %v4888 = vrot.slane %v4881, %v4887
        %v4889 = vcombine.low %v4864, %v4872
        %v4891 = vunpack.c.l.s4 1934713408
        %v4892 = vunpack.c.0.s8 %v4891
        %v4893 = vlaneseq
        %v4894 = vshrl.u32 %v4893, 7
        %v4895 = vsub.s32 %v4892, %v4894
        %v4896 = vrot.slane %v4889, %v4895
        %v4897 = vcombine.low %v4880, %v4888
        %v4899 = vunpack.c.l.s4 1934713408
        %v4900 = vunpack.c.0.s8 %v4899
        %v4901 = vlaneseq
        %v4902 = vshrl.u32 %v4901, 7
        %v4903 = vsub.s32 %v4900, %v4902
        %v4904 = vrot.slane %v4897, %v4903
        %v4905 = vcombine.low %v4896, %v4904
        %v4907 = vsel %vm2850, %v4758, 0
        %v4910 = vsel %vm2850, %v4807, 0
        %v4913 = vsel %vm2850, %v4856, 0
        %v4916 = vsel %vm2850, %v4905, 0
        %v4919 = vsel %vm2850, %v2861, 0
        %4921 = vmatprep.subr.mxu0 0.0
        %4922 = vmatpush1.xpose.msra.mxu0 %v4919
        %4923 = vmatprep.subr.mxu0 0.0
        %4924 = vmatpush1.xpose.msra.mxu0 0.0
        %4925 = vmatprep.subr.mxu0 0.0
        %4926 = vmatpush1.xpose.msra.mxu0 0.0
        %4927 = vmatprep.subr.mxu0 0.0
        %4928 = vmatpush1.xpose.msra.mxu0 0.0
        %4929 = vmatprep.subr.mxu0 0.0
        %4930 = vmatpush1.xpose.msra.mxu0 0.0
        %4931 = vmatprep.subr.mxu0 0.0
        %4932 = vmatpush1.xpose.msra.mxu0 0.0
        %4933 = vmatprep.subr.mxu0 0.0
        %4934 = vmatpush1.xpose.msra.mxu0 0.0
        %4935 = vmatprep.subr.mxu0 0.0
        %4936 = vmatpush1.xpose.msra.mxu0 0.0
        %4937 = vmatprep.subr.mxu0 0.0
        %4938 = vmatpush1.xpose.msra.mxu0 0.0
        %4939 = vmatprep.subr.mxu0 0.0
        %4940 = vmatpush1.xpose.msra.mxu0 0.0
        %4941 = vmatprep.subr.mxu0 0.0
        %4942 = vmatpush1.xpose.msra.mxu0 0.0
        %4943 = vmatprep.subr.mxu0 0.0
        %4944 = vmatpush1.xpose.msra.mxu0 0.0
        %4945 = vmatprep.subr.mxu0 0.0
        %4946 = vmatpush1.xpose.msra.mxu0 0.0
        %4947 = vmatprep.subr.mxu0 0.0
        %4948 = vmatpush1.xpose.msra.mxu0 0.0
        %4949 = vmatprep.subr.mxu0 0.0
        %4950 = vmatpush1.xpose.msra.mxu0 0.0
        %4951 = vmatprep.subr.mxu0 0.0
        %4952 = vmatpush1.xpose.msra.mxu0 0.0
        %4953 = vmatprep.subr.mxu0 0.0
        %4954 = vmatpush1.xpose.msra.mxu0 0.0
        %4955 = vmatprep.subr.mxu0 0.0
        %4956 = vmatpush1.xpose.msra.mxu0 0.0
        %4957 = vmatprep.subr.mxu0 0.0
        %4958 = vmatpush1.xpose.msra.mxu0 0.0
        %4959 = vmatprep.subr.mxu0 0.0
        %4960 = vmatpush1.xpose.msra.mxu0 0.0
        %4961 = vmatprep.subr.mxu0 0.0
        %4962 = vmatpush1.xpose.msra.mxu0 0.0
        %4963 = vmatprep.subr.mxu0 0.0
        %4964 = vmatpush1.xpose.msra.mxu0 0.0
        %4965 = vmatprep.subr.mxu0 0.0
        %4966 = vmatpush1.xpose.msra.mxu0 0.0
        %4967 = vmatprep.subr.mxu0 0.0
        %4968 = vmatpush1.xpose.msra.mxu0 0.0
        %4969 = vmatprep.subr.mxu0 0.0
        %4970 = vmatpush1.xpose.msra.mxu0 0.0
        %4971 = vmatprep.subr.mxu0 0.0
        %4972 = vmatpush1.xpose.msra.mxu0 0.0
        %4973 = vmatprep.subr.mxu0 0.0
        %4974 = vmatpush1.xpose.msra.mxu0 0.0
        %4975 = vmatprep.subr.mxu0 0.0
        %4976 = vmatpush1.xpose.msra.mxu0 0.0
        %4977 = vmatprep.subr.mxu0 0.0
        %4978 = vmatpush1.xpose.msra.mxu0 0.0
        %4979 = vmatprep.subr.mxu0 0.0
        %4980 = vmatpush1.xpose.msra.mxu0 0.0
        %4981 = vmatprep.subr.mxu0 0.0
        %4982 = vmatpush1.xpose.msra.mxu0 0.0
        %4983 = vmatprep.subr.mxu0 0.0
        %4984 = vmatpush1.xpose.msra.mxu0 0.0
        %4985 = vmatprep.mubr.f32.mxu0 0.0
        %4986 = vmatmul.mubr.f32.gmra.mrb[0].mxu0 %v4907
        %v4987 = vpop.f32.mrb[0].mxu0
        %v4988 = vadd.f32 0.0, %v4987
        %v4989 = vpop.f32.mrb[0].mxu0
        %4990 = vmatprep.mubr.f32.mxu0 0.0
        %4991 = vmatmul.mubr.f32.gmra.mrb[0].mxu0 %v4910
        %v4992 = vpop.f32.mrb[0].mxu0
        %v4993 = vadd.f32 0.0, %v4992
        %v4994 = vpop.f32.mrb[0].mxu0
        %4995 = vmatprep.mubr.f32.mxu0 0.0
        %4996 = vmatmul.mubr.f32.gmra.mrb[0].mxu0 %v4913
        %v4997 = vpop.f32.mrb[0].mxu0
        %v4998 = vadd.f32 0.0, %v4997
        %v4999 = vpop.f32.mrb[0].mxu0
        %5000 = vmatprep.mubr.f32.mxu0 0.0
        %5001 = vmatmul.mubr.f32.gmra.mrb[0].mxu0 %v4916
        %v5002 = vpop.f32.mrb[0].mxu0
        %v5003 = vadd.f32 0.0, %v5002
        %v5004 = vpop.f32.mrb[0].mxu0
        %5005 = vdwg.mxu0
        %5006 = vxpose.xlu0.b32.start [1/16] %v4988, 128
        %5007 = vxpose.xlu0.b32.cont [2/16] %v4993, 128
        %5008 = vxpose.xlu0.b32.cont [3/16] %v4998, 128
        %5009 = vxpose.xlu0.b32.cont [4/16] %v5003, 128
        %5010 = vxpose.xlu0.b32.cont [5/16] 0.0, 128
        %5011 = vxpose.xlu0.b32.cont [6/16] 0.0, 128
        %5012 = vxpose.xlu0.b32.cont [7/16] 0.0, 128
        %5013 = vxpose.xlu0.b32.cont [8/16] 0.0, 128
        %5014 = vxpose.xlu0.b32.cont [9/16] 0.0, 128
        %5015 = vxpose.xlu0.b32.cont [10/16] 0.0, 128
        %5016 = vxpose.xlu0.b32.cont [11/16] 0.0, 128
        %5017 = vxpose.xlu0.b32.cont [12/16] 0.0, 128
        %5018 = vxpose.xlu0.b32.cont [13/16] 0.0, 128
        %5019 = vxpose.xlu0.b32.cont [14/16] 0.0, 128
        %5020 = vxpose.xlu0.b32.cont [15/16] 0.0, 128
        %5021 = vxpose.xlu0.b32.end [16/16] 0.0, 128
        %v5022 = vpop.trf.xlu0
        %v5023 = vpop.trf.xlu0
        %v5024 = vpop.trf.xlu0
        %v5025 = vpop.trf.xlu0
        %v5026 = vpop.trf.xlu0
        %v5027 = vpop.trf.xlu0
        %v5028 = vpop.trf.xlu0
        %v5029 = vpop.trf.xlu0
        %v5030 = vpop.trf.xlu0
        %v5031 = vpop.trf.xlu0
        %v5032 = vpop.trf.xlu0
        %v5033 = vpop.trf.xlu0
        %v5034 = vpop.trf.xlu0
        %v5035 = vpop.trf.xlu0
        %v5036 = vpop.trf.xlu0
        %v5037 = vpop.trf.xlu0
        %v5038 = vcombine.high %v5022, 0.0
        %v5040 = vunpack.c.l.s4 1983009808
        %v5041 = vunpack.c.0.s8 %v5040
        %v5042 = vlaneseq
        %v5043 = vshrl.u32 %v5042, 7
        %v5044 = vsub.s32 %v5041, %v5043
        %v5045 = vrot.slane %v5022, %v5044
        %v5047 = vunpack.c.l.s4 1983009808
        %v5048 = vunpack.c.0.s8 %v5047
        %v5049 = vlaneseq
        %v5050 = vshrl.u32 %v5049, 7
        %v5051 = vsub.s32 %v5048, %v5050
        %v5052 = vrot.slane %v5038, %v5051
        %v5053 = vcombine.high %v5045, 0.0
        %v5055 = vunpack.c.l.s4 1934713408
        %v5056 = vunpack.c.0.s8 %v5055
        %v5057 = vlaneseq
        %v5058 = vshrl.u32 %v5057, 7
        %v5059 = vsub.s32 %v5056, %v5058
        %v5060 = vrot.slane %v5045, %v5059
        %v5062 = vunpack.c.l.s4 1934713408
        %v5063 = vunpack.c.0.s8 %v5062
        %v5064 = vlaneseq
        %v5065 = vshrl.u32 %v5064, 7
        %v5066 = vsub.s32 %v5063, %v5065
        %v5067 = vrot.slane %v5053, %v5066
        %v5068 = vcombine.high %v5052, 0.0
        %v5070 = vunpack.c.l.s4 1934713408
        %v5071 = vunpack.c.0.s8 %v5070
        %v5072 = vlaneseq
        %v5073 = vshrl.u32 %v5072, 7
        %v5074 = vsub.s32 %v5071, %v5073
        %v5075 = vrot.slane %v5052, %v5074
        %v5077 = vunpack.c.l.s4 1934713408
        %v5078 = vunpack.c.0.s8 %v5077
        %v5079 = vlaneseq
        %v5080 = vshrl.u32 %v5079, 7
        %v5081 = vsub.s32 %v5078, %v5080
        %v5082 = vrot.slane %v5068, %v5081
        %v5083 = vcombine.high %v5060, 0.0
        %v5084 = vcombine.high %v5067, 0.0
        %v5085 = vcombine.high %v5075, 0.0
        %v5086 = vcombine.high %v5082, 0.0
        %v5087 = vld [vmem:[%s5] sm:$0xff]
        %v5088 = vld [vmem:[%s5 + $0x8] sm:$0xff]
        %v5089 = vld [vmem:[%s5 + $0x10] sm:$0xff]
        %v5090 = vld [vmem:[%s5 + $0x18] sm:$0xff]
        %v5091 = vld [vmem:[%s6] sm:$0x1]
        %v5093 = vlaneseq
        %v5094 = vshrl.u32 %v5093, 7
        %v5095 = vsub.s32 0, %v5094
        %v5096 = vrot.slane %v5091, %v5095
        %v5106 = vrot.slane %v5083, 7
        %vm5107 = vcmask 1041409
        %v5108 = vsel %vm5107, %v5106, %v5060
        %v5109 = vrot.slane %v5067, 6
        %vm5110 = vcmask 1042434
        %v5111 = vsel %vm5110, %v5109, %v5108
        %v5112 = vrot.slane %v5084, 5
        %vm5113 = vcmask 1043459
        %v5114 = vsel %vm5113, %v5112, %v5111
        %v5115 = vrot.slane %v5075, 4
        %vm5116 = vcmask 1044484
        %v5117 = vsel %vm5116, %v5115, %v5114
        %v5118 = vrot.slane %v5085, 3
        %vm5119 = vcmask 1045509
        %v5120 = vsel %vm5119, %v5118, %v5117
        %v5121 = vrot.slane %v5082, 2
        %vm5122 = vcmask 1046534
        %v5123 = vsel %vm5122, %v5121, %v5120
        %v5124 = vrot.slane %v5086, 1
        %vm5125 = vcmask 1047559
        %v5126 = vsel %vm5125, %v5124, %v5123
        %v5127 = vsel %vm439, %v5126, 0
        %5129 = vmatprep.subr.mxu0 0.0
        %5130 = vmatpush1.msra.mxu0 %v5087
        %5131 = vmatprep.subr.mxu0 0.0
        %5132 = vmatpush1.msra.mxu0 %v5088
        %5133 = vmatprep.subr.mxu0 0.0
        %5134 = vmatpush1.msra.mxu0 %v5089
        %5135 = vmatprep.subr.mxu0 0.0
        %5136 = vmatpush1.msra.mxu0 %v5090
        %5137 = vmatprep.subr.mxu0 0.0
        %5138 = vmatpush1.msra.mxu0 0.0
        %5139 = vmatprep.subr.mxu0 0.0
        %5140 = vmatpush1.msra.mxu0 0.0
        %5141 = vmatprep.subr.mxu0 0.0
        %5142 = vmatpush1.msra.mxu0 0.0
        %5143 = vmatprep.subr.mxu0 0.0
        %5144 = vmatpush1.msra.mxu0 0.0
        %5145 = vmatprep.subr.mxu0 0.0
        %5146 = vmatpush1.msra.mxu0 0.0
        %5147 = vmatprep.subr.mxu0 0.0
        %5148 = vmatpush1.msra.mxu0 0.0
        %5149 = vmatprep.subr.mxu0 0.0
        %5150 = vmatpush1.msra.mxu0 0.0
        %5151 = vmatprep.subr.mxu0 0.0
        %5152 = vmatpush1.msra.mxu0 0.0
        %5153 = vmatprep.subr.mxu0 0.0
        %5154 = vmatpush1.msra.mxu0 0.0
        %5155 = vmatprep.subr.mxu0 0.0
        %5156 = vmatpush1.msra.mxu0 0.0
        %5157 = vmatprep.subr.mxu0 0.0
        %5158 = vmatpush1.msra.mxu0 0.0
        %5159 = vmatprep.subr.mxu0 0.0
        %5160 = vmatpush1.msra.mxu0 0.0
        %5161 = vmatprep.subr.mxu0 0.0
        %5162 = vmatpush1.msra.mxu0 0.0
        %5163 = vmatprep.subr.mxu0 0.0
        %5164 = vmatpush1.msra.mxu0 0.0
        %5165 = vmatprep.subr.mxu0 0.0
        %5166 = vmatpush1.msra.mxu0 0.0
        %5167 = vmatprep.subr.mxu0 0.0
        %5168 = vmatpush1.msra.mxu0 0.0
        %5169 = vmatprep.subr.mxu0 0.0
        %5170 = vmatpush1.msra.mxu0 0.0
        %5171 = vmatprep.subr.mxu0 0.0
        %5172 = vmatpush1.msra.mxu0 0.0
        %5173 = vmatprep.subr.mxu0 0.0
        %5174 = vmatpush1.msra.mxu0 0.0
        %5175 = vmatprep.subr.mxu0 0.0
        %5176 = vmatpush1.msra.mxu0 0.0
        %5177 = vmatprep.subr.mxu0 0.0
        %5178 = vmatpush1.msra.mxu0 0.0
        %5179 = vmatprep.subr.mxu0 0.0
        %5180 = vmatpush1.msra.mxu0 0.0
        %5181 = vmatprep.subr.mxu0 0.0
        %5182 = vmatpush1.msra.mxu0 0.0
        %5183 = vmatprep.subr.mxu0 0.0
        %5184 = vmatpush1.msra.mxu0 0.0
        %5185 = vmatprep.subr.mxu0 0.0
        %5186 = vmatpush1.msra.mxu0 0.0
        %5187 = vmatprep.subr.mxu0 0.0
        %5188 = vmatpush1.msra.mxu0 0.0
        %5189 = vmatprep.subr.mxu0 0.0
        %5190 = vmatpush1.msra.mxu0 0.0
        %5191 = vmatprep.subr.mxu0 0.0
        %5192 = vmatpush1.msra.mxu0 0.0
        %5193 = vmatprep.mubr.f32.mxu0 0.0
        %5194 = vmatmul.mubr.f32.gmra.mrb[0].mxu0 %v5127
        %v5195 = vpop.f32.mrb[0].mxu0
        %v5196 = vadd.f32 %v5096, %v5195
        %v5197 = vpop.f32.mrb[0].mxu0
        %5198 = vdwg.mxu0
        %v5199 = vadd.f32 %v5196, %v436
        %v5200 = vld [vmem:[%s7] sm:$0x1]
        %v5201 = vld [vmem:[%s8] sm:$0x1]
        %v5202 = vsel %vm439, %v5199, 0.0
        %5203 = vadd.xlane.f32.xlu0 %v5202
        %v5204 = vpop.xlane.xlu0 %5203
        %v5205 = vmul.f32 %v5204, %v443
        %v5206 = vsub.f32 %v5199, %v5205
        %v5207 = vmul.f32 %v5206, %v5206
        %v5208 = vsel %vm439, %v5207, 0.0
        %5209 = vadd.xlane.f32.xlu0 %v5208
        %v5210 = vpop.xlane.xlu0 %5209
        %v5211 = vmul.f32 %v5210, %v443
        %v5212 = vadd.f32 %v5211, 1e-05
        %v5213 = vrsqrt.pop %v5212
        %v5214 = vmul.f32 %v5206, %v5213
        %v5216 = vlaneseq
        %v5217 = vshrl.u32 %v5216, 7
        %v5218 = vsub.s32 0, %v5217
        %v5219 = vrot.slane %v5200, %v5218
        %v5221 = vmul.f32 %v5214, %v5219
        %v5223 = vlaneseq
        %v5224 = vshrl.u32 %v5223, 7
        %v5225 = vsub.s32 0, %v5224
        %v5226 = vrot.slane %v5201, %v5225
        %v5228 = vadd.f32 %v5221, %v5226
        %v5229 = vld [vmem:[%s9] sm:$0xff]
        %v5230 = vld [vmem:[%s9 + $0x8] sm:$0xff]
        %v5231 = vld [vmem:[%s9 + $0x10] sm:$0xff]
        %v5232 = vld [vmem:[%s9 + $0x18] sm:$0xff]
        %v5233 = vld [vmem:[%s10] sm:$0x1]
        %v5235 = vlaneseq
        %v5236 = vshrl.u32 %v5235, 7
        %v5237 = vsub.s32 0, %v5236
        %v5238 = vrot.slane %v5233, %v5237
        %v5241 = vsel %vm439, %v5228, 0
        %5243 = vmatprep.subr.mxu0 0.0
        %5244 = vmatpush1.msra.mxu0 %v5229
        %5245 = vmatprep.subr.mxu0 0.0
        %5246 = vmatpush1.msra.mxu0 %v5230
        %5247 = vmatprep.subr.mxu0 0.0
        %5248 = vmatpush1.msra.mxu0 %v5231
        %5249 = vmatprep.subr.mxu0 0.0
        %5250 = vmatpush1.msra.mxu0 %v5232
        %5251 = vmatprep.subr.mxu0 0.0
        %5252 = vmatpush1.msra.mxu0 0.0
        %5253 = vmatprep.subr.mxu0 0.0
        %5254 = vmatpush1.msra.mxu0 0.0
        %5255 = vmatprep.subr.mxu0 0.0
        %5256 = vmatpush1.msra.mxu0 0.0
        %5257 = vmatprep.subr.mxu0 0.0
        %5258 = vmatpush1.msra.mxu0 0.0
        %5259 = vmatprep.subr.mxu0 0.0
        %5260 = vmatpush1.msra.mxu0 0.0
        %5261 = vmatprep.subr.mxu0 0.0
        %5262 = vmatpush1.msra.mxu0 0.0
        %5263 = vmatprep.subr.mxu0 0.0
        %5264 = vmatpush1.msra.mxu0 0.0
        %5265 = vmatprep.subr.mxu0 0.0
        %5266 = vmatpush1.msra.mxu0 0.0
        %5267 = vmatprep.subr.mxu0 0.0
        %5268 = vmatpush1.msra.mxu0 0.0
        %5269 = vmatprep.subr.mxu0 0.0
        %5270 = vmatpush1.msra.mxu0 0.0
        %5271 = vmatprep.subr.mxu0 0.0
        %5272 = vmatpush1.msra.mxu0 0.0
        %5273 = vmatprep.subr.mxu0 0.0
        %5274 = vmatpush1.msra.mxu0 0.0
        %5275 = vmatprep.subr.mxu0 0.0
        %5276 = vmatpush1.msra.mxu0 0.0
        %5277 = vmatprep.subr.mxu0 0.0
        %5278 = vmatpush1.msra.mxu0 0.0
        %5279 = vmatprep.subr.mxu0 0.0
        %5280 = vmatpush1.msra.mxu0 0.0
        %5281 = vmatprep.subr.mxu0 0.0
        %5282 = vmatpush1.msra.mxu0 0.0
        %5283 = vmatprep.subr.mxu0 0.0
        %5284 = vmatpush1.msra.mxu0 0.0
        %5285 = vmatprep.subr.mxu0 0.0
        %5286 = vmatpush1.msra.mxu0 0.0
        %5287 = vmatprep.subr.mxu0 0.0
        %5288 = vmatpush1.msra.mxu0 0.0
        %5289 = vmatprep.subr.mxu0 0.0
        %5290 = vmatpush1.msra.mxu0 0.0
        %5291 = vmatprep.subr.mxu0 0.0
        %5292 = vmatpush1.msra.mxu0 0.0
        %5293 = vmatprep.subr.mxu0 0.0
        %5294 = vmatpush1.msra.mxu0 0.0
        %5295 = vmatprep.subr.mxu0 0.0
        %5296 = vmatpush1.msra.mxu0 0.0
        %5297 = vmatprep.subr.mxu0 0.0
        %5298 = vmatpush1.msra.mxu0 0.0
        %5299 = vmatprep.subr.mxu0 0.0
        %5300 = vmatpush1.msra.mxu0 0.0
        %5301 = vmatprep.subr.mxu0 0.0
        %5302 = vmatpush1.msra.mxu0 0.0
        %5303 = vmatprep.subr.mxu0 0.0
        %5304 = vmatpush1.msra.mxu0 0.0
        %5305 = vmatprep.subr.mxu0 0.0
        %5306 = vmatpush1.msra.mxu0 0.0
        %5307 = vmatprep.mubr.f32.mxu0 0.0
        %5308 = vmatmul.mubr.f32.gmra.mrb[0].mxu0 %v5241
        %v5309 = vpop.f32.mrb[0].mxu0
        %v5310 = vadd.f32 %v5238, %v5309
        %v5311 = vpop.f32.mrb[0].mxu0
        %5312 = vdwg.mxu0
        %v5313 = vmul.f32 %v5310, 0.5
        %v5314 = vmul.f32 %v5310, 0.70710677
        %v5315 = verf.f32.pop %v5314
        %v5316 = vadd.f32 %v5315, 1.0
        %v5317 = vmul.f32 %v5313, %v5316
        %v5318 = vld [vmem:[%s11] sm:$0xff]
        %v5319 = vld [vmem:[%s11 + $0x8] sm:$0xff]
        %v5320 = vld [vmem:[%s11 + $0x10] sm:$0xff]
        %v5321 = vld [vmem:[%s11 + $0x18] sm:$0xff]
        %v5322 = vld [vmem:[%s11 + $0x20] sm:$0xff]
        %v5323 = vld [vmem:[%s11 + $0x28] sm:$0xff]
        %v5324 = vld [vmem:[%s11 + $0x30] sm:$0xff]
        %v5325 = vld [vmem:[%s11 + $0x38] sm:$0xff]
        %v5326 = vld [vmem:[%s11 + $0x40] sm:$0xff]
        %v5327 = vld [vmem:[%s11 + $0x48] sm:$0xff]
        %v5328 = vld [vmem:[%s11 + $0x50] sm:$0xff]
        %v5329 = vld [vmem:[%s11 + $0x58] sm:$0xff]
        %v5330 = vld [vmem:[%s11 + $0x60] sm:$0xff]
        %v5331 = vld [vmem:[%s11 + $0x68] sm:$0xff]
        %v5332 = vld [vmem:[%s11 + $0x70] sm:$0xff]
        %v5333 = vld [vmem:[%s11 + $0x78] sm:$0xff]
        %v5334 = vld [vmem:[%s12] sm:$0x1]
        %v5336 = vlaneseq
        %v5337 = vshrl.u32 %v5336, 7
        %v5338 = vsub.s32 0, %v5337
        %v5339 = vrot.slane %v5334, %v5338
        %5341 = vmatprep.subr.mxu0 0.0
        %5342 = vmatpush1.msra.mxu0 %v5318
        %5343 = vmatprep.subr.mxu0 0.0
        %5344 = vmatpush1.msra.mxu0 %v5319
        %5345 = vmatprep.subr.mxu0 0.0
        %5346 = vmatpush1.msra.mxu0 %v5320
        %5347 = vmatprep.subr.mxu0 0.0
        %5348 = vmatpush1.msra.mxu0 %v5321
        %5349 = vmatprep.subr.mxu0 0.0
        %5350 = vmatpush1.msra.mxu0 %v5322
        %5351 = vmatprep.subr.mxu0 0.0
        %5352 = vmatpush1.msra.mxu0 %v5323
        %5353 = vmatprep.subr.mxu0 0.0
        %5354 = vmatpush1.msra.mxu0 %v5324
        %5355 = vmatprep.subr.mxu0 0.0
        %5356 = vmatpush1.msra.mxu0 %v5325
        %5357 = vmatprep.subr.mxu0 0.0
        %5358 = vmatpush1.msra.mxu0 %v5326
        %5359 = vmatprep.subr.mxu0 0.0
        %5360 = vmatpush1.msra.mxu0 %v5327
        %5361 = vmatprep.subr.mxu0 0.0
        %5362 = vmatpush1.msra.mxu0 %v5328
        %5363 = vmatprep.subr.mxu0 0.0
        %5364 = vmatpush1.msra.mxu0 %v5329
        %5365 = vmatprep.subr.mxu0 0.0
        %5366 = vmatpush1.msra.mxu0 %v5330
        %5367 = vmatprep.subr.mxu0 0.0
        %5368 = vmatpush1.msra.mxu0 %v5331
        %5369 = vmatprep.subr.mxu0 0.0
        %5370 = vmatpush1.msra.mxu0 %v5332
        %5371 = vmatprep.subr.mxu0 0.0
        %5372 = vmatpush1.msra.mxu0 %v5333
        %5373 = vmatprep.subr.mxu0 0.0
        %5374 = vmatpush1.msra.mxu0 0.0
        %5375 = vmatprep.subr.mxu0 0.0
        %5376 = vmatpush1.msra.mxu0 0.0
        %5377 = vmatprep.subr.mxu0 0.0
        %5378 = vmatpush1.msra.mxu0 0.0
        %5379 = vmatprep.subr.mxu0 0.0
        %5380 = vmatpush1.msra.mxu0 0.0
        %5381 = vmatprep.subr.mxu0 0.0
        %5382 = vmatpush1.msra.mxu0 0.0
        %5383 = vmatprep.subr.mxu0 0.0
        %5384 = vmatpush1.msra.mxu0 0.0
        %5385 = vmatprep.subr.mxu0 0.0
        %5386 = vmatpush1.msra.mxu0 0.0
        %5387 = vmatprep.subr.mxu0 0.0
        %5388 = vmatpush1.msra.mxu0 0.0
        %5389 = vmatprep.subr.mxu0 0.0
        %5390 = vmatpush1.msra.mxu0 0.0
        %5391 = vmatprep.subr.mxu0 0.0
        %5392 = vmatpush1.msra.mxu0 0.0
        %5393 = vmatprep.subr.mxu0 0.0
        %5394 = vmatpush1.msra.mxu0 0.0
        %5395 = vmatprep.subr.mxu0 0.0
        %5396 = vmatpush1.msra.mxu0 0.0
        %5397 = vmatprep.subr.mxu0 0.0
        %5398 = vmatpush1.msra.mxu0 0.0
        %5399 = vmatprep.subr.mxu0 0.0
        %5400 = vmatpush1.msra.mxu0 0.0
        %5401 = vmatprep.subr.mxu0 0.0
        %5402 = vmatpush1.msra.mxu0 0.0
        %5403 = vmatprep.subr.mxu0 0.0
        %5404 = vmatpush1.msra.mxu0 0.0
        %5405 = vmatprep.mubr.f32.mxu0 0.0
        %5406 = vmatmul.mubr.f32.gmra.mrb[0].mxu0 %v5317
        %v5407 = vpop.f32.mrb[0].mxu0
        %v5408 = vadd.f32 %v5339, %v5407
        %v5409 = vpop.f32.mrb[0].mxu0
        %5410 = vdwg.mxu0
        %v5411 = vadd.f32 %v5408, %v5199
        %5412 = vst.msk [vmem:[%s431] sm:$0xff] %vm439, %v5411
        %s5413 = sand.u32 %s313, 1
        %s5414 = scalar_lea.sflag [#allocation3], %s5413
        %s5415 = sand.u32 %s313, 1
        %s5416 = smul.addr %s5415, 8
        %s5417 = scalar_lea.vmem [#allocation2], %s5416
        // Predicated region
        $region73: #{tpu_custom_call.1} parent=71 // pred_check
          %p5418 = pneg %p323
        $region74: #{tpu_custom_call.1} parent=71 // pred_check_branch
          %5420 = sbr.rel (%p5418) target = $region76
        $region75: #{tpu_custom_call.1} parent=71 // pred_region
          %s5422 = ssub.s32 128, 128
          %5423 = vsyncadd %s5414, %s5422
          %s5424 = smul.addr %s27, 128
          %s5425 = scalar_lea.hbm %s13, %s5424
          %s5427 = sshll.u32 %s5417, 4
          %s5428 = int_to_ptr.vmem [resolvable:$true] %s5427
          %5430 = dma.vmem_to_hbm [thread:$0]  %s5428, 128, %s5425, %s5414
        $region76: #{tpu_custom_call.1} parent=71 // pred_fallthru
          _
      $region72: #{tpu_custom_call.1} parent=5 // pred_fallthru
        _
      %p5431 = scmp.le.s32.totalorder 2, %s22
      // Predicated region
      $region77: #{tpu_custom_call.1} parent=5 // pred_check
        %p5432 = pneg %p5431
      $region78: #{tpu_custom_call.1} parent=5 // pred_check_branch
        %5434 = sbr.rel (%p5432) target = $region80
      $region79: #{tpu_custom_call.1} parent=5 // pred_region
        %s5435 = ssub.s32 %s22, 2
        // Predicated region
        $region81: #{tpu_custom_call.1} parent=79 // pred_check
          %p5436 = pneg %p329
        $region82: #{tpu_custom_call.1} parent=79 // pred_check_branch
          %5438 = sbr.rel (%p5436) target = $region84
        $region83: #{tpu_custom_call.1} parent=79 // pred_region
          %s5439 = sand.u32 %s314, 1
          %s5440 = scalar_lea.sflag [#allocation3], %s5439
          %s5441 = sand.u32 %s314, 1
          %s5442 = smul.addr %s5441, 8
          %s5443 = scalar_lea.vmem [#allocation2], %s5442
          %5444 = dma.done %s5440, 128
        $region84: #{tpu_custom_call.1} parent=79 // pred_fallthru
          _
      $region80: #{tpu_custom_call.1} parent=5 // pred_fallthru
        _
    $region6: #{tpu_custom_call.1} parent=1 // loop_footer
      %s26 = sadd.s32 1, %s22
    $region7: #{tpu_custom_call.1} parent=1 // loop_footer_branch
      %21 = sbr.rel target = $region3
    $region8: #{tpu_custom_call.1} parent=1 // loop_exit
      _
    %5445 = vsyncpa [#allocation3], 1
    %s5446 = scalar_lea.sflag [#allocation3], 1
    %5447 = vsyncpa %s5446, 1

</llo_original>
